<compile_context>
chip_gen: v6e
topology: v6e:2x2x1
jax: 0.10.0
libtpu: 0.0.40
codegen_flags: <defaults>
</compile_context>

<pallas_src>
import functools
import math

import jax
import jax.numpy as jnp
from jax import lax
from jax.experimental import pallas as pl
from jax.experimental.pallas import tpu as pltpu

NEG_SLOPE = 0.01  # torch nn.LeakyReLU default negative_slope


def _leaky_relu(x):
    return jnp.where(x > 0, x, NEG_SLOPE * x)


def _res_stack_kernel(x_ref, w_ref, b_ref, o_ref, tbuf, *,
                      ksize, dilations, nb, pad_l, seg, out_len,
                      use_fused_taps, mxu_dtype):
    """One grid step processes `nb` batch items packed along lanes.

    tbuf layout (C, nb*seg): segment b holds [pad_l zeros | L data | right zeros];
    the zero halos reproduce Conv1d padding='same' exactly and also isolate
    neighbouring batch items from each other's taps.
    """
    L = out_len
    C = tbuf.shape[0]
    total = (nb - 1) * seg + L          # matmul output width (covers all data regions)
    f32 = jnp.float32

    # --- zero ONLY the halo columns (centres are fully written before every
    #     read).  Done unconditionally each step -> safe under megacore. -----
    right = seg - pad_l - L
    for b in range(nb):
        base = b * seg
        if pad_l > 0:
            tbuf[:, base:base + pad_l] = jnp.zeros((C, pad_l), f32)
        if right > 0:
            tbuf[:, base + pad_l + L:base + seg] = jnp.zeros((C, right), f32)

    # Residual stream lives directly in the output block (VMEM resident).
    o_ref[...] = x_ref[...]

    def dilated_conv(w_flat, bias, dil):
        left = dil * (ksize - 1) // 2
        starts = [pad_l + k * dil - left for k in range(ksize)]
        if use_fused_taps:
            # Small Cin: fuse taps along the contraction -> one MXU matmul with
            # a K*Cin-deep contraction instead of K shallow ones.
            x_taps = jnp.concatenate([tbuf[:, s:s + total] for s in starts], axis=0)
            w_op = w_flat
            if mxu_dtype is not None:
                x_taps = x_taps.astype(mxu_dtype)
                w_op = w_op.astype(mxu_dtype)
            y = jnp.dot(w_op, x_taps, preferred_element_type=f32)
        else:
            # Cin already fills the MXU contraction: skip the (K*C, total)
            # concat copy; accumulate K per-tap matmuls back-to-back
            # (MRB in-place accumulate on v7x, MRF pop + vadd elsewhere).
            y = None
            for k, s in enumerate(starts):
                wk = w_flat[:, k * C:(k + 1) * C]
                xk = tbuf[:, s:s + total]
                if mxu_dtype is not None:
                    wk = wk.astype(mxu_dtype)
                    xk = xk.astype(mxu_dtype)
                d = jnp.dot(wk, xk, preferred_element_type=f32)
                y = d if y is None else y + d
        return y + bias

    conv = 0
    for (d1, d2) in dilations:
        # leaky(residual) -> slab centres; halo stays 0 because leaky(0) == 0.
        for b in range(nb):
            c0 = b * seg + pad_l
            tbuf[:, c0:c0 + L] = _leaky_relu(o_ref[b].astype(f32))
        y1 = dilated_conv(w_ref[conv], b_ref[conv], d1)
        conv += 1
        # leaky(conv1) -> slab centres (per batch: skip the junk inter-segment
        # columns of y1 so the halos stay exactly zero for conv2).
        for b in range(nb):
            c0 = b * seg + pad_l
            tbuf[:, c0:c0 + L] = _leaky_relu(y1[:, b * seg:b * seg + L])
        y2 = dilated_conv(w_ref[conv], b_ref[conv], d2)
        conv += 1
        # residual update, resident in the output block across residual blocks
        for b in range(nb):
            o_ref[b] = (o_ref[b].astype(f32)
                        + y2[:, b * seg:b * seg + L]).astype(o_ref.dtype)


def res_stack_forward(x, params, *, ksize, dilations, mxu_dtype=None):
    N, C, L = x.shape
    num_blocks = len(dilations)
    num_convs = 2 * num_blocks
    assert len(params) == num_blocks

    dil_flat = [int(d) for pair in dilations for d in pair]
    max_left = max(d * (ksize - 1) // 2 for d in dil_flat)
    max_right = max(d * (ksize - 1) - d * (ksize - 1) // 2 for d in dil_flat)

    def rup(v, m):
        return ((v + m - 1) // m) * m

    # Lane-align the per-batch data region so centre stores stay unmasked vst;
    # tap loads are unaligned regardless (XLU has slack).
    pad_l = rup(max_left, 128) if max_left > 0 else 0
    seg = rup(pad_l + L + max_right, 128)

    # Re-layout every conv weight (Cout, Cin, K) -> (Cout, K*Cin) so the lane
    # axis is K*Cin (lane-dense MXU operand); stack all convs of the stack so
    # one pallas_call sees every weight.
    w_list, b_list = [], []
    for (w1, b1, w2, b2) in params:
        for w, b in ((w1, b1), (w2, b2)):
            w_list.append(jnp.transpose(w, (0, 2, 1)).reshape(C, ksize * C))
            b_list.append(jnp.reshape(b, (C, 1)))
    w_dtype = jnp.float32 if mxu_dtype is None else mxu_dtype
    w_all = jnp.stack(w_list).astype(w_dtype)        # (num_convs, C, K*C)
    b_all = jnp.stack(b_list).astype(jnp.float32)    # (num_convs, C, 1)

    itemsize = jnp.dtype(x.dtype).itemsize
    w_bytes = w_all.size * jnp.dtype(w_dtype).itemsize
    bias_bytes = b_all.size * 4

    # --- VMEM budgeting from the actual device, not a constant --------------
    try:
        vmem_cap = int(pltpu.get_tpu_info().vmem_capacity_bytes)
    except Exception:
        vmem_cap = 64 * 1024 * 1024   # conservative (v7x per-TC) fallback

    def est_vmem(nb):
        slab = C * nb * seg * 4                       # activation slab (scratch)
        io = 4 * nb * C * L * itemsize                # in + out, double buffered
        wts = 2 * (w_bytes + bias_bytes)              # default double buffering
        tmp = 3 * C * ((nb - 1) * seg + L) * 4        # conv-result temporaries
        return slab + io + wts + tmp

    budget = int(0.6 * vmem_cap)
    nb = 1
    for cand in range(N, 0, -1):                      # largest divisor that fits
        if N % cand == 0 and est_vmem(cand) <= budget:
            nb = cand
            break

    use_fused_taps = C < 128   # below the MXU contraction -> fuse taps

    kernel = functools.partial(
        _res_stack_kernel,
        ksize=int(ksize),
        dilations=[(int(a), int(b)) for a, b in dilations],
        nb=nb, pad_l=pad_l, seg=seg, out_len=L,
        use_fused_taps=use_fused_taps, mxu_dtype=mxu_dtype)

    total = (nb - 1) * seg + L
    cost = pl.CostEstimate(
        flops=int(2 * C * ksize * C * total * num_convs * (N // nb)),
        transcendentals=0,
        bytes_accessed=int(2 * N * C * L * itemsize + w_bytes + bias_bytes))

    vmem_limit = int(min(vmem_cap, max(32 * 1024 * 1024, 2 * est_vmem(nb))))

    return pl.pallas_call(
        kernel,
        out_shape=jax.ShapeDtypeStruct((N, C, L), x.dtype),
        grid_spec=pltpu.PrefetchScalarGridSpec(
            num_scalar_prefetch=0,
            grid=(N // nb,),
            in_specs=[
                pl.BlockSpec((nb, C, L), lambda n: (n, 0, 0)),
                # TODO(synk): pipeline_mode=pl.Buffered(1) on these constant
                # weight/bias blocks removes their 2x double-buffer (matters on
                # v7x at C=512); omitted here for broad jax-version safety.
                pl.BlockSpec((num_convs, C, ksize * C), lambda n: (0, 0, 0)),
                pl.BlockSpec((num_convs, C, 1), lambda n: (0, 0, 0)),
            ],
            out_specs=pl.BlockSpec((nb, C, L), lambda n: (n, 0, 0)),
            scratch_shapes=[
                pltpu.VMEM((C, nb * seg), jnp.float32),   # activation slab
            ],
        ),
        compiler_params=pltpu.CompilerParams(
            dimension_semantics=("parallel",),
            vmem_limit_bytes=vmem_limit,
        ),
        cost_estimate=cost,
    )(x, w_all, b_all)


def init_res_stack_params(key, channels, ksize, dilations):
    # Matches PyTorch Conv1d default init: weight (Cout, Cin, K), bias (Cout,),
    # both U(-1/sqrt(fan_in), 1/sqrt(fan_in)). weight_norm at init reproduces
    # the same effective weight (g = ||v||).
    params = []
    bound = 1.0 / math.sqrt(channels * ksize)
    for _ in dilations:
        key, k1, k2, k3, k4 = jax.random.split(key, 5)
        w1 = jax.random.uniform(k1, (channels, channels, ksize), jnp.float32, -bound, bound)
        b1 = jax.random.uniform(k2, (channels, 1), jnp.float32, -bound, bound)
        w2 = jax.random.uniform(k3, (channels, channels, ksize), jnp.float32, -bound, bound)
        b2 = jax.random.uniform(k4, (channels, 1), jnp.float32, -bound, bound)
        params.append((w1, b1, w2, b2))
    return params


def ref_forward(x, params, *, ksize, dilations):
    # Pure-JAX reference (lax conv) for the correctness check.
    dn = ("NCH", "OIH", "NCH")
    for (w1, b1, w2, b2), (d1, d2) in zip(params, dilations):
        a1 = jnp.where(x > 0, x, NEG_SLOPE * x)
        y1 = lax.conv_general_dilated(
            a1, w1, window_strides=(1,), padding="SAME",
            rhs_dilation=(int(d1),), dimension_numbers=dn) + b1[None, :, :]
        a2 = jnp.where(y1 > 0, y1, NEG_SLOPE * y1)
        y2 = lax.conv_general_dilated(
            a2, w2, window_strides=(1,), padding="SAME",
            rhs_dilation=(int(d2),), dimension_numbers=dn) + b2[None, :, :]
        x = x + y2
    return x


if __name__ == "__main__":
    # Small shapes consistent with ResStack(channels_num, kernel_size, dilation)
    N, C, L = 4, 8, 256
    kernel_size = 3
    dilations = [[1, 3], [2, 6], [3, 12]]

    key = jax.random.PRNGKey(0)
    key, xk = jax.random.split(key)
    x = jax.random.normal(xk, (N, C, L), dtype=jnp.float32)

    params = init_res_stack_params(key, C, kernel_size, dilations)

    out = res_stack_forward(x, params, ksize=kernel_size, dilations=dilations)
    out = jax.block_until_ready(out)

    ref = ref_forward(x, params, ksize=kernel_size, dilations=dilations)
    assert out.shape == (N, C, L)
    err = float(jnp.max(jnp.abs(out - ref)))
    assert jnp.allclose(out, ref, atol=1e-4, rtol=1e-4), err

    print("KERNEL_OK")
</pallas_src>

<mosaic_0001>
module attributes {stable_mosaic.version = 11 : i64} {
  func.func @_res_stack_kernel(%arg0: i32, %arg1: memref<4x8x256xf32, #tpu.memory_space<vmem>>, %arg2: memref<6x8x24xf32, #tpu.memory_space<vmem>>, %arg3: memref<6x8x1xf32, #tpu.memory_space<vmem>>, %arg4: memref<4x8x256xf32, #tpu.memory_space<vmem>>, %arg5: memref<8x2048xf32, #tpu.memory_space<vmem>>) attributes {dimension_semantics = [#tpu.dimension_semantics<parallel>], iteration_bounds = array<i64: 1>, scalar_prefetch = 0 : i64, scratch_operands = 1 : i64, tpu.core_type = #tpu.core_type<tc>, window_params = [{transform_indices = @transform_0, window_bounds = array<i64: 4, 8, 256>}, {pipeline_mode = #tpu.pipeline_mode<synchronous>, transform_indices = @transform_1, window_bounds = array<i64: 6, 8, 24>}, {pipeline_mode = #tpu.pipeline_mode<synchronous>, transform_indices = @transform_2, window_bounds = array<i64: 6, 8, 1>}, {transform_indices = @transform_3, window_bounds = array<i64: 4, 8, 256>}]} {
    %cst = arith.constant 0.000000e+00 : f32
    %0 = vector.broadcast %cst : f32 to vector<8x128xf32>
    %c0 = arith.constant 0 : index
    %c0_0 = arith.constant 0 : index
    %1 = vector.load %arg5[%c0, %c0_0] : memref<8x2048xf32, #tpu.memory_space<vmem>>, vector<8x128xf32>
    tpu.vector_store %arg5[%c0, %c0_0], %0 {strides = array<i32>} : memref<8x2048xf32, #tpu.memory_space<vmem>>, vector<8x128xf32>,
    %cst_1 = arith.constant 0.000000e+00 : f32
    %2 = vector.broadcast %cst_1 : f32 to vector<8x128xf32>
    %c0_2 = arith.constant 0 : index
    %c384 = arith.constant 384 : index
    %3 = vector.load %arg5[%c0_2, %c384] : memref<8x2048xf32, #tpu.memory_space<vmem>>, vector<8x128xf32>
    tpu.vector_store %arg5[%c0_2, %c384], %2 {strides = array<i32>} : memref<8x2048xf32, #tpu.memory_space<vmem>>, vector<8x128xf32>,
    %cst_3 = arith.constant 0.000000e+00 : f32
    %4 = vector.broadcast %cst_3 : f32 to vector<8x128xf32>
    %c0_4 = arith.constant 0 : index
    %c512 = arith.constant 512 : index
    %5 = vector.load %arg5[%c0_4, %c512] : memref<8x2048xf32, #tpu.memory_space<vmem>>, vector<8x128xf32>
    tpu.vector_store %arg5[%c0_4, %c512], %4 {strides = array<i32>} : memref<8x2048xf32, #tpu.memory_space<vmem>>, vector<8x128xf32>,
    %cst_5 = arith.constant 0.000000e+00 : f32
    %6 = vector.broadcast %cst_5 : f32 to vector<8x128xf32>
    %c0_6 = arith.constant 0 : index
    %c896 = arith.constant 896 : index
    %7 = vector.load %arg5[%c0_6, %c896] : memref<8x2048xf32, #tpu.memory_space<vmem>>, vector<8x128xf32>
    tpu.vector_store %arg5[%c0_6, %c896], %6 {strides = array<i32>} : memref<8x2048xf32, #tpu.memory_space<vmem>>, vector<8x128xf32>,
    %cst_7 = arith.constant 0.000000e+00 : f32
    %8 = vector.broadcast %cst_7 : f32 to vector<8x128xf32>
    %c0_8 = arith.constant 0 : index
    %c1024 = arith.constant 1024 : index
    %9 = vector.load %arg5[%c0_8, %c1024] : memref<8x2048xf32, #tpu.memory_space<vmem>>, vector<8x128xf32>
    tpu.vector_store %arg5[%c0_8, %c1024], %8 {strides = array<i32>} : memref<8x2048xf32, #tpu.memory_space<vmem>>, vector<8x128xf32>,
    %cst_9 = arith.constant 0.000000e+00 : f32
    %10 = vector.broadcast %cst_9 : f32 to vector<8x128xf32>
    %c0_10 = arith.constant 0 : index
    %c1408 = arith.constant 1408 : index
    %11 = vector.load %arg5[%c0_10, %c1408] : memref<8x2048xf32, #tpu.memory_space<vmem>>, vector<8x128xf32>
    tpu.vector_store %arg5[%c0_10, %c1408], %10 {strides = array<i32>} : memref<8x2048xf32, #tpu.memory_space<vmem>>, vector<8x128xf32>,
    %cst_11 = arith.constant 0.000000e+00 : f32
    %12 = vector.broadcast %cst_11 : f32 to vector<8x128xf32>
    %c0_12 = arith.constant 0 : index
    %c1536 = arith.constant 1536 : index
    %13 = vector.load %arg5[%c0_12, %c1536] : memref<8x2048xf32, #tpu.memory_space<vmem>>, vector<8x128xf32>
    tpu.vector_store %arg5[%c0_12, %c1536], %12 {strides = array<i32>} : memref<8x2048xf32, #tpu.memory_space<vmem>>, vector<8x128xf32>,
    %cst_13 = arith.constant 0.000000e+00 : f32
    %14 = vector.broadcast %cst_13 : f32 to vector<8x128xf32>
    %c0_14 = arith.constant 0 : index
    %c1920 = arith.constant 1920 : index
    %15 = vector.load %arg5[%c0_14, %c1920] : memref<8x2048xf32, #tpu.memory_space<vmem>>, vector<8x128xf32>
    tpu.vector_store %arg5[%c0_14, %c1920], %14 {strides = array<i32>} : memref<8x2048xf32, #tpu.memory_space<vmem>>, vector<8x128xf32>,
    %c0_15 = arith.constant 0 : index
    %c0_16 = arith.constant 0 : index
    %c0_17 = arith.constant 0 : index
    %16 = vector.load %arg1[%c0_15, %c0_16, %c0_17] : memref<4x8x256xf32, #tpu.memory_space<vmem>>, vector<4x8x256xf32>
    %c0_18 = arith.constant 0 : index
    %c0_19 = arith.constant 0 : index
    %c0_20 = arith.constant 0 : index
    %17 = vector.load %arg4[%c0_18, %c0_19, %c0_20] : memref<4x8x256xf32, #tpu.memory_space<vmem>>, vector<4x8x256xf32>
    tpu.vector_store %arg4[%c0_18, %c0_19, %c0_20], %16 {strides = array<i32>} : memref<4x8x256xf32, #tpu.memory_space<vmem>>, vector<4x8x256xf32>,
    %c0_21 = arith.constant 0 : index
    %c0_22 = arith.constant 0 : index
    %c0_23 = arith.constant 0 : index
    %18 = vector.load %arg4[%c0_21, %c0_22, %c0_23] : memref<4x8x256xf32, #tpu.memory_space<vmem>>, vector<1x8x256xf32>
    %19 = vector.shape_cast %18 : vector<1x8x256xf32> to vector<8x256xf32>
    %cst_24 = arith.constant 0.000000e+00 : f32
    %20 = vector.broadcast %cst_24 : f32 to vector<8x256xf32>
    %21 = arith.cmpf ogt, %19, %20 : vector<8x256xf32>
    %cst_25 = arith.constant 0.00999999977 : f32
    %22 = vector.broadcast %cst_25 : f32 to vector<8x256xf32>
    %23 = arith.mulf %22, %19 : vector<8x256xf32>
    %24 = arith.select %21, %19, %23 : vector<8x256xi1>, vector<8x256xf32>
    %c0_26 = arith.constant 0 : index
    %c128 = arith.constant 128 : index
    %25 = vector.load %arg5[%c0_26, %c128] : memref<8x2048xf32, #tpu.memory_space<vmem>>, vector<8x256xf32>
    tpu.vector_store %arg5[%c0_26, %c128], %24 {strides = array<i32>} : memref<8x2048xf32, #tpu.memory_space<vmem>>, vector<8x256xf32>,
    %c1 = arith.constant 1 : index
    %c0_27 = arith.constant 0 : index
    %c0_28 = arith.constant 0 : index
    %26 = vector.load %arg4[%c1, %c0_27, %c0_28] : memref<4x8x256xf32, #tpu.memory_space<vmem>>, vector<1x8x256xf32>
    %27 = vector.shape_cast %26 : vector<1x8x256xf32> to vector<8x256xf32>
    %cst_29 = arith.constant 0.000000e+00 : f32
    %28 = vector.broadcast %cst_29 : f32 to vector<8x256xf32>
    %29 = arith.cmpf ogt, %27, %28 : vector<8x256xf32>
    %cst_30 = arith.constant 0.00999999977 : f32
    %30 = vector.broadcast %cst_30 : f32 to vector<8x256xf32>
    %31 = arith.mulf %30, %27 : vector<8x256xf32>
    %32 = arith.select %29, %27, %31 : vector<8x256xi1>, vector<8x256xf32>
    %c0_31 = arith.constant 0 : index
    %c640 = arith.constant 640 : index
    %33 = vector.load %arg5[%c0_31, %c640] : memref<8x2048xf32, #tpu.memory_space<vmem>>, vector<8x256xf32>
    tpu.vector_store %arg5[%c0_31, %c640], %32 {strides = array<i32>} : memref<8x2048xf32, #tpu.memory_space<vmem>>, vector<8x256xf32>,
    %c2 = arith.constant 2 : index
    %c0_32 = arith.constant 0 : index
    %c0_33 = arith.constant 0 : index
    %34 = vector.load %arg4[%c2, %c0_32, %c0_33] : memref<4x8x256xf32, #tpu.memory_space<vmem>>, vector<1x8x256xf32>
    %35 = vector.shape_cast %34 : vector<1x8x256xf32> to vector<8x256xf32>
    %cst_34 = arith.constant 0.000000e+00 : f32
    %36 = vector.broadcast %cst_34 : f32 to vector<8x256xf32>
    %37 = arith.cmpf ogt, %35, %36 : vector<8x256xf32>
    %cst_35 = arith.constant 0.00999999977 : f32
    %38 = vector.broadcast %cst_35 : f32 to vector<8x256xf32>
    %39 = arith.mulf %38, %35 : vector<8x256xf32>
    %40 = arith.select %37, %35, %39 : vector<8x256xi1>, vector<8x256xf32>
    %c0_36 = arith.constant 0 : index
    %c1152 = arith.constant 1152 : index
    %41 = vector.load %arg5[%c0_36, %c1152] : memref<8x2048xf32, #tpu.memory_space<vmem>>, vector<8x256xf32>
    tpu.vector_store %arg5[%c0_36, %c1152], %40 {strides = array<i32>} : memref<8x2048xf32, #tpu.memory_space<vmem>>, vector<8x256xf32>,
    %c3 = arith.constant 3 : index
    %c0_37 = arith.constant 0 : index
    %c0_38 = arith.constant 0 : index
    %42 = vector.load %arg4[%c3, %c0_37, %c0_38] : memref<4x8x256xf32, #tpu.memory_space<vmem>>, vector<1x8x256xf32>
    %43 = vector.shape_cast %42 : vector<1x8x256xf32> to vector<8x256xf32>
    %cst_39 = arith.constant 0.000000e+00 : f32
    %44 = vector.broadcast %cst_39 : f32 to vector<8x256xf32>
    %45 = arith.cmpf ogt, %43, %44 : vector<8x256xf32>
    %cst_40 = arith.constant 0.00999999977 : f32
    %46 = vector.broadcast %cst_40 : f32 to vector<8x256xf32>
    %47 = arith.mulf %46, %43 : vector<8x256xf32>
    %48 = arith.select %45, %43, %47 : vector<8x256xi1>, vector<8x256xf32>
    %c0_41 = arith.constant 0 : index
    %c1664 = arith.constant 1664 : index
    %49 = vector.load %arg5[%c0_41, %c1664] : memref<8x2048xf32, #tpu.memory_space<vmem>>, vector<8x256xf32>
    tpu.vector_store %arg5[%c0_41, %c1664], %48 {strides = array<i32>} : memref<8x2048xf32, #tpu.memory_space<vmem>>, vector<8x256xf32>,
    %c0_42 = arith.constant 0 : index
    %c0_43 = arith.constant 0 : index
    %c0_44 = arith.constant 0 : index
    %50 = vector.load %arg2[%c0_42, %c0_43, %c0_44] : memref<6x8x24xf32, #tpu.memory_space<vmem>>, vector<1x8x24xf32>
    %51 = vector.shape_cast %50 : vector<1x8x24xf32> to vector<8x24xf32>
    %c0_45 = arith.constant 0 : index
    %c0_46 = arith.constant 0 : index
    %c0_47 = arith.constant 0 : index
    %52 = vector.load %arg3[%c0_45, %c0_46, %c0_47] : memref<6x8x1xf32, #tpu.memory_space<vmem>>, vector<1x8x1xf32>
    %53 = vector.shape_cast %52 : vector<1x8x1xf32> to vector<8x1xf32>
    %c0_48 = arith.constant 0 : index
    %c127 = arith.constant 127 : index
    %54 = vector.load %arg5[%c0_48, %c127] : memref<8x2048xf32, #tpu.memory_space<vmem>>, vector<8x1792xf32>
    %c0_49 = arith.constant 0 : index
    %c128_50 = arith.constant 128 : index
    %55 = vector.load %arg5[%c0_49, %c128_50] : memref<8x2048xf32, #tpu.memory_space<vmem>>, vector<8x1792xf32>
    %c0_51 = arith.constant 0 : index
    %c129 = arith.constant 129 : index
    %56 = vector.load %arg5[%c0_51, %c129] : memref<8x2048xf32, #tpu.memory_space<vmem>>, vector<8x1792xf32>
    %57 = tpu.concatenate %54, %55, %56 in 0 : vector<8x1792xf32>, vector<8x1792xf32>, vector<8x1792xf32> -> vector<24x1792xf32>
    %cst_52 = arith.constant dense<0.000000e+00> : vector<8x1792xf32>
    %58 = tpu.matmul %51, %57, %cst_52 {dimension_numbers = #tpu.dot_dimension_numbers<[1], [0], [0], [1], [0, 0, 1, 1], [], []>} : vector<8x24xf32>, vector<24x1792xf32>, vector<8x1792xf32> -> vector<8x1792xf32>
    %59 = vector.broadcast %53 : vector<8x1xf32> to vector<8x1792xf32>
    %60 = arith.addf %58, %59 : vector<8x1792xf32>
    %61 = vector.extract_strided_slice %60 {offsets = [0, 0], sizes = [8, 256], strides = [1, 1]} : vector<8x1792xf32> to vector<8x256xf32>
    %cst_53 = arith.constant 0.000000e+00 : f32
    %62 = vector.broadcast %cst_53 : f32 to vector<8x256xf32>
    %63 = arith.cmpf ogt, %61, %62 : vector<8x256xf32>
    %cst_54 = arith.constant 0.00999999977 : f32
    %64 = vector.broadcast %cst_54 : f32 to vector<8x256xf32>
    %65 = arith.mulf %64, %61 : vector<8x256xf32>
    %66 = arith.select %63, %61, %65 : vector<8x256xi1>, vector<8x256xf32>
    %c0_55 = arith.constant 0 : index
    %c128_56 = arith.constant 128 : index
    %67 = vector.load %arg5[%c0_55, %c128_56] : memref<8x2048xf32, #tpu.memory_space<vmem>>, vector<8x256xf32>
    tpu.vector_store %arg5[%c0_55, %c128_56], %66 {strides = array<i32>} : memref<8x2048xf32, #tpu.memory_space<vmem>>, vector<8x256xf32>,
    %68 = vector.extract_strided_slice %60 {offsets = [0, 512], sizes = [8, 256], strides = [1, 1]} : vector<8x1792xf32> to vector<8x256xf32>
    %cst_57 = arith.constant 0.000000e+00 : f32
    %69 = vector.broadcast %cst_57 : f32 to vector<8x256xf32>
    %70 = arith.cmpf ogt, %68, %69 : vector<8x256xf32>
    %cst_58 = arith.constant 0.00999999977 : f32
    %71 = vector.broadcast %cst_58 : f32 to vector<8x256xf32>
    %72 = arith.mulf %71, %68 : vector<8x256xf32>
    %73 = arith.select %70, %68, %72 : vector<8x256xi1>, vector<8x256xf32>
    %c0_59 = arith.constant 0 : index
    %c640_60 = arith.constant 640 : index
    %74 = vector.load %arg5[%c0_59, %c640_60] : memref<8x2048xf32, #tpu.memory_space<vmem>>, vector<8x256xf32>
    tpu.vector_store %arg5[%c0_59, %c640_60], %73 {strides = array<i32>} : memref<8x2048xf32, #tpu.memory_space<vmem>>, vector<8x256xf32>,
    %75 = vector.extract_strided_slice %60 {offsets = [0, 1024], sizes = [8, 256], strides = [1, 1]} : vector<8x1792xf32> to vector<8x256xf32>
    %cst_61 = arith.constant 0.000000e+00 : f32
    %76 = vector.broadcast %cst_61 : f32 to vector<8x256xf32>
    %77 = arith.cmpf ogt, %75, %76 : vector<8x256xf32>
    %cst_62 = arith.constant 0.00999999977 : f32
    %78 = vector.broadcast %cst_62 : f32 to vector<8x256xf32>
    %79 = arith.mulf %78, %75 : vector<8x256xf32>
    %80 = arith.select %77, %75, %79 : vector<8x256xi1>, vector<8x256xf32>
    %c0_63 = arith.constant 0 : index
    %c1152_64 = arith.constant 1152 : index
    %81 = vector.load %arg5[%c0_63, %c1152_64] : memref<8x2048xf32, #tpu.memory_space<vmem>>, vector<8x256xf32>
    tpu.vector_store %arg5[%c0_63, %c1152_64], %80 {strides = array<i32>} : memref<8x2048xf32, #tpu.memory_space<vmem>>, vector<8x256xf32>,
    %82 = vector.extract_strided_slice %60 {offsets = [0, 1536], sizes = [8, 256], strides = [1, 1]} : vector<8x1792xf32> to vector<8x256xf32>
    %cst_65 = arith.constant 0.000000e+00 : f32
    %83 = vector.broadcast %cst_65 : f32 to vector<8x256xf32>
    %84 = arith.cmpf ogt, %82, %83 : vector<8x256xf32>
    %cst_66 = arith.constant 0.00999999977 : f32
    %85 = vector.broadcast %cst_66 : f32 to vector<8x256xf32>
    %86 = arith.mulf %85, %82 : vector<8x256xf32>
    %87 = arith.select %84, %82, %86 : vector<8x256xi1>, vector<8x256xf32>
    %c0_67 = arith.constant 0 : index
    %c1664_68 = arith.constant 1664 : index
    %88 = vector.load %arg5[%c0_67, %c1664_68] : memref<8x2048xf32, #tpu.memory_space<vmem>>, vector<8x256xf32>
    tpu.vector_store %arg5[%c0_67, %c1664_68], %87 {strides = array<i32>} : memref<8x2048xf32, #tpu.memory_space<vmem>>, vector<8x256xf32>,
    %c1_69 = arith.constant 1 : index
    %c0_70 = arith.constant 0 : index
    %c0_71 = arith.constant 0 : index
    %89 = vector.load %arg2[%c1_69, %c0_70, %c0_71] : memref<6x8x24xf32, #tpu.memory_space<vmem>>, vector<1x8x24xf32>
    %90 = vector.shape_cast %89 : vector<1x8x24xf32> to vector<8x24xf32>
    %c1_72 = arith.constant 1 : index
    %c0_73 = arith.constant 0 : index
    %c0_74 = arith.constant 0 : index
    %91 = vector.load %arg3[%c1_72, %c0_73, %c0_74] : memref<6x8x1xf32, #tpu.memory_space<vmem>>, vector<1x8x1xf32>
    %92 = vector.shape_cast %91 : vector<1x8x1xf32> to vector<8x1xf32>
    %c0_75 = arith.constant 0 : index
    %c125 = arith.constant 125 : index
    %93 = vector.load %arg5[%c0_75, %c125] : memref<8x2048xf32, #tpu.memory_space<vmem>>, vector<8x1792xf32>
    %c0_76 = arith.constant 0 : index
    %c128_77 = arith.constant 128 : index
    %94 = vector.load %arg5[%c0_76, %c128_77] : memref<8x2048xf32, #tpu.memory_space<vmem>>, vector<8x1792xf32>
    %c0_78 = arith.constant 0 : index
    %c131 = arith.constant 131 : index
    %95 = vector.load %arg5[%c0_78, %c131] : memref<8x2048xf32, #tpu.memory_space<vmem>>, vector<8x1792xf32>
    %96 = tpu.concatenate %93, %94, %95 in 0 : vector<8x1792xf32>, vector<8x1792xf32>, vector<8x1792xf32> -> vector<24x1792xf32>
    %cst_79 = arith.constant dense<0.000000e+00> : vector<8x1792xf32>
    %97 = tpu.matmul %90, %96, %cst_79 {dimension_numbers = #tpu.dot_dimension_numbers<[1], [0], [0], [1], [0, 0, 1, 1], [], []>} : vector<8x24xf32>, vector<24x1792xf32>, vector<8x1792xf32> -> vector<8x1792xf32>
    %98 = vector.broadcast %92 : vector<8x1xf32> to vector<8x1792xf32>
    %99 = arith.addf %97, %98 : vector<8x1792xf32>
    %c0_80 = arith.constant 0 : index
    %c0_81 = arith.constant 0 : index
    %c0_82 = arith.constant 0 : index
    %100 = vector.load %arg4[%c0_80, %c0_81, %c0_82] : memref<4x8x256xf32, #tpu.memory_space<vmem>>, vector<1x8x256xf32>
    %101 = vector.shape_cast %100 : vector<1x8x256xf32> to vector<8x256xf32>
    %102 = vector.extract_strided_slice %99 {offsets = [0, 0], sizes = [8, 256], strides = [1, 1]} : vector<8x1792xf32> to vector<8x256xf32>
    %103 = arith.addf %101, %102 : vector<8x256xf32>
    %c0_83 = arith.constant 0 : index
    %c0_84 = arith.constant 0 : index
    %c0_85 = arith.constant 0 : index
    %104 = vector.load %arg4[%c0_83, %c0_84, %c0_85] : memref<4x8x256xf32, #tpu.memory_space<vmem>>, vector<1x8x256xf32>
    %105 = vector.shape_cast %104 : vector<1x8x256xf32> to vector<8x256xf32>
    %106 = vector.shape_cast %103 : vector<8x256xf32> to vector<1x8x256xf32>
    tpu.vector_store %arg4[%c0_83, %c0_84, %c0_85], %106 {strides = array<i32>} : memref<4x8x256xf32, #tpu.memory_space<vmem>>, vector<1x8x256xf32>,
    %c1_86 = arith.constant 1 : index
    %c0_87 = arith.constant 0 : index
    %c0_88 = arith.constant 0 : index
    %107 = vector.load %arg4[%c1_86, %c0_87, %c0_88] : memref<4x8x256xf32, #tpu.memory_space<vmem>>, vector<1x8x256xf32>
    %108 = vector.shape_cast %107 : vector<1x8x256xf32> to vector<8x256xf32>
    %109 = vector.extract_strided_slice %99 {offsets = [0, 512], sizes = [8, 256], strides = [1, 1]} : vector<8x1792xf32> to vector<8x256xf32>
    %110 = arith.addf %108, %109 : vector<8x256xf32>
    %c1_89 = arith.constant 1 : index
    %c0_90 = arith.constant 0 : index
    %c0_91 = arith.constant 0 : index
    %111 = vector.load %arg4[%c1_89, %c0_90, %c0_91] : memref<4x8x256xf32, #tpu.memory_space<vmem>>, vector<1x8x256xf32>
    %112 = vector.shape_cast %111 : vector<1x8x256xf32> to vector<8x256xf32>
    %113 = vector.shape_cast %110 : vector<8x256xf32> to vector<1x8x256xf32>
    tpu.vector_store %arg4[%c1_89, %c0_90, %c0_91], %113 {strides = array<i32>} : memref<4x8x256xf32, #tpu.memory_space<vmem>>, vector<1x8x256xf32>,
    %c2_92 = arith.constant 2 : index
    %c0_93 = arith.constant 0 : index
    %c0_94 = arith.constant 0 : index
    %114 = vector.load %arg4[%c2_92, %c0_93, %c0_94] : memref<4x8x256xf32, #tpu.memory_space<vmem>>, vector<1x8x256xf32>
    %115 = vector.shape_cast %114 : vector<1x8x256xf32> to vector<8x256xf32>
    %116 = vector.extract_strided_slice %99 {offsets = [0, 1024], sizes = [8, 256], strides = [1, 1]} : vector<8x1792xf32> to vector<8x256xf32>
    %117 = arith.addf %115, %116 : vector<8x256xf32>
    %c2_95 = arith.constant 2 : index
    %c0_96 = arith.constant 0 : index
    %c0_97 = arith.constant 0 : index
    %118 = vector.load %arg4[%c2_95, %c0_96, %c0_97] : memref<4x8x256xf32, #tpu.memory_space<vmem>>, vector<1x8x256xf32>
    %119 = vector.shape_cast %118 : vector<1x8x256xf32> to vector<8x256xf32>
    %120 = vector.shape_cast %117 : vector<8x256xf32> to vector<1x8x256xf32>
    tpu.vector_store %arg4[%c2_95, %c0_96, %c0_97], %120 {strides = array<i32>} : memref<4x8x256xf32, #tpu.memory_space<vmem>>, vector<1x8x256xf32>,
    %c3_98 = arith.constant 3 : index
    %c0_99 = arith.constant 0 : index
    %c0_100 = arith.constant 0 : index
    %121 = vector.load %arg4[%c3_98, %c0_99, %c0_100] : memref<4x8x256xf32, #tpu.memory_space<vmem>>, vector<1x8x256xf32>
    %122 = vector.shape_cast %121 : vector<1x8x256xf32> to vector<8x256xf32>
    %123 = vector.extract_strided_slice %99 {offsets = [0, 1536], sizes = [8, 256], strides = [1, 1]} : vector<8x1792xf32> to vector<8x256xf32>
    %124 = arith.addf %122, %123 : vector<8x256xf32>
    %c3_101 = arith.constant 3 : index
    %c0_102 = arith.constant 0 : index
    %c0_103 = arith.constant 0 : index
    %125 = vector.load %arg4[%c3_101, %c0_102, %c0_103] : memref<4x8x256xf32, #tpu.memory_space<vmem>>, vector<1x8x256xf32>
    %126 = vector.shape_cast %125 : vector<1x8x256xf32> to vector<8x256xf32>
    %127 = vector.shape_cast %124 : vector<8x256xf32> to vector<1x8x256xf32>
    tpu.vector_store %arg4[%c3_101, %c0_102, %c0_103], %127 {strides = array<i32>} : memref<4x8x256xf32, #tpu.memory_space<vmem>>, vector<1x8x256xf32>,
    %c0_104 = arith.constant 0 : index
    %c0_105 = arith.constant 0 : index
    %c0_106 = arith.constant 0 : index
    %128 = vector.load %arg4[%c0_104, %c0_105, %c0_106] : memref<4x8x256xf32, #tpu.memory_space<vmem>>, vector<1x8x256xf32>
    %129 = vector.shape_cast %128 : vector<1x8x256xf32> to vector<8x256xf32>
    %cst_107 = arith.constant 0.000000e+00 : f32
    %130 = vector.broadcast %cst_107 : f32 to vector<8x256xf32>
    %131 = arith.cmpf ogt, %129, %130 : vector<8x256xf32>
    %cst_108 = arith.constant 0.00999999977 : f32
    %132 = vector.broadcast %cst_108 : f32 to vector<8x256xf32>
    %133 = arith.mulf %132, %129 : vector<8x256xf32>
    %134 = arith.select %131, %129, %133 : vector<8x256xi1>, vector<8x256xf32>
    %c0_109 = arith.constant 0 : index
    %c128_110 = arith.constant 128 : index
    %135 = vector.load %arg5[%c0_109, %c128_110] : memref<8x2048xf32, #tpu.memory_space<vmem>>, vector<8x256xf32>
    tpu.vector_store %arg5[%c0_109, %c128_110], %134 {strides = array<i32>} : memref<8x2048xf32, #tpu.memory_space<vmem>>, vector<8x256xf32>,
    %c1_111 = arith.constant 1 : index
    %c0_112 = arith.constant 0 : index
    %c0_113 = arith.constant 0 : index
    %136 = vector.load %arg4[%c1_111, %c0_112, %c0_113] : memref<4x8x256xf32, #tpu.memory_space<vmem>>, vector<1x8x256xf32>
    %137 = vector.shape_cast %136 : vector<1x8x256xf32> to vector<8x256xf32>
    %cst_114 = arith.constant 0.000000e+00 : f32
    %138 = vector.broadcast %cst_114 : f32 to vector<8x256xf32>
    %139 = arith.cmpf ogt, %137, %138 : vector<8x256xf32>
    %cst_115 = arith.constant 0.00999999977 : f32
    %140 = vector.broadcast %cst_115 : f32 to vector<8x256xf32>
    %141 = arith.mulf %140, %137 : vector<8x256xf32>
    %142 = arith.select %139, %137, %141 : vector<8x256xi1>, vector<8x256xf32>
    %c0_116 = arith.constant 0 : index
    %c640_117 = arith.constant 640 : index
    %143 = vector.load %arg5[%c0_116, %c640_117] : memref<8x2048xf32, #tpu.memory_space<vmem>>, vector<8x256xf32>
    tpu.vector_store %arg5[%c0_116, %c640_117], %142 {strides = array<i32>} : memref<8x2048xf32, #tpu.memory_space<vmem>>, vector<8x256xf32>,
    %c2_118 = arith.constant 2 : index
    %c0_119 = arith.constant 0 : index
    %c0_120 = arith.constant 0 : index
    %144 = vector.load %arg4[%c2_118, %c0_119, %c0_120] : memref<4x8x256xf32, #tpu.memory_space<vmem>>, vector<1x8x256xf32>
    %145 = vector.shape_cast %144 : vector<1x8x256xf32> to vector<8x256xf32>
    %cst_121 = arith.constant 0.000000e+00 : f32
    %146 = vector.broadcast %cst_121 : f32 to vector<8x256xf32>
    %147 = arith.cmpf ogt, %145, %146 : vector<8x256xf32>
    %cst_122 = arith.constant 0.00999999977 : f32
    %148 = vector.broadcast %cst_122 : f32 to vector<8x256xf32>
    %149 = arith.mulf %148, %145 : vector<8x256xf32>
    %150 = arith.select %147, %145, %149 : vector<8x256xi1>, vector<8x256xf32>
    %c0_123 = arith.constant 0 : index
    %c1152_124 = arith.constant 1152 : index
    %151 = vector.load %arg5[%c0_123, %c1152_124] : memref<8x2048xf32, #tpu.memory_space<vmem>>, vector<8x256xf32>
    tpu.vector_store %arg5[%c0_123, %c1152_124], %150 {strides = array<i32>} : memref<8x2048xf32, #tpu.memory_space<vmem>>, vector<8x256xf32>,
    %c3_125 = arith.constant 3 : index
    %c0_126 = arith.constant 0 : index
    %c0_127 = arith.constant 0 : index
    %152 = vector.load %arg4[%c3_125, %c0_126, %c0_127] : memref<4x8x256xf32, #tpu.memory_space<vmem>>, vector<1x8x256xf32>
    %153 = vector.shape_cast %152 : vector<1x8x256xf32> to vector<8x256xf32>
    %cst_128 = arith.constant 0.000000e+00 : f32
    %154 = vector.broadcast %cst_128 : f32 to vector<8x256xf32>
    %155 = arith.cmpf ogt, %153, %154 : vector<8x256xf32>
    %cst_129 = arith.constant 0.00999999977 : f32
    %156 = vector.broadcast %cst_129 : f32 to vector<8x256xf32>
    %157 = arith.mulf %156, %153 : vector<8x256xf32>
    %158 = arith.select %155, %153, %157 : vector<8x256xi1>, vector<8x256xf32>
    %c0_130 = arith.constant 0 : index
    %c1664_131 = arith.constant 1664 : index
    %159 = vector.load %arg5[%c0_130, %c1664_131] : memref<8x2048xf32, #tpu.memory_space<vmem>>, vector<8x256xf32>
    tpu.vector_store %arg5[%c0_130, %c1664_131], %158 {strides = array<i32>} : memref<8x2048xf32, #tpu.memory_space<vmem>>, vector<8x256xf32>,
    %c2_132 = arith.constant 2 : index
    %c0_133 = arith.constant 0 : index
    %c0_134 = arith.constant 0 : index
    %160 = vector.load %arg2[%c2_132, %c0_133, %c0_134] : memref<6x8x24xf32, #tpu.memory_space<vmem>>, vector<1x8x24xf32>
    %161 = vector.shape_cast %160 : vector<1x8x24xf32> to vector<8x24xf32>
    %c2_135 = arith.constant 2 : index
    %c0_136 = arith.constant 0 : index
    %c0_137 = arith.constant 0 : index
    %162 = vector.load %arg3[%c2_135, %c0_136, %c0_137] : memref<6x8x1xf32, #tpu.memory_space<vmem>>, vector<1x8x1xf32>
    %163 = vector.shape_cast %162 : vector<1x8x1xf32> to vector<8x1xf32>
    %c0_138 = arith.constant 0 : index
    %c126 = arith.constant 126 : index
    %164 = vector.load %arg5[%c0_138, %c126] : memref<8x2048xf32, #tpu.memory_space<vmem>>, vector<8x1792xf32>
    %c0_139 = arith.constant 0 : index
    %c128_140 = arith.constant 128 : index
    %165 = vector.load %arg5[%c0_139, %c128_140] : memref<8x2048xf32, #tpu.memory_space<vmem>>, vector<8x1792xf32>
    %c0_141 = arith.constant 0 : index
    %c130 = arith.constant 130 : index
    %166 = vector.load %arg5[%c0_141, %c130] : memref<8x2048xf32, #tpu.memory_space<vmem>>, vector<8x1792xf32>
    %167 = tpu.concatenate %164, %165, %166 in 0 : vector<8x1792xf32>, vector<8x1792xf32>, vector<8x1792xf32> -> vector<24x1792xf32>
    %cst_142 = arith.constant dense<0.000000e+00> : vector<8x1792xf32>
    %168 = tpu.matmul %161, %167, %cst_142 {dimension_numbers = #tpu.dot_dimension_numbers<[1], [0], [0], [1], [0, 0, 1, 1], [], []>} : vector<8x24xf32>, vector<24x1792xf32>, vector<8x1792xf32> -> vector<8x1792xf32>
    %169 = vector.broadcast %163 : vector<8x1xf32> to vector<8x1792xf32>
    %170 = arith.addf %168, %169 : vector<8x1792xf32>
    %171 = vector.extract_strided_slice %170 {offsets = [0, 0], sizes = [8, 256], strides = [1, 1]} : vector<8x1792xf32> to vector<8x256xf32>
    %cst_143 = arith.constant 0.000000e+00 : f32
    %172 = vector.broadcast %cst_143 : f32 to vector<8x256xf32>
    %173 = arith.cmpf ogt, %171, %172 : vector<8x256xf32>
    %cst_144 = arith.constant 0.00999999977 : f32
    %174 = vector.broadcast %cst_144 : f32 to vector<8x256xf32>
    %175 = arith.mulf %174, %171 : vector<8x256xf32>
    %176 = arith.select %173, %171, %175 : vector<8x256xi1>, vector<8x256xf32>
    %c0_145 = arith.constant 0 : index
    %c128_146 = arith.constant 128 : index
    %177 = vector.load %arg5[%c0_145, %c128_146] : memref<8x2048xf32, #tpu.memory_space<vmem>>, vector<8x256xf32>
    tpu.vector_store %arg5[%c0_145, %c128_146], %176 {strides = array<i32>} : memref<8x2048xf32, #tpu.memory_space<vmem>>, vector<8x256xf32>,
    %178 = vector.extract_strided_slice %170 {offsets = [0, 512], sizes = [8, 256], strides = [1, 1]} : vector<8x1792xf32> to vector<8x256xf32>
    %cst_147 = arith.constant 0.000000e+00 : f32
    %179 = vector.broadcast %cst_147 : f32 to vector<8x256xf32>
    %180 = arith.cmpf ogt, %178, %179 : vector<8x256xf32>
    %cst_148 = arith.constant 0.00999999977 : f32
    %181 = vector.broadcast %cst_148 : f32 to vector<8x256xf32>
    %182 = arith.mulf %181, %178 : vector<8x256xf32>
    %183 = arith.select %180, %178, %182 : vector<8x256xi1>, vector<8x256xf32>
    %c0_149 = arith.constant 0 : index
    %c640_150 = arith.constant 640 : index
    %184 = vector.load %arg5[%c0_149, %c640_150] : memref<8x2048xf32, #tpu.memory_space<vmem>>, vector<8x256xf32>
    tpu.vector_store %arg5[%c0_149, %c640_150], %183 {strides = array<i32>} : memref<8x2048xf32, #tpu.memory_space<vmem>>, vector<8x256xf32>,
    %185 = vector.extract_strided_slice %170 {offsets = [0, 1024], sizes = [8, 256], strides = [1, 1]} : vector<8x1792xf32> to vector<8x256xf32>
    %cst_151 = arith.constant 0.000000e+00 : f32
    %186 = vector.broadcast %cst_151 : f32 to vector<8x256xf32>
    %187 = arith.cmpf ogt, %185, %186 : vector<8x256xf32>
    %cst_152 = arith.constant 0.00999999977 : f32
    %188 = vector.broadcast %cst_152 : f32 to vector<8x256xf32>
    %189 = arith.mulf %188, %185 : vector<8x256xf32>
    %190 = arith.select %187, %185, %189 : vector<8x256xi1>, vector<8x256xf32>
    %c0_153 = arith.constant 0 : index
    %c1152_154 = arith.constant 1152 : index
    %191 = vector.load %arg5[%c0_153, %c1152_154] : memref<8x2048xf32, #tpu.memory_space<vmem>>, vector<8x256xf32>
    tpu.vector_store %arg5[%c0_153, %c1152_154], %190 {strides = array<i32>} : memref<8x2048xf32, #tpu.memory_space<vmem>>, vector<8x256xf32>,
    %192 = vector.extract_strided_slice %170 {offsets = [0, 1536], sizes = [8, 256], strides = [1, 1]} : vector<8x1792xf32> to vector<8x256xf32>
    %cst_155 = arith.constant 0.000000e+00 : f32
    %193 = vector.broadcast %cst_155 : f32 to vector<8x256xf32>
    %194 = arith.cmpf ogt, %192, %193 : vector<8x256xf32>
    %cst_156 = arith.constant 0.00999999977 : f32
    %195 = vector.broadcast %cst_156 : f32 to vector<8x256xf32>
    %196 = arith.mulf %195, %192 : vector<8x256xf32>
    %197 = arith.select %194, %192, %196 : vector<8x256xi1>, vector<8x256xf32>
    %c0_157 = arith.constant 0 : index
    %c1664_158 = arith.constant 1664 : index
    %198 = vector.load %arg5[%c0_157, %c1664_158] : memref<8x2048xf32, #tpu.memory_space<vmem>>, vector<8x256xf32>
    tpu.vector_store %arg5[%c0_157, %c1664_158], %197 {strides = array<i32>} : memref<8x2048xf32, #tpu.memory_space<vmem>>, vector<8x256xf32>,
    %c3_159 = arith.constant 3 : index
    %c0_160 = arith.constant 0 : index
    %c0_161 = arith.constant 0 : index
    %199 = vector.load %arg2[%c3_159, %c0_160, %c0_161] : memref<6x8x24xf32, #tpu.memory_space<vmem>>, vector<1x8x24xf32>
    %200 = vector.shape_cast %199 : vector<1x8x24xf32> to vector<8x24xf32>
    %c3_162 = arith.constant 3 : index
    %c0_163 = arith.constant 0 : index
    %c0_164 = arith.constant 0 : index
    %201 = vector.load %arg3[%c3_162, %c0_163, %c0_164] : memref<6x8x1xf32, #tpu.memory_space<vmem>>, vector<1x8x1xf32>
    %202 = vector.shape_cast %201 : vector<1x8x1xf32> to vector<8x1xf32>
    %c0_165 = arith.constant 0 : index
    %c122 = arith.constant 122 : index
    %203 = vector.load %arg5[%c0_165, %c122] : memref<8x2048xf32, #tpu.memory_space<vmem>>, vector<8x1792xf32>
    %c0_166 = arith.constant 0 : index
    %c128_167 = arith.constant 128 : index
    %204 = vector.load %arg5[%c0_166, %c128_167] : memref<8x2048xf32, #tpu.memory_space<vmem>>, vector<8x1792xf32>
    %c0_168 = arith.constant 0 : index
    %c134 = arith.constant 134 : index
    %205 = vector.load %arg5[%c0_168, %c134] : memref<8x2048xf32, #tpu.memory_space<vmem>>, vector<8x1792xf32>
    %206 = tpu.concatenate %203, %204, %205 in 0 : vector<8x1792xf32>, vector<8x1792xf32>, vector<8x1792xf32> -> vector<24x1792xf32>
    %cst_169 = arith.constant dense<0.000000e+00> : vector<8x1792xf32>
    %207 = tpu.matmul %200, %206, %cst_169 {dimension_numbers = #tpu.dot_dimension_numbers<[1], [0], [0], [1], [0, 0, 1, 1], [], []>} : vector<8x24xf32>, vector<24x1792xf32>, vector<8x1792xf32> -> vector<8x1792xf32>
    %208 = vector.broadcast %202 : vector<8x1xf32> to vector<8x1792xf32>
    %209 = arith.addf %207, %208 : vector<8x1792xf32>
    %c0_170 = arith.constant 0 : index
    %c0_171 = arith.constant 0 : index
    %c0_172 = arith.constant 0 : index
    %210 = vector.load %arg4[%c0_170, %c0_171, %c0_172] : memref<4x8x256xf32, #tpu.memory_space<vmem>>, vector<1x8x256xf32>
    %211 = vector.shape_cast %210 : vector<1x8x256xf32> to vector<8x256xf32>
    %212 = vector.extract_strided_slice %209 {offsets = [0, 0], sizes = [8, 256], strides = [1, 1]} : vector<8x1792xf32> to vector<8x256xf32>
    %213 = arith.addf %211, %212 : vector<8x256xf32>
    %c0_173 = arith.constant 0 : index
    %c0_174 = arith.constant 0 : index
    %c0_175 = arith.constant 0 : index
    %214 = vector.load %arg4[%c0_173, %c0_174, %c0_175] : memref<4x8x256xf32, #tpu.memory_space<vmem>>, vector<1x8x256xf32>
    %215 = vector.shape_cast %214 : vector<1x8x256xf32> to vector<8x256xf32>
    %216 = vector.shape_cast %213 : vector<8x256xf32> to vector<1x8x256xf32>
    tpu.vector_store %arg4[%c0_173, %c0_174, %c0_175], %216 {strides = array<i32>} : memref<4x8x256xf32, #tpu.memory_space<vmem>>, vector<1x8x256xf32>,
    %c1_176 = arith.constant 1 : index
    %c0_177 = arith.constant 0 : index
    %c0_178 = arith.constant 0 : index
    %217 = vector.load %arg4[%c1_176, %c0_177, %c0_178] : memref<4x8x256xf32, #tpu.memory_space<vmem>>, vector<1x8x256xf32>
    %218 = vector.shape_cast %217 : vector<1x8x256xf32> to vector<8x256xf32>
    %219 = vector.extract_strided_slice %209 {offsets = [0, 512], sizes = [8, 256], strides = [1, 1]} : vector<8x1792xf32> to vector<8x256xf32>
    %220 = arith.addf %218, %219 : vector<8x256xf32>
    %c1_179 = arith.constant 1 : index
    %c0_180 = arith.constant 0 : index
    %c0_181 = arith.constant 0 : index
    %221 = vector.load %arg4[%c1_179, %c0_180, %c0_181] : memref<4x8x256xf32, #tpu.memory_space<vmem>>, vector<1x8x256xf32>
    %222 = vector.shape_cast %221 : vector<1x8x256xf32> to vector<8x256xf32>
    %223 = vector.shape_cast %220 : vector<8x256xf32> to vector<1x8x256xf32>
    tpu.vector_store %arg4[%c1_179, %c0_180, %c0_181], %223 {strides = array<i32>} : memref<4x8x256xf32, #tpu.memory_space<vmem>>, vector<1x8x256xf32>,
    %c2_182 = arith.constant 2 : index
    %c0_183 = arith.constant 0 : index
    %c0_184 = arith.constant 0 : index
    %224 = vector.load %arg4[%c2_182, %c0_183, %c0_184] : memref<4x8x256xf32, #tpu.memory_space<vmem>>, vector<1x8x256xf32>
    %225 = vector.shape_cast %224 : vector<1x8x256xf32> to vector<8x256xf32>
    %226 = vector.extract_strided_slice %209 {offsets = [0, 1024], sizes = [8, 256], strides = [1, 1]} : vector<8x1792xf32> to vector<8x256xf32>
    %227 = arith.addf %225, %226 : vector<8x256xf32>
    %c2_185 = arith.constant 2 : index
    %c0_186 = arith.constant 0 : index
    %c0_187 = arith.constant 0 : index
    %228 = vector.load %arg4[%c2_185, %c0_186, %c0_187] : memref<4x8x256xf32, #tpu.memory_space<vmem>>, vector<1x8x256xf32>
    %229 = vector.shape_cast %228 : vector<1x8x256xf32> to vector<8x256xf32>
    %230 = vector.shape_cast %227 : vector<8x256xf32> to vector<1x8x256xf32>
    tpu.vector_store %arg4[%c2_185, %c0_186, %c0_187], %230 {strides = array<i32>} : memref<4x8x256xf32, #tpu.memory_space<vmem>>, vector<1x8x256xf32>,
    %c3_188 = arith.constant 3 : index
    %c0_189 = arith.constant 0 : index
    %c0_190 = arith.constant 0 : index
    %231 = vector.load %arg4[%c3_188, %c0_189, %c0_190] : memref<4x8x256xf32, #tpu.memory_space<vmem>>, vector<1x8x256xf32>
    %232 = vector.shape_cast %231 : vector<1x8x256xf32> to vector<8x256xf32>
    %233 = vector.extract_strided_slice %209 {offsets = [0, 1536], sizes = [8, 256], strides = [1, 1]} : vector<8x1792xf32> to vector<8x256xf32>
    %234 = arith.addf %232, %233 : vector<8x256xf32>
    %c3_191 = arith.constant 3 : index
    %c0_192 = arith.constant 0 : index
    %c0_193 = arith.constant 0 : index
    %235 = vector.load %arg4[%c3_191, %c0_192, %c0_193] : memref<4x8x256xf32, #tpu.memory_space<vmem>>, vector<1x8x256xf32>
    %236 = vector.shape_cast %235 : vector<1x8x256xf32> to vector<8x256xf32>
    %237 = vector.shape_cast %234 : vector<8x256xf32> to vector<1x8x256xf32>
    tpu.vector_store %arg4[%c3_191, %c0_192, %c0_193], %237 {strides = array<i32>} : memref<4x8x256xf32, #tpu.memory_space<vmem>>, vector<1x8x256xf32>,
    %c0_194 = arith.constant 0 : index
    %c0_195 = arith.constant 0 : index
    %c0_196 = arith.constant 0 : index
    %238 = vector.load %arg4[%c0_194, %c0_195, %c0_196] : memref<4x8x256xf32, #tpu.memory_space<vmem>>, vector<1x8x256xf32>
    %239 = vector.shape_cast %238 : vector<1x8x256xf32> to vector<8x256xf32>
    %cst_197 = arith.constant 0.000000e+00 : f32
    %240 = vector.broadcast %cst_197 : f32 to vector<8x256xf32>
    %241 = arith.cmpf ogt, %239, %240 : vector<8x256xf32>
    %cst_198 = arith.constant 0.00999999977 : f32
    %242 = vector.broadcast %cst_198 : f32 to vector<8x256xf32>
    %243 = arith.mulf %242, %239 : vector<8x256xf32>
    %244 = arith.select %241, %239, %243 : vector<8x256xi1>, vector<8x256xf32>
    %c0_199 = arith.constant 0 : index
    %c128_200 = arith.constant 128 : index
    %245 = vector.load %arg5[%c0_199, %c128_200] : memref<8x2048xf32, #tpu.memory_space<vmem>>, vector<8x256xf32>
    tpu.vector_store %arg5[%c0_199, %c128_200], %244 {strides = array<i32>} : memref<8x2048xf32, #tpu.memory_space<vmem>>, vector<8x256xf32>,
    %c1_201 = arith.constant 1 : index
    %c0_202 = arith.constant 0 : index
    %c0_203 = arith.constant 0 : index
    %246 = vector.load %arg4[%c1_201, %c0_202, %c0_203] : memref<4x8x256xf32, #tpu.memory_space<vmem>>, vector<1x8x256xf32>
    %247 = vector.shape_cast %246 : vector<1x8x256xf32> to vector<8x256xf32>
    %cst_204 = arith.constant 0.000000e+00 : f32
    %248 = vector.broadcast %cst_204 : f32 to vector<8x256xf32>
    %249 = arith.cmpf ogt, %247, %248 : vector<8x256xf32>
    %cst_205 = arith.constant 0.00999999977 : f32
    %250 = vector.broadcast %cst_205 : f32 to vector<8x256xf32>
    %251 = arith.mulf %250, %247 : vector<8x256xf32>
    %252 = arith.select %249, %247, %251 : vector<8x256xi1>, vector<8x256xf32>
    %c0_206 = arith.constant 0 : index
    %c640_207 = arith.constant 640 : index
    %253 = vector.load %arg5[%c0_206, %c640_207] : memref<8x2048xf32, #tpu.memory_space<vmem>>, vector<8x256xf32>
    tpu.vector_store %arg5[%c0_206, %c640_207], %252 {strides = array<i32>} : memref<8x2048xf32, #tpu.memory_space<vmem>>, vector<8x256xf32>,
    %c2_208 = arith.constant 2 : index
    %c0_209 = arith.constant 0 : index
    %c0_210 = arith.constant 0 : index
    %254 = vector.load %arg4[%c2_208, %c0_209, %c0_210] : memref<4x8x256xf32, #tpu.memory_space<vmem>>, vector<1x8x256xf32>
    %255 = vector.shape_cast %254 : vector<1x8x256xf32> to vector<8x256xf32>
    %cst_211 = arith.constant 0.000000e+00 : f32
    %256 = vector.broadcast %cst_211 : f32 to vector<8x256xf32>
    %257 = arith.cmpf ogt, %255, %256 : vector<8x256xf32>
    %cst_212 = arith.constant 0.00999999977 : f32
    %258 = vector.broadcast %cst_212 : f32 to vector<8x256xf32>
    %259 = arith.mulf %258, %255 : vector<8x256xf32>
    %260 = arith.select %257, %255, %259 : vector<8x256xi1>, vector<8x256xf32>
    %c0_213 = arith.constant 0 : index
    %c1152_214 = arith.constant 1152 : index
    %261 = vector.load %arg5[%c0_213, %c1152_214] : memref<8x2048xf32, #tpu.memory_space<vmem>>, vector<8x256xf32>
    tpu.vector_store %arg5[%c0_213, %c1152_214], %260 {strides = array<i32>} : memref<8x2048xf32, #tpu.memory_space<vmem>>, vector<8x256xf32>,
    %c3_215 = arith.constant 3 : index
    %c0_216 = arith.constant 0 : index
    %c0_217 = arith.constant 0 : index
    %262 = vector.load %arg4[%c3_215, %c0_216, %c0_217] : memref<4x8x256xf32, #tpu.memory_space<vmem>>, vector<1x8x256xf32>
    %263 = vector.shape_cast %262 : vector<1x8x256xf32> to vector<8x256xf32>
    %cst_218 = arith.constant 0.000000e+00 : f32
    %264 = vector.broadcast %cst_218 : f32 to vector<8x256xf32>
    %265 = arith.cmpf ogt, %263, %264 : vector<8x256xf32>
    %cst_219 = arith.constant 0.00999999977 : f32
    %266 = vector.broadcast %cst_219 : f32 to vector<8x256xf32>
    %267 = arith.mulf %266, %263 : vector<8x256xf32>
    %268 = arith.select %265, %263, %267 : vector<8x256xi1>, vector<8x256xf32>
    %c0_220 = arith.constant 0 : index
    %c1664_221 = arith.constant 1664 : index
    %269 = vector.load %arg5[%c0_220, %c1664_221] : memref<8x2048xf32, #tpu.memory_space<vmem>>, vector<8x256xf32>
    tpu.vector_store %arg5[%c0_220, %c1664_221], %268 {strides = array<i32>} : memref<8x2048xf32, #tpu.memory_space<vmem>>, vector<8x256xf32>,
    %c4 = arith.constant 4 : index
    %c0_222 = arith.constant 0 : index
    %c0_223 = arith.constant 0 : index
    %270 = vector.load %arg2[%c4, %c0_222, %c0_223] : memref<6x8x24xf32, #tpu.memory_space<vmem>>, vector<1x8x24xf32>
    %271 = vector.shape_cast %270 : vector<1x8x24xf32> to vector<8x24xf32>
    %c4_224 = arith.constant 4 : index
    %c0_225 = arith.constant 0 : index
    %c0_226 = arith.constant 0 : index
    %272 = vector.load %arg3[%c4_224, %c0_225, %c0_226] : memref<6x8x1xf32, #tpu.memory_space<vmem>>, vector<1x8x1xf32>
    %273 = vector.shape_cast %272 : vector<1x8x1xf32> to vector<8x1xf32>
    %c0_227 = arith.constant 0 : index
    %c125_228 = arith.constant 125 : index
    %274 = vector.load %arg5[%c0_227, %c125_228] : memref<8x2048xf32, #tpu.memory_space<vmem>>, vector<8x1792xf32>
    %c0_229 = arith.constant 0 : index
    %c128_230 = arith.constant 128 : index
    %275 = vector.load %arg5[%c0_229, %c128_230] : memref<8x2048xf32, #tpu.memory_space<vmem>>, vector<8x1792xf32>
    %c0_231 = arith.constant 0 : index
    %c131_232 = arith.constant 131 : index
    %276 = vector.load %arg5[%c0_231, %c131_232] : memref<8x2048xf32, #tpu.memory_space<vmem>>, vector<8x1792xf32>
    %277 = tpu.concatenate %274, %275, %276 in 0 : vector<8x1792xf32>, vector<8x1792xf32>, vector<8x1792xf32> -> vector<24x1792xf32>
    %cst_233 = arith.constant dense<0.000000e+00> : vector<8x1792xf32>
    %278 = tpu.matmul %271, %277, %cst_233 {dimension_numbers = #tpu.dot_dimension_numbers<[1], [0], [0], [1], [0, 0, 1, 1], [], []>} : vector<8x24xf32>, vector<24x1792xf32>, vector<8x1792xf32> -> vector<8x1792xf32>
    %279 = vector.broadcast %273 : vector<8x1xf32> to vector<8x1792xf32>
    %280 = arith.addf %278, %279 : vector<8x1792xf32>
    %281 = vector.extract_strided_slice %280 {offsets = [0, 0], sizes = [8, 256], strides = [1, 1]} : vector<8x1792xf32> to vector<8x256xf32>
    %cst_234 = arith.constant 0.000000e+00 : f32
    %282 = vector.broadcast %cst_234 : f32 to vector<8x256xf32>
    %283 = arith.cmpf ogt, %281, %282 : vector<8x256xf32>
    %cst_235 = arith.constant 0.00999999977 : f32
    %284 = vector.broadcast %cst_235 : f32 to vector<8x256xf32>
    %285 = arith.mulf %284, %281 : vector<8x256xf32>
    %286 = arith.select %283, %281, %285 : vector<8x256xi1>, vector<8x256xf32>
    %c0_236 = arith.constant 0 : index
    %c128_237 = arith.constant 128 : index
    %287 = vector.load %arg5[%c0_236, %c128_237] : memref<8x2048xf32, #tpu.memory_space<vmem>>, vector<8x256xf32>
    tpu.vector_store %arg5[%c0_236, %c128_237], %286 {strides = array<i32>} : memref<8x2048xf32, #tpu.memory_space<vmem>>, vector<8x256xf32>,
    %288 = vector.extract_strided_slice %280 {offsets = [0, 512], sizes = [8, 256], strides = [1, 1]} : vector<8x1792xf32> to vector<8x256xf32>
    %cst_238 = arith.constant 0.000000e+00 : f32
    %289 = vector.broadcast %cst_238 : f32 to vector<8x256xf32>
    %290 = arith.cmpf ogt, %288, %289 : vector<8x256xf32>
    %cst_239 = arith.constant 0.00999999977 : f32
    %291 = vector.broadcast %cst_239 : f32 to vector<8x256xf32>
    %292 = arith.mulf %291, %288 : vector<8x256xf32>
    %293 = arith.select %290, %288, %292 : vector<8x256xi1>, vector<8x256xf32>
    %c0_240 = arith.constant 0 : index
    %c640_241 = arith.constant 640 : index
    %294 = vector.load %arg5[%c0_240, %c640_241] : memref<8x2048xf32, #tpu.memory_space<vmem>>, vector<8x256xf32>
    tpu.vector_store %arg5[%c0_240, %c640_241], %293 {strides = array<i32>} : memref<8x2048xf32, #tpu.memory_space<vmem>>, vector<8x256xf32>,
    %295 = vector.extract_strided_slice %280 {offsets = [0, 1024], sizes = [8, 256], strides = [1, 1]} : vector<8x1792xf32> to vector<8x256xf32>
    %cst_242 = arith.constant 0.000000e+00 : f32
    %296 = vector.broadcast %cst_242 : f32 to vector<8x256xf32>
    %297 = arith.cmpf ogt, %295, %296 : vector<8x256xf32>
    %cst_243 = arith.constant 0.00999999977 : f32
    %298 = vector.broadcast %cst_243 : f32 to vector<8x256xf32>
    %299 = arith.mulf %298, %295 : vector<8x256xf32>
    %300 = arith.select %297, %295, %299 : vector<8x256xi1>, vector<8x256xf32>
    %c0_244 = arith.constant 0 : index
    %c1152_245 = arith.constant 1152 : index
    %301 = vector.load %arg5[%c0_244, %c1152_245] : memref<8x2048xf32, #tpu.memory_space<vmem>>, vector<8x256xf32>
    tpu.vector_store %arg5[%c0_244, %c1152_245], %300 {strides = array<i32>} : memref<8x2048xf32, #tpu.memory_space<vmem>>, vector<8x256xf32>,
    %302 = vector.extract_strided_slice %280 {offsets = [0, 1536], sizes = [8, 256], strides = [1, 1]} : vector<8x1792xf32> to vector<8x256xf32>
    %cst_246 = arith.constant 0.000000e+00 : f32
    %303 = vector.broadcast %cst_246 : f32 to vector<8x256xf32>
    %304 = arith.cmpf ogt, %302, %303 : vector<8x256xf32>
    %cst_247 = arith.constant 0.00999999977 : f32
    %305 = vector.broadcast %cst_247 : f32 to vector<8x256xf32>
    %306 = arith.mulf %305, %302 : vector<8x256xf32>
    %307 = arith.select %304, %302, %306 : vector<8x256xi1>, vector<8x256xf32>
    %c0_248 = arith.constant 0 : index
    %c1664_249 = arith.constant 1664 : index
    %308 = vector.load %arg5[%c0_248, %c1664_249] : memref<8x2048xf32, #tpu.memory_space<vmem>>, vector<8x256xf32>
    tpu.vector_store %arg5[%c0_248, %c1664_249], %307 {strides = array<i32>} : memref<8x2048xf32, #tpu.memory_space<vmem>>, vector<8x256xf32>,
    %c5 = arith.constant 5 : index
    %c0_250 = arith.constant 0 : index
    %c0_251 = arith.constant 0 : index
    %309 = vector.load %arg2[%c5, %c0_250, %c0_251] : memref<6x8x24xf32, #tpu.memory_space<vmem>>, vector<1x8x24xf32>
    %310 = vector.shape_cast %309 : vector<1x8x24xf32> to vector<8x24xf32>
    %c5_252 = arith.constant 5 : index
    %c0_253 = arith.constant 0 : index
    %c0_254 = arith.constant 0 : index
    %311 = vector.load %arg3[%c5_252, %c0_253, %c0_254] : memref<6x8x1xf32, #tpu.memory_space<vmem>>, vector<1x8x1xf32>
    %312 = vector.shape_cast %311 : vector<1x8x1xf32> to vector<8x1xf32>
    %c0_255 = arith.constant 0 : index
    %c116 = arith.constant 116 : index
    %313 = vector.load %arg5[%c0_255, %c116] : memref<8x2048xf32, #tpu.memory_space<vmem>>, vector<8x1792xf32>
    %c0_256 = arith.constant 0 : index
    %c128_257 = arith.constant 128 : index
    %314 = vector.load %arg5[%c0_256, %c128_257] : memref<8x2048xf32, #tpu.memory_space<vmem>>, vector<8x1792xf32>
    %c0_258 = arith.constant 0 : index
    %c140 = arith.constant 140 : index
    %315 = vector.load %arg5[%c0_258, %c140] : memref<8x2048xf32, #tpu.memory_space<vmem>>, vector<8x1792xf32>
    %316 = tpu.concatenate %313, %314, %315 in 0 : vector<8x1792xf32>, vector<8x1792xf32>, vector<8x1792xf32> -> vector<24x1792xf32>
    %cst_259 = arith.constant dense<0.000000e+00> : vector<8x1792xf32>
    %317 = tpu.matmul %310, %316, %cst_259 {dimension_numbers = #tpu.dot_dimension_numbers<[1], [0], [0], [1], [0, 0, 1, 1], [], []>} : vector<8x24xf32>, vector<24x1792xf32>, vector<8x1792xf32> -> vector<8x1792xf32>
    %318 = vector.broadcast %312 : vector<8x1xf32> to vector<8x1792xf32>
    %319 = arith.addf %317, %318 : vector<8x1792xf32>
    %c0_260 = arith.constant 0 : index
    %c0_261 = arith.constant 0 : index
    %c0_262 = arith.constant 0 : index
    %320 = vector.load %arg4[%c0_260, %c0_261, %c0_262] : memref<4x8x256xf32, #tpu.memory_space<vmem>>, vector<1x8x256xf32>
    %321 = vector.shape_cast %320 : vector<1x8x256xf32> to vector<8x256xf32>
    %322 = vector.extract_strided_slice %319 {offsets = [0, 0], sizes = [8, 256], strides = [1, 1]} : vector<8x1792xf32> to vector<8x256xf32>
    %323 = arith.addf %321, %322 : vector<8x256xf32>
    %c0_263 = arith.constant 0 : index
    %c0_264 = arith.constant 0 : index
    %c0_265 = arith.constant 0 : index
    %324 = vector.load %arg4[%c0_263, %c0_264, %c0_265] : memref<4x8x256xf32, #tpu.memory_space<vmem>>, vector<1x8x256xf32>
    %325 = vector.shape_cast %324 : vector<1x8x256xf32> to vector<8x256xf32>
    %326 = vector.shape_cast %323 : vector<8x256xf32> to vector<1x8x256xf32>
    tpu.vector_store %arg4[%c0_263, %c0_264, %c0_265], %326 {strides = array<i32>} : memref<4x8x256xf32, #tpu.memory_space<vmem>>, vector<1x8x256xf32>,
    %c1_266 = arith.constant 1 : index
    %c0_267 = arith.constant 0 : index
    %c0_268 = arith.constant 0 : index
    %327 = vector.load %arg4[%c1_266, %c0_267, %c0_268] : memref<4x8x256xf32, #tpu.memory_space<vmem>>, vector<1x8x256xf32>
    %328 = vector.shape_cast %327 : vector<1x8x256xf32> to vector<8x256xf32>
    %329 = vector.extract_strided_slice %319 {offsets = [0, 512], sizes = [8, 256], strides = [1, 1]} : vector<8x1792xf32> to vector<8x256xf32>
    %330 = arith.addf %328, %329 : vector<8x256xf32>
    %c1_269 = arith.constant 1 : index
    %c0_270 = arith.constant 0 : index
    %c0_271 = arith.constant 0 : index
    %331 = vector.load %arg4[%c1_269, %c0_270, %c0_271] : memref<4x8x256xf32, #tpu.memory_space<vmem>>, vector<1x8x256xf32>
    %332 = vector.shape_cast %331 : vector<1x8x256xf32> to vector<8x256xf32>
    %333 = vector.shape_cast %330 : vector<8x256xf32> to vector<1x8x256xf32>
    tpu.vector_store %arg4[%c1_269, %c0_270, %c0_271], %333 {strides = array<i32>} : memref<4x8x256xf32, #tpu.memory_space<vmem>>, vector<1x8x256xf32>,
    %c2_272 = arith.constant 2 : index
    %c0_273 = arith.constant 0 : index
    %c0_274 = arith.constant 0 : index
    %334 = vector.load %arg4[%c2_272, %c0_273, %c0_274] : memref<4x8x256xf32, #tpu.memory_space<vmem>>, vector<1x8x256xf32>
    %335 = vector.shape_cast %334 : vector<1x8x256xf32> to vector<8x256xf32>
    %336 = vector.extract_strided_slice %319 {offsets = [0, 1024], sizes = [8, 256], strides = [1, 1]} : vector<8x1792xf32> to vector<8x256xf32>
    %337 = arith.addf %335, %336 : vector<8x256xf32>
    %c2_275 = arith.constant 2 : index
    %c0_276 = arith.constant 0 : index
    %c0_277 = arith.constant 0 : index
    %338 = vector.load %arg4[%c2_275, %c0_276, %c0_277] : memref<4x8x256xf32, #tpu.memory_space<vmem>>, vector<1x8x256xf32>
    %339 = vector.shape_cast %338 : vector<1x8x256xf32> to vector<8x256xf32>
    %340 = vector.shape_cast %337 : vector<8x256xf32> to vector<1x8x256xf32>
    tpu.vector_store %arg4[%c2_275, %c0_276, %c0_277], %340 {strides = array<i32>} : memref<4x8x256xf32, #tpu.memory_space<vmem>>, vector<1x8x256xf32>,
    %c3_278 = arith.constant 3 : index
    %c0_279 = arith.constant 0 : index
    %c0_280 = arith.constant 0 : index
    %341 = vector.load %arg4[%c3_278, %c0_279, %c0_280] : memref<4x8x256xf32, #tpu.memory_space<vmem>>, vector<1x8x256xf32>
    %342 = vector.shape_cast %341 : vector<1x8x256xf32> to vector<8x256xf32>
    %343 = vector.extract_strided_slice %319 {offsets = [0, 1536], sizes = [8, 256], strides = [1, 1]} : vector<8x1792xf32> to vector<8x256xf32>
    %344 = arith.addf %342, %343 : vector<8x256xf32>
    %c3_281 = arith.constant 3 : index
    %c0_282 = arith.constant 0 : index
    %c0_283 = arith.constant 0 : index
    %345 = vector.load %arg4[%c3_281, %c0_282, %c0_283] : memref<4x8x256xf32, #tpu.memory_space<vmem>>, vector<1x8x256xf32>
    %346 = vector.shape_cast %345 : vector<1x8x256xf32> to vector<8x256xf32>
    %347 = vector.shape_cast %344 : vector<8x256xf32> to vector<1x8x256xf32>
    tpu.vector_store %arg4[%c3_281, %c0_282, %c0_283], %347 {strides = array<i32>} : memref<4x8x256xf32, #tpu.memory_space<vmem>>, vector<1x8x256xf32>,
    return
  }
  func.func @transform_0(%arg0: i32) -> (i32, i32, i32) {
    %c0_i32 = arith.constant 0 : i32
    %c0_i32_0 = arith.constant 0 : i32
    %c0_i32_1 = arith.constant 0 : i32
    return %arg0, %c0_i32, %c0_i32_0 : i32, i32, i32
  }
  func.func @transform_1(%arg0: i32) -> (i32, i32, i32) {
    %c0_i32 = arith.constant 0 : i32
    %c0_i32_0 = arith.constant 0 : i32
    %c0_i32_1 = arith.constant 0 : i32
    %c0_i32_2 = arith.constant 0 : i32
    return %c0_i32, %c0_i32_0, %c0_i32_1 : i32, i32, i32
  }
  func.func @transform_2(%arg0: i32) -> (i32, i32, i32) {
    %c0_i32 = arith.constant 0 : i32
    %c0_i32_0 = arith.constant 0 : i32
    %c0_i32_1 = arith.constant 0 : i32
    %c0_i32_2 = arith.constant 0 : i32
    return %c0_i32, %c0_i32_0, %c0_i32_1 : i32, i32, i32
  }
  func.func @transform_3(%arg0: i32) -> (i32, i32, i32) {
    %c0_i32 = arith.constant 0 : i32
    %c0_i32_0 = arith.constant 0 : i32
    %c0_i32_1 = arith.constant 0 : i32
    return %arg0, %c0_i32, %c0_i32_0 : i32, i32, i32
  }
}

</mosaic_0001>

<llo_original>
// kernel: tpu_custom_call.1
$region0: #{tpu_custom_call.1}
  #allocation0 [shape = 'u32[]', space=smem, size = 0x4, offset = 0x4, fixed_abs, tag = 'smem constant byte address 0x4 - core index']
  #allocation1 [shape = 'u32[144,128]{1,0:T(1,128)}', space=vmem, size = 0x12000, scoped, tag = 'internal scratch']
  #allocation2 [shape = 'f32[8,2048]{1,0:T(8,128)}', space=vmem, size = 0x10000, scoped, tag = 'scratch operand']
  %s0 = inlined_call_operand.hbm [shape: f32[4,8,256], index: 0, kind: input, shape index: {}]
  %s1 = inlined_call_operand.vmem [shape: f32[6,8,24], index: 1, kind: input, shape index: {}]
  %s2 = inlined_call_operand.vmem [shape: f32[6,8,1], index: 2, kind: input, shape index: {}]
  %s3 = inlined_call_operand.hbm [shape: f32[4,8,256], index: 3, kind: output, shape index: {}]
  %s4 = sld [smem:[#allocation0]]
  $region26: #{tpu_custom_call.1} parent=0
    _
  %s6 = ssub.s32 1, %s4
  %s7 = scalar_select 0, %s6, %s4
  $region1: #{tpu_custom_call.1} parent=0
    #allocation3 [shape = 'u8[32768]{0}', space=vmem, size = 0x8000, scoped, tag = 'input window, operand 0, single buffered']
    #allocation4 [shape = 's32[1]{0}', space=sflag, size = 0x4, scoped, tag = 'scoped memory for tpu_custom_call.1']
    #allocation5 [shape = 's32[1]{0}', space=sflag, size = 0x4, scoped, tag = 'scoped memory for tpu_custom_call.1']
    #allocation6 [shape = 'u8[32768]{0}', space=vmem, size = 0x8000, scoped, tag = 'output window, operand 0, single buffered']
    %8 = vsyncpa [#allocation4], 0
    %9 = vsyncpa [#allocation5], 0
    // Predicated region
    $region2: #{tpu_custom_call.1} parent=1 // pred_check
      _
    $region3: #{tpu_custom_call.1} parent=1 // pred_check_branch
      %11 = sbr.rel (0) target = $region5
    $region4: #{tpu_custom_call.1} parent=1 // pred_region
      %s13 = ssub.s32 1024, 1024
      %14 = vsyncadd [#allocation4], %s13
      %s15 = sshll.u32 [#allocation3], 4
      %s16 = int_to_ptr.vmem [resolvable:$true] %s15
      %21 = dma.hbm_to_vmem [thread:$0]  %s0, 1024, %s16, [#allocation4], 256, 256, 16
    $region5: #{tpu_custom_call.1} parent=1 // pred_fallthru
      _
    // Predicated region
    $region6: #{tpu_custom_call.1} parent=1 // pred_check
      _
    $region7: #{tpu_custom_call.1} parent=1 // pred_check_branch
      %23 = sbr.rel (0) target = $region9
    $region8: #{tpu_custom_call.1} parent=1 // pred_region
      _
    $region9: #{tpu_custom_call.1} parent=1 // pred_fallthru
      _
    // Predicated region
    $region10: #{tpu_custom_call.1} parent=1 // pred_check
      _
    $region11: #{tpu_custom_call.1} parent=1 // pred_check_branch
      %25 = sbr.rel (0) target = $region13
    $region12: #{tpu_custom_call.1} parent=1 // pred_region
      _
    $region13: #{tpu_custom_call.1} parent=1 // pred_fallthru
      _
    // Predicated region
    $region14: #{tpu_custom_call.1} parent=1 // pred_check
      _
    $region15: #{tpu_custom_call.1} parent=1 // pred_check_branch
      %27 = sbr.rel (0) target = $region17
    $region16: #{tpu_custom_call.1} parent=1 // pred_region
      %28 = dma.done [#allocation4], 1024
    $region17: #{tpu_custom_call.1} parent=1 // pred_fallthru
      _
    %29 = vst [vmem:[#allocation2] sm:$0xff] 0.0
    %30 = vst [vmem:[#allocation2 + $0x18] sm:$0xff] 0.0
    %31 = vst [vmem:[#allocation2 + $0x20] sm:$0xff] 0.0
    %32 = vst [vmem:[#allocation2 + $0x38] sm:$0xff] 0.0
    %33 = vst [vmem:[#allocation2 + $0x40] sm:$0xff] 0.0
    %34 = vst [vmem:[#allocation2 + $0x58] sm:$0xff] 0.0
    %35 = vst [vmem:[#allocation2 + $0x60] sm:$0xff] 0.0
    %36 = vst [vmem:[#allocation2 + $0x78] sm:$0xff] 0.0
    %v37 = vld [vmem:[#allocation3] sm:$0xff]
    %v38 = vld [vmem:[#allocation3 + $0x8] sm:$0xff]
    %v39 = vld [vmem:[#allocation3 + $0x10] sm:$0xff]
    %v40 = vld [vmem:[#allocation3 + $0x18] sm:$0xff]
    %v41 = vld [vmem:[#allocation3 + $0x20] sm:$0xff]
    %v42 = vld [vmem:[#allocation3 + $0x28] sm:$0xff]
    %v43 = vld [vmem:[#allocation3 + $0x30] sm:$0xff]
    %v44 = vld [vmem:[#allocation3 + $0x38] sm:$0xff]
    %45 = vst [vmem:[#allocation6] sm:$0xff] %v37
    %46 = vst [vmem:[#allocation6 + $0x8] sm:$0xff] %v38
    %47 = vst [vmem:[#allocation6 + $0x10] sm:$0xff] %v39
    %48 = vst [vmem:[#allocation6 + $0x18] sm:$0xff] %v40
    %49 = vst [vmem:[#allocation6 + $0x20] sm:$0xff] %v41
    %50 = vst [vmem:[#allocation6 + $0x28] sm:$0xff] %v42
    %51 = vst [vmem:[#allocation6 + $0x30] sm:$0xff] %v43
    %52 = vst [vmem:[#allocation6 + $0x38] sm:$0xff] %v44
    %v53 = vld [vmem:[#allocation6] sm:$0xff]
    %v54 = vld [vmem:[#allocation6 + $0x8] sm:$0xff]
    %vm55 = vcmp.gt.f32.partialorder %v53, 0.0
    %vm56 = vcmp.gt.f32.partialorder %v54, 0.0
    %v57 = vmul.f32 %v53, 0.01
    %v58 = vmul.f32 %v54, 0.01
    %v59 = vsel %vm55, %v53, %v57
    %v60 = vsel %vm56, %v54, %v58
    %61 = vst [vmem:[#allocation2 + $0x8] sm:$0xff] %v59
    %62 = vst [vmem:[#allocation2 + $0x10] sm:$0xff] %v60
    %s63 = scalar_lea.vmem [#allocation6], 16
    %v64 = vld [vmem:[%s63] sm:$0xff]
    %v65 = vld [vmem:[%s63 + $0x8] sm:$0xff]
    %vm66 = vcmp.gt.f32.partialorder %v64, 0.0
    %vm67 = vcmp.gt.f32.partialorder %v65, 0.0
    %v68 = vmul.f32 %v64, 0.01
    %v69 = vmul.f32 %v65, 0.01
    %v70 = vsel %vm66, %v64, %v68
    %v71 = vsel %vm67, %v65, %v69
    %72 = vst [vmem:[#allocation2 + $0x28] sm:$0xff] %v70
    %73 = vst [vmem:[#allocation2 + $0x30] sm:$0xff] %v71
    %s74 = scalar_lea.vmem [#allocation6], 32
    %v75 = vld [vmem:[%s74] sm:$0xff]
    %v76 = vld [vmem:[%s74 + $0x8] sm:$0xff]
    %vm77 = vcmp.gt.f32.partialorder %v75, 0.0
    %vm78 = vcmp.gt.f32.partialorder %v76, 0.0
    %v79 = vmul.f32 %v75, 0.01
    %v80 = vmul.f32 %v76, 0.01
    %v81 = vsel %vm77, %v75, %v79
    %v82 = vsel %vm78, %v76, %v80
    %83 = vst [vmem:[#allocation2 + $0x48] sm:$0xff] %v81
    %84 = vst [vmem:[#allocation2 + $0x50] sm:$0xff] %v82
    %s85 = scalar_lea.vmem [#allocation6], 48
    %v86 = vld [vmem:[%s85] sm:$0xff]
    %v87 = vld [vmem:[%s85 + $0x8] sm:$0xff]
    %vm88 = vcmp.gt.f32.partialorder %v86, 0.0
    %vm89 = vcmp.gt.f32.partialorder %v87, 0.0
    %v90 = vmul.f32 %v86, 0.01
    %v91 = vmul.f32 %v87, 0.01
    %v92 = vsel %vm88, %v86, %v90
    %v93 = vsel %vm89, %v87, %v91
    %94 = vst [vmem:[#allocation2 + $0x68] sm:$0xff] %v92
    %95 = vst [vmem:[#allocation2 + $0x70] sm:$0xff] %v93
    %v96 = vld [vmem:[%s1] sm:$0xff]
    %v97 = vld [vmem:[%s2] sm:$0xff]
    %v98 = vld [vmem:[#allocation2] sm:$0xff]
    %v99 = vld [vmem:[#allocation2 + $0x8] sm:$0xff]
    %v100 = vld [vmem:[#allocation2 + $0x10] sm:$0xff]
    %v101 = vld [vmem:[#allocation2 + $0x20] sm:$0xff]
    %v102 = vld [vmem:[#allocation2 + $0x28] sm:$0xff]
    %v103 = vld [vmem:[#allocation2 + $0x30] sm:$0xff]
    %v104 = vld [vmem:[#allocation2 + $0x40] sm:$0xff]
    %v105 = vld [vmem:[#allocation2 + $0x48] sm:$0xff]
    %v106 = vld [vmem:[#allocation2 + $0x50] sm:$0xff]
    %v107 = vld [vmem:[#allocation2 + $0x60] sm:$0xff]
    %v108 = vld [vmem:[#allocation2 + $0x68] sm:$0xff]
    %v109 = vld [vmem:[#allocation2 + $0x70] sm:$0xff]
    %v110 = vld [vmem:[#allocation2 + $0x18] sm:$0xff]
    %v111 = vld [vmem:[#allocation2 + $0x38] sm:$0xff]
    %v112 = vld [vmem:[#allocation2 + $0x58] sm:$0xff]
    %v113 = vld [vmem:[#allocation2 + $0x8] sm:$0xff]
    %v114 = vld [vmem:[#allocation2 + $0x10] sm:$0xff]
    %v115 = vld [vmem:[#allocation2 + $0x18] sm:$0xff]
    %v116 = vld [vmem:[#allocation2 + $0x20] sm:$0xff]
    %v117 = vld [vmem:[#allocation2 + $0x28] sm:$0xff]
    %v118 = vld [vmem:[#allocation2 + $0x30] sm:$0xff]
    %v119 = vld [vmem:[#allocation2 + $0x38] sm:$0xff]
    %v120 = vld [vmem:[#allocation2 + $0x40] sm:$0xff]
    %v121 = vld [vmem:[#allocation2 + $0x48] sm:$0xff]
    %v122 = vld [vmem:[#allocation2 + $0x50] sm:$0xff]
    %v123 = vld [vmem:[#allocation2 + $0x58] sm:$0xff]
    %v124 = vld [vmem:[#allocation2 + $0x60] sm:$0xff]
    %v125 = vld [vmem:[#allocation2 + $0x68] sm:$0xff]
    %v126 = vld [vmem:[#allocation2 + $0x70] sm:$0xff]
    %v127 = vld [vmem:[#allocation2 + $0x78] sm:$0xff]
    %142 = vrot.lane.b32.xlu0 %v99, 127
    %v143 = vpop.permute.xlu0 %142
    %144 = vrot.lane.b32.xlu0 %v100, 127
    %v145 = vpop.permute.xlu0 %144
    %146 = vrot.lane.b32.xlu0 %v110, 127
    %v147 = vpop.permute.xlu0 %146
    %148 = vrot.lane.b32.xlu0 %v101, 127
    %v149 = vpop.permute.xlu0 %148
    %150 = vrot.lane.b32.xlu0 %v102, 127
    %v151 = vpop.permute.xlu0 %150
    %152 = vrot.lane.b32.xlu0 %v103, 127
    %v153 = vpop.permute.xlu0 %152
    %154 = vrot.lane.b32.xlu0 %v111, 127
    %v155 = vpop.permute.xlu0 %154
    %156 = vrot.lane.b32.xlu0 %v104, 127
    %v157 = vpop.permute.xlu0 %156
    %158 = vrot.lane.b32.xlu0 %v105, 127
    %v159 = vpop.permute.xlu0 %158
    %160 = vrot.lane.b32.xlu0 %v106, 127
    %v161 = vpop.permute.xlu0 %160
    %162 = vrot.lane.b32.xlu0 %v112, 127
    %v163 = vpop.permute.xlu0 %162
    %164 = vrot.lane.b32.xlu0 %v107, 127
    %v165 = vpop.permute.xlu0 %164
    %166 = vrot.lane.b32.xlu0 %v108, 127
    %v167 = vpop.permute.xlu0 %166
    %168 = vrot.lane.b32.xlu0 %v109, 127
    %v169 = vpop.permute.xlu0 %168
    %vm170 = vcmask 1039360
    %v171 = vsel %vm170, %v143, %v145
    %v172 = vsel %vm170, %v145, %v147
    %v173 = vsel %vm170, %v149, %v151
    %v174 = vsel %vm170, %v151, %v153
    %v175 = vsel %vm170, %v153, %v155
    %v176 = vsel %vm170, %v157, %v159
    %v177 = vsel %vm170, %v159, %v161
    %v178 = vsel %vm170, %v161, %v163
    %v179 = vsel %vm170, %v165, %v167
    %v180 = vsel %vm170, %v167, %v169
    %196 = vrot.lane.b32.xlu0 %v113, 126
    %v197 = vpop.permute.xlu0 %196
    %198 = vrot.lane.b32.xlu0 %v114, 126
    %v199 = vpop.permute.xlu0 %198
    %200 = vrot.lane.b32.xlu0 %v115, 126
    %v201 = vpop.permute.xlu0 %200
    %202 = vrot.lane.b32.xlu0 %v116, 126
    %v203 = vpop.permute.xlu0 %202
    %204 = vrot.lane.b32.xlu0 %v117, 126
    %v205 = vpop.permute.xlu0 %204
    %206 = vrot.lane.b32.xlu0 %v118, 126
    %v207 = vpop.permute.xlu0 %206
    %208 = vrot.lane.b32.xlu0 %v119, 126
    %v209 = vpop.permute.xlu0 %208
    %210 = vrot.lane.b32.xlu0 %v120, 126
    %v211 = vpop.permute.xlu0 %210
    %212 = vrot.lane.b32.xlu0 %v121, 126
    %v213 = vpop.permute.xlu0 %212
    %214 = vrot.lane.b32.xlu0 %v122, 126
    %v215 = vpop.permute.xlu0 %214
    %216 = vrot.lane.b32.xlu0 %v123, 126
    %v217 = vpop.permute.xlu0 %216
    %218 = vrot.lane.b32.xlu0 %v124, 126
    %v219 = vpop.permute.xlu0 %218
    %220 = vrot.lane.b32.xlu0 %v125, 126
    %v221 = vpop.permute.xlu0 %220
    %222 = vrot.lane.b32.xlu0 %v126, 126
    %v223 = vpop.permute.xlu0 %222
    %224 = vrot.lane.b32.xlu0 %v127, 126
    %v225 = vpop.permute.xlu0 %224
    %vm226 = vcmask 1031168
    %v227 = vsel %vm226, %v197, %v199
    %v228 = vsel %vm226, %v199, %v201
    %v229 = vsel %vm226, %v203, %v205
    %v230 = vsel %vm226, %v205, %v207
    %v231 = vsel %vm226, %v207, %v209
    %v232 = vsel %vm226, %v211, %v213
    %v233 = vsel %vm226, %v213, %v215
    %v234 = vsel %vm226, %v215, %v217
    %v235 = vsel %vm226, %v219, %v221
    %v236 = vsel %vm226, %v221, %v223
    %v237 = vsel %vm226, %v223, %v225
    %239 = vset.pattern.permute.xlu0 0
    %240 = vperm.xlu0 %239, %v97
    %v241 = vpop.permute.xlu0 %240
    %244 = vrot.lane.b32.xlu0 %v98, 1
    %v245 = vpop.permute.xlu0 %244
    %246 = vrot.lane.b32.xlu0 %v99, 1
    %v247 = vpop.permute.xlu0 %246
    %248 = vrot.lane.b32.xlu0 %v100, 1
    %v249 = vpop.permute.xlu0 %248
    %250 = vrot.lane.b32.xlu0 %v101, 1
    %v251 = vpop.permute.xlu0 %250
    %252 = vrot.lane.b32.xlu0 %v102, 1
    %v253 = vpop.permute.xlu0 %252
    %254 = vrot.lane.b32.xlu0 %v103, 1
    %v255 = vpop.permute.xlu0 %254
    %256 = vrot.lane.b32.xlu0 %v104, 1
    %v257 = vpop.permute.xlu0 %256
    %258 = vrot.lane.b32.xlu0 %v105, 1
    %v259 = vpop.permute.xlu0 %258
    %260 = vrot.lane.b32.xlu0 %v106, 1
    %v261 = vpop.permute.xlu0 %260
    %262 = vrot.lane.b32.xlu0 %v107, 1
    %v263 = vpop.permute.xlu0 %262
    %264 = vrot.lane.b32.xlu0 %v108, 1
    %v265 = vpop.permute.xlu0 %264
    %266 = vrot.lane.b32.xlu0 %v109, 1
    %v267 = vpop.permute.xlu0 %266
    %268 = vrot.lane.b32.xlu0 %v143, 1
    %v269 = vpop.permute.xlu0 %268
    %270 = vrot.lane.b32.xlu0 %v171, 1
    %v271 = vpop.permute.xlu0 %270
    %272 = vrot.lane.b32.xlu0 %v172, 1
    %v273 = vpop.permute.xlu0 %272
    %274 = vrot.lane.b32.xlu0 %v173, 1
    %v275 = vpop.permute.xlu0 %274
    %276 = vrot.lane.b32.xlu0 %v174, 1
    %v277 = vpop.permute.xlu0 %276
    %278 = vrot.lane.b32.xlu0 %v175, 1
    %v279 = vpop.permute.xlu0 %278
    %280 = vrot.lane.b32.xlu0 %v176, 1
    %v281 = vpop.permute.xlu0 %280
    %282 = vrot.lane.b32.xlu0 %v177, 1
    %v283 = vpop.permute.xlu0 %282
    %284 = vrot.lane.b32.xlu0 %v178, 1
    %v285 = vpop.permute.xlu0 %284
    %286 = vrot.lane.b32.xlu0 %v179, 1
    %v287 = vpop.permute.xlu0 %286
    %288 = vrot.lane.b32.xlu0 %v180, 1
    %v289 = vpop.permute.xlu0 %288
    %290 = vrot.lane.b32.xlu0 %v169, 1
    %v291 = vpop.permute.xlu0 %290
    %292 = vrot.lane.b32.xlu0 %v197, 1
    %v293 = vpop.permute.xlu0 %292
    %294 = vrot.lane.b32.xlu0 %v227, 1
    %v295 = vpop.permute.xlu0 %294
    %296 = vrot.lane.b32.xlu0 %v228, 1
    %v297 = vpop.permute.xlu0 %296
    %298 = vrot.lane.b32.xlu0 %v229, 1
    %v299 = vpop.permute.xlu0 %298
    %300 = vrot.lane.b32.xlu0 %v230, 1
    %v301 = vpop.permute.xlu0 %300
    %302 = vrot.lane.b32.xlu0 %v231, 1
    %v303 = vpop.permute.xlu0 %302
    %304 = vrot.lane.b32.xlu0 %v232, 1
    %v305 = vpop.permute.xlu0 %304
    %306 = vrot.lane.b32.xlu0 %v233, 1
    %v307 = vpop.permute.xlu0 %306
    %308 = vrot.lane.b32.xlu0 %v234, 1
    %v309 = vpop.permute.xlu0 %308
    %310 = vrot.lane.b32.xlu0 %v235, 1
    %v311 = vpop.permute.xlu0 %310
    %312 = vrot.lane.b32.xlu0 %v236, 1
    %v313 = vpop.permute.xlu0 %312
    %314 = vrot.lane.b32.xlu0 %v237, 1
    %v315 = vpop.permute.xlu0 %314
    %vm316 = vcmask 7168
    %v317 = vsel %vm316, %v245, %v247
    %v318 = vsel %vm316, %v247, %v249
    %v319 = vsel %vm316, %v251, %v253
    %v320 = vsel %vm316, %v253, %v255
    %v321 = vsel %vm316, %v257, %v259
    %v322 = vsel %vm316, %v259, %v261
    %v323 = vsel %vm316, %v263, %v265
    %v324 = vsel %vm316, %v265, %v267
    %v325 = vsel %vm316, %v269, %v271
    %v326 = vsel %vm316, %v271, %v273
    %v327 = vsel %vm316, %v275, %v277
    %v328 = vsel %vm316, %v277, %v279
    %v329 = vsel %vm316, %v281, %v283
    %v330 = vsel %vm316, %v283, %v285
    %v331 = vsel %vm316, %v287, %v289
    %v332 = vsel %vm316, %v289, %v291
    %v333 = vsel %vm316, %v293, %v295
    %v334 = vsel %vm316, %v295, %v297
    %v335 = vsel %vm316, %v299, %v301
    %v336 = vsel %vm316, %v301, %v303
    %v337 = vsel %vm316, %v305, %v307
    %v338 = vsel %vm316, %v307, %v309
    %v339 = vsel %vm316, %v311, %v313
    %v340 = vsel %vm316, %v313, %v315
    %vm365 = vcmask 195584
    %v367 = vsel %vm365, %v96, 0
    %369 = vmatprep.subr.mxu0 0.0
    %370 = vmatpush1.msra.mxu0 0.0
    %371 = vmatprep.subr.mxu0 0.0
    %372 = vmatpush1.msra.mxu0 0.0
    %373 = vmatprep.subr.mxu0 0.0
    %374 = vmatpush1.msra.mxu0 0.0
    %375 = vmatprep.subr.mxu0 0.0
    %376 = vmatpush1.msra.mxu0 0.0
    %377 = vmatprep.subr.mxu0 0.0
    %378 = vmatpush1.msra.mxu0 0.0
    %379 = vmatprep.subr.mxu0 0.0
    %380 = vmatpush1.msra.mxu0 0.0
    %381 = vmatprep.subr.mxu0 0.0
    %382 = vmatpush1.msra.mxu0 0.0
    %383 = vmatprep.subr.mxu0 0.0
    %384 = vmatpush1.msra.mxu0 0.0
    %385 = vmatprep.subr.mxu0 0.0
    %386 = vmatpush1.msra.mxu0 0.0
    %387 = vmatprep.subr.mxu0 0.0
    %388 = vmatpush1.msra.mxu0 0.0
    %389 = vmatprep.subr.mxu0 0.0
    %390 = vmatpush1.msra.mxu0 0.0
    %391 = vmatprep.subr.mxu0 0.0
    %392 = vmatpush1.msra.mxu0 0.0
    %393 = vmatprep.subr.mxu0 0.0
    %394 = vmatpush1.msra.mxu0 0.0
    %395 = vmatprep.subr.mxu0 %v334
    %396 = vmatpush1.msra.mxu0 %v333
    %397 = vmatprep.subr.mxu0 %v326
    %398 = vmatpush1.msra.mxu0 %v325
    %399 = vmatprep.subr.mxu0 %v318
    %400 = vmatpush1.msra.mxu0 %v317
    %401 = vmatprep.subr.mxu0 0.0
    %402 = vmatpush2.msra.mxu0 0.0
    %403 = vmatprep.subr.mxu0 0.0
    %404 = vmatpush2.msra.mxu0 0.0
    %405 = vmatprep.subr.mxu0 0.0
    %406 = vmatpush2.msra.mxu0 0.0
    %407 = vmatprep.subr.mxu0 0.0
    %408 = vmatpush2.msra.mxu0 0.0
    %409 = vmatprep.subr.mxu0 0.0
    %410 = vmatpush2.msra.mxu0 0.0
    %411 = vmatprep.subr.mxu0 0.0
    %412 = vmatpush2.msra.mxu0 0.0
    %413 = vmatprep.subr.mxu0 0.0
    %414 = vmatpush2.msra.mxu0 0.0
    %415 = vmatprep.subr.mxu0 0.0
    %416 = vmatpush2.msra.mxu0 0.0
    %417 = vmatprep.subr.mxu0 0.0
    %418 = vmatpush2.msra.mxu0 0.0
    %419 = vmatprep.subr.mxu0 0.0
    %420 = vmatpush2.msra.mxu0 0.0
    %421 = vmatprep.subr.mxu0 0.0
    %422 = vmatpush2.msra.mxu0 0.0
    %423 = vmatprep.subr.mxu0 0.0
    %424 = vmatpush2.msra.mxu0 0.0
    %425 = vmatprep.subr.mxu0 0.0
    %426 = vmatpush2.msra.mxu0 0.0
    %427 = vmatprep.subr.mxu0 0.0
    %428 = vmatpush2.msra.mxu0 0.0
    %429 = vmatprep.subr.mxu0 0.0
    %430 = vmatpush2.msra.mxu0 0.0
    %431 = vmatprep.subr.mxu0 0.0
    %432 = vmatpush2.msra.mxu0 0.0
    %433 = vmatprep.mubr.f32.mxu0 0.0
    %434 = vmatmul.mubr.f32.gmra.mxu0 %v367
    %v435 = vpop.f32.mrf.mxu0
    %v436 = vadd.f32 %v241, %v435
    %v437 = vpop.f32.mrf.mxu0
    %v438 = vadd.f32 %v241, %v437
    %439 = vdwg.mxu0
    %440 = vmatprep.subr.mxu0 0.0
    %441 = vmatpush1.msra.mxu0 0.0
    %442 = vmatprep.subr.mxu0 0.0
    %443 = vmatpush1.msra.mxu0 0.0
    %444 = vmatprep.subr.mxu0 0.0
    %445 = vmatpush1.msra.mxu0 0.0
    %446 = vmatprep.subr.mxu0 0.0
    %447 = vmatpush1.msra.mxu0 0.0
    %448 = vmatprep.subr.mxu0 0.0
    %449 = vmatpush1.msra.mxu0 0.0
    %450 = vmatprep.subr.mxu0 0.0
    %451 = vmatpush1.msra.mxu0 0.0
    %452 = vmatprep.subr.mxu0 0.0
    %453 = vmatpush1.msra.mxu0 0.0
    %454 = vmatprep.subr.mxu0 0.0
    %455 = vmatpush1.msra.mxu0 0.0
    %456 = vmatprep.subr.mxu0 0.0
    %457 = vmatpush1.msra.mxu0 0.0
    %458 = vmatprep.subr.mxu0 0.0
    %459 = vmatpush1.msra.mxu0 0.0
    %460 = vmatprep.subr.mxu0 0.0
    %461 = vmatpush1.msra.mxu0 0.0
    %462 = vmatprep.subr.mxu0 0.0
    %463 = vmatpush1.msra.mxu0 0.0
    %464 = vmatprep.subr.mxu0 0.0
    %465 = vmatpush1.msra.mxu0 0.0
    %466 = vmatprep.subr.mxu0 %v336
    %467 = vmatpush1.msra.mxu0 %v335
    %468 = vmatprep.subr.mxu0 %v328
    %469 = vmatpush1.msra.mxu0 %v327
    %470 = vmatprep.subr.mxu0 %v320
    %471 = vmatpush1.msra.mxu0 %v319
    %472 = vmatprep.subr.mxu0 0.0
    %473 = vmatpush2.msra.mxu0 0.0
    %474 = vmatprep.subr.mxu0 0.0
    %475 = vmatpush2.msra.mxu0 0.0
    %476 = vmatprep.subr.mxu0 0.0
    %477 = vmatpush2.msra.mxu0 0.0
    %478 = vmatprep.subr.mxu0 0.0
    %479 = vmatpush2.msra.mxu0 0.0
    %480 = vmatprep.subr.mxu0 0.0
    %481 = vmatpush2.msra.mxu0 0.0
    %482 = vmatprep.subr.mxu0 0.0
    %483 = vmatpush2.msra.mxu0 0.0
    %484 = vmatprep.subr.mxu0 0.0
    %485 = vmatpush2.msra.mxu0 0.0
    %486 = vmatprep.subr.mxu0 0.0
    %487 = vmatpush2.msra.mxu0 0.0
    %488 = vmatprep.subr.mxu0 0.0
    %489 = vmatpush2.msra.mxu0 0.0
    %490 = vmatprep.subr.mxu0 0.0
    %491 = vmatpush2.msra.mxu0 0.0
    %492 = vmatprep.subr.mxu0 0.0
    %493 = vmatpush2.msra.mxu0 0.0
    %494 = vmatprep.subr.mxu0 0.0
    %495 = vmatpush2.msra.mxu0 0.0
    %496 = vmatprep.subr.mxu0 0.0
    %497 = vmatpush2.msra.mxu0 0.0
    %498 = vmatprep.subr.mxu0 0.0
    %499 = vmatpush2.msra.mxu0 0.0
    %500 = vmatprep.subr.mxu0 0.0
    %501 = vmatpush2.msra.mxu0 0.0
    %502 = vmatprep.subr.mxu0 0.0
    %503 = vmatpush2.msra.mxu0 0.0
    %504 = vmatprep.mubr.f32.mxu0 0.0
    %505 = vmatmul.mubr.f32.gmra.mxu0 %v367
    %v506 = vpop.f32.mrf.mxu0
    %v507 = vadd.f32 %v241, %v506
    %v508 = vpop.f32.mrf.mxu0
    %v509 = vadd.f32 %v241, %v508
    %510 = vdwg.mxu0
    %511 = vmatprep.subr.mxu0 0.0
    %512 = vmatpush1.msra.mxu0 0.0
    %513 = vmatprep.subr.mxu0 0.0
    %514 = vmatpush1.msra.mxu0 0.0
    %515 = vmatprep.subr.mxu0 0.0
    %516 = vmatpush1.msra.mxu0 0.0
    %517 = vmatprep.subr.mxu0 0.0
    %518 = vmatpush1.msra.mxu0 0.0
    %519 = vmatprep.subr.mxu0 0.0
    %520 = vmatpush1.msra.mxu0 0.0
    %521 = vmatprep.subr.mxu0 0.0
    %522 = vmatpush1.msra.mxu0 0.0
    %523 = vmatprep.subr.mxu0 0.0
    %524 = vmatpush1.msra.mxu0 0.0
    %525 = vmatprep.subr.mxu0 0.0
    %526 = vmatpush1.msra.mxu0 0.0
    %527 = vmatprep.subr.mxu0 0.0
    %528 = vmatpush1.msra.mxu0 0.0
    %529 = vmatprep.subr.mxu0 0.0
    %530 = vmatpush1.msra.mxu0 0.0
    %531 = vmatprep.subr.mxu0 0.0
    %532 = vmatpush1.msra.mxu0 0.0
    %533 = vmatprep.subr.mxu0 0.0
    %534 = vmatpush1.msra.mxu0 0.0
    %535 = vmatprep.subr.mxu0 0.0
    %536 = vmatpush1.msra.mxu0 0.0
    %537 = vmatprep.subr.mxu0 %v338
    %538 = vmatpush1.msra.mxu0 %v337
    %539 = vmatprep.subr.mxu0 %v330
    %540 = vmatpush1.msra.mxu0 %v329
    %541 = vmatprep.subr.mxu0 %v322
    %542 = vmatpush1.msra.mxu0 %v321
    %543 = vmatprep.subr.mxu0 0.0
    %544 = vmatpush2.msra.mxu0 0.0
    %545 = vmatprep.subr.mxu0 0.0
    %546 = vmatpush2.msra.mxu0 0.0
    %547 = vmatprep.subr.mxu0 0.0
    %548 = vmatpush2.msra.mxu0 0.0
    %549 = vmatprep.subr.mxu0 0.0
    %550 = vmatpush2.msra.mxu0 0.0
    %551 = vmatprep.subr.mxu0 0.0
    %552 = vmatpush2.msra.mxu0 0.0
    %553 = vmatprep.subr.mxu0 0.0
    %554 = vmatpush2.msra.mxu0 0.0
    %555 = vmatprep.subr.mxu0 0.0
    %556 = vmatpush2.msra.mxu0 0.0
    %557 = vmatprep.subr.mxu0 0.0
    %558 = vmatpush2.msra.mxu0 0.0
    %559 = vmatprep.subr.mxu0 0.0
    %560 = vmatpush2.msra.mxu0 0.0
    %561 = vmatprep.subr.mxu0 0.0
    %562 = vmatpush2.msra.mxu0 0.0
    %563 = vmatprep.subr.mxu0 0.0
    %564 = vmatpush2.msra.mxu0 0.0
    %565 = vmatprep.subr.mxu0 0.0
    %566 = vmatpush2.msra.mxu0 0.0
    %567 = vmatprep.subr.mxu0 0.0
    %568 = vmatpush2.msra.mxu0 0.0
    %569 = vmatprep.subr.mxu0 0.0
    %570 = vmatpush2.msra.mxu0 0.0
    %571 = vmatprep.subr.mxu0 0.0
    %572 = vmatpush2.msra.mxu0 0.0
    %573 = vmatprep.subr.mxu0 0.0
    %574 = vmatpush2.msra.mxu0 0.0
    %575 = vmatprep.mubr.f32.mxu0 0.0
    %576 = vmatmul.mubr.f32.gmra.mxu0 %v367
    %v577 = vpop.f32.mrf.mxu0
    %v578 = vadd.f32 %v241, %v577
    %v579 = vpop.f32.mrf.mxu0
    %v580 = vadd.f32 %v241, %v579
    %581 = vdwg.mxu0
    %582 = vmatprep.subr.mxu0 0.0
    %583 = vmatpush1.msra.mxu0 0.0
    %584 = vmatprep.subr.mxu0 0.0
    %585 = vmatpush1.msra.mxu0 0.0
    %586 = vmatprep.subr.mxu0 0.0
    %587 = vmatpush1.msra.mxu0 0.0
    %588 = vmatprep.subr.mxu0 0.0
    %589 = vmatpush1.msra.mxu0 0.0
    %590 = vmatprep.subr.mxu0 0.0
    %591 = vmatpush1.msra.mxu0 0.0
    %592 = vmatprep.subr.mxu0 0.0
    %593 = vmatpush1.msra.mxu0 0.0
    %594 = vmatprep.subr.mxu0 0.0
    %595 = vmatpush1.msra.mxu0 0.0
    %596 = vmatprep.subr.mxu0 0.0
    %597 = vmatpush1.msra.mxu0 0.0
    %598 = vmatprep.subr.mxu0 0.0
    %599 = vmatpush1.msra.mxu0 0.0
    %600 = vmatprep.subr.mxu0 0.0
    %601 = vmatpush1.msra.mxu0 0.0
    %602 = vmatprep.subr.mxu0 0.0
    %603 = vmatpush1.msra.mxu0 0.0
    %604 = vmatprep.subr.mxu0 0.0
    %605 = vmatpush1.msra.mxu0 0.0
    %606 = vmatprep.subr.mxu0 0.0
    %607 = vmatpush1.msra.mxu0 0.0
    %608 = vmatprep.subr.mxu0 %v340
    %609 = vmatpush1.msra.mxu0 %v339
    %610 = vmatprep.subr.mxu0 %v332
    %611 = vmatpush1.msra.mxu0 %v331
    %612 = vmatprep.subr.mxu0 %v324
    %613 = vmatpush1.msra.mxu0 %v323
    %614 = vmatprep.subr.mxu0 0.0
    %615 = vmatpush2.msra.mxu0 0.0
    %616 = vmatprep.subr.mxu0 0.0
    %617 = vmatpush2.msra.mxu0 0.0
    %618 = vmatprep.subr.mxu0 0.0
    %619 = vmatpush2.msra.mxu0 0.0
    %620 = vmatprep.subr.mxu0 0.0
    %621 = vmatpush2.msra.mxu0 0.0
    %622 = vmatprep.subr.mxu0 0.0
    %623 = vmatpush2.msra.mxu0 0.0
    %624 = vmatprep.subr.mxu0 0.0
    %625 = vmatpush2.msra.mxu0 0.0
    %626 = vmatprep.subr.mxu0 0.0
    %627 = vmatpush2.msra.mxu0 0.0
    %628 = vmatprep.subr.mxu0 0.0
    %629 = vmatpush2.msra.mxu0 0.0
    %630 = vmatprep.subr.mxu0 0.0
    %631 = vmatpush2.msra.mxu0 0.0
    %632 = vmatprep.subr.mxu0 0.0
    %633 = vmatpush2.msra.mxu0 0.0
    %634 = vmatprep.subr.mxu0 0.0
    %635 = vmatpush2.msra.mxu0 0.0
    %636 = vmatprep.subr.mxu0 0.0
    %637 = vmatpush2.msra.mxu0 0.0
    %638 = vmatprep.subr.mxu0 0.0
    %639 = vmatpush2.msra.mxu0 0.0
    %640 = vmatprep.subr.mxu0 0.0
    %641 = vmatpush2.msra.mxu0 0.0
    %642 = vmatprep.subr.mxu0 0.0
    %643 = vmatpush2.msra.mxu0 0.0
    %644 = vmatprep.subr.mxu0 0.0
    %645 = vmatpush2.msra.mxu0 0.0
    %646 = vmatprep.mubr.f32.mxu0 0.0
    %647 = vmatmul.mubr.f32.gmra.mxu0 %v367
    %v648 = vpop.f32.mrf.mxu0
    %v649 = vadd.f32 %v241, %v648
    %v650 = vpop.f32.mrf.mxu0
    %v651 = vadd.f32 %v241, %v650
    %652 = vdwg.mxu0
    %vm653 = vcmp.gt.f32.partialorder %v436, 0.0
    %vm654 = vcmp.gt.f32.partialorder %v438, 0.0
    %v655 = vmul.f32 %v436, 0.01
    %v656 = vmul.f32 %v438, 0.01
    %v657 = vsel %vm653, %v436, %v655
    %v658 = vsel %vm654, %v438, %v656
    %659 = vst [vmem:[#allocation2 + $0x8] sm:$0xff] %v657
    %660 = vst [vmem:[#allocation2 + $0x10] sm:$0xff] %v658
    %vm661 = vcmp.gt.f32.partialorder %v507, 0.0
    %vm662 = vcmp.gt.f32.partialorder %v509, 0.0
    %v663 = vmul.f32 %v507, 0.01
    %v664 = vmul.f32 %v509, 0.01
    %v665 = vsel %vm661, %v507, %v663
    %v666 = vsel %vm662, %v509, %v664
    %667 = vst [vmem:[#allocation2 + $0x28] sm:$0xff] %v665
    %668 = vst [vmem:[#allocation2 + $0x30] sm:$0xff] %v666
    %vm669 = vcmp.gt.f32.partialorder %v578, 0.0
    %vm670 = vcmp.gt.f32.partialorder %v580, 0.0
    %v671 = vmul.f32 %v578, 0.01
    %v672 = vmul.f32 %v580, 0.01
    %v673 = vsel %vm669, %v578, %v671
    %v674 = vsel %vm670, %v580, %v672
    %675 = vst [vmem:[#allocation2 + $0x48] sm:$0xff] %v673
    %676 = vst [vmem:[#allocation2 + $0x50] sm:$0xff] %v674
    %vm677 = vcmp.gt.f32.partialorder %v649, 0.0
    %vm678 = vcmp.gt.f32.partialorder %v651, 0.0
    %v679 = vmul.f32 %v649, 0.01
    %v680 = vmul.f32 %v651, 0.01
    %v681 = vsel %vm677, %v649, %v679
    %v682 = vsel %vm678, %v651, %v680
    %683 = vst [vmem:[#allocation2 + $0x68] sm:$0xff] %v681
    %684 = vst [vmem:[#allocation2 + $0x70] sm:$0xff] %v682
    %s685 = scalar_lea.vmem %s1, 8
    %v686 = vld [vmem:[%s685] sm:$0xff]
    %s687 = scalar_lea.vmem %s2, 8
    %v688 = vld [vmem:[%s687] sm:$0xff]
    %v689 = vld [vmem:[#allocation2] sm:$0xff]
    %v690 = vld [vmem:[#allocation2 + $0x8] sm:$0xff]
    %v691 = vld [vmem:[#allocation2 + $0x10] sm:$0xff]
    %v692 = vld [vmem:[#allocation2 + $0x20] sm:$0xff]
    %v693 = vld [vmem:[#allocation2 + $0x28] sm:$0xff]
    %v694 = vld [vmem:[#allocation2 + $0x30] sm:$0xff]
    %v695 = vld [vmem:[#allocation2 + $0x40] sm:$0xff]
    %v696 = vld [vmem:[#allocation2 + $0x48] sm:$0xff]
    %v697 = vld [vmem:[#allocation2 + $0x50] sm:$0xff]
    %v698 = vld [vmem:[#allocation2 + $0x60] sm:$0xff]
    %v699 = vld [vmem:[#allocation2 + $0x68] sm:$0xff]
    %v700 = vld [vmem:[#allocation2 + $0x70] sm:$0xff]
    %v701 = vld [vmem:[#allocation2 + $0x18] sm:$0xff]
    %v702 = vld [vmem:[#allocation2 + $0x38] sm:$0xff]
    %v703 = vld [vmem:[#allocation2 + $0x58] sm:$0xff]
    %v704 = vld [vmem:[#allocation2 + $0x8] sm:$0xff]
    %v705 = vld [vmem:[#allocation2 + $0x10] sm:$0xff]
    %v706 = vld [vmem:[#allocation2 + $0x18] sm:$0xff]
    %v707 = vld [vmem:[#allocation2 + $0x20] sm:$0xff]
    %v708 = vld [vmem:[#allocation2 + $0x28] sm:$0xff]
    %v709 = vld [vmem:[#allocation2 + $0x30] sm:$0xff]
    %v710 = vld [vmem:[#allocation2 + $0x38] sm:$0xff]
    %v711 = vld [vmem:[#allocation2 + $0x40] sm:$0xff]
    %v712 = vld [vmem:[#allocation2 + $0x48] sm:$0xff]
    %v713 = vld [vmem:[#allocation2 + $0x50] sm:$0xff]
    %v714 = vld [vmem:[#allocation2 + $0x58] sm:$0xff]
    %v715 = vld [vmem:[#allocation2 + $0x60] sm:$0xff]
    %v716 = vld [vmem:[#allocation2 + $0x68] sm:$0xff]
    %v717 = vld [vmem:[#allocation2 + $0x70] sm:$0xff]
    %v718 = vld [vmem:[#allocation2 + $0x78] sm:$0xff]
    %733 = vrot.lane.b32.xlu0 %v690, 125
    %v734 = vpop.permute.xlu0 %733
    %735 = vrot.lane.b32.xlu0 %v691, 125
    %v736 = vpop.permute.xlu0 %735
    %737 = vrot.lane.b32.xlu0 %v701, 125
    %v738 = vpop.permute.xlu0 %737
    %739 = vrot.lane.b32.xlu0 %v692, 125
    %v740 = vpop.permute.xlu0 %739
    %741 = vrot.lane.b32.xlu0 %v693, 125
    %v742 = vpop.permute.xlu0 %741
    %743 = vrot.lane.b32.xlu0 %v694, 125
    %v744 = vpop.permute.xlu0 %743
    %745 = vrot.lane.b32.xlu0 %v702, 125
    %v746 = vpop.permute.xlu0 %745
    %747 = vrot.lane.b32.xlu0 %v695, 125
    %v748 = vpop.permute.xlu0 %747
    %749 = vrot.lane.b32.xlu0 %v696, 125
    %v750 = vpop.permute.xlu0 %749
    %751 = vrot.lane.b32.xlu0 %v697, 125
    %v752 = vpop.permute.xlu0 %751
    %753 = vrot.lane.b32.xlu0 %v703, 125
    %v754 = vpop.permute.xlu0 %753
    %755 = vrot.lane.b32.xlu0 %v698, 125
    %v756 = vpop.permute.xlu0 %755
    %757 = vrot.lane.b32.xlu0 %v699, 125
    %v758 = vpop.permute.xlu0 %757
    %759 = vrot.lane.b32.xlu0 %v700, 125
    %v760 = vpop.permute.xlu0 %759
    %vm761 = vcmask 1022976
    %v762 = vsel %vm761, %v734, %v736
    %v763 = vsel %vm761, %v736, %v738
    %v764 = vsel %vm761, %v740, %v742
    %v765 = vsel %vm761, %v742, %v744
    %v766 = vsel %vm761, %v744, %v746
    %v767 = vsel %vm761, %v748, %v750
    %v768 = vsel %vm761, %v750, %v752
    %v769 = vsel %vm761, %v752, %v754
    %v770 = vsel %vm761, %v756, %v758
    %v771 = vsel %vm761, %v758, %v760
    %787 = vrot.lane.b32.xlu0 %v704, 122
    %v788 = vpop.permute.xlu0 %787
    %789 = vrot.lane.b32.xlu0 %v705, 122
    %v790 = vpop.permute.xlu0 %789
    %791 = vrot.lane.b32.xlu0 %v706, 122
    %v792 = vpop.permute.xlu0 %791
    %793 = vrot.lane.b32.xlu0 %v707, 122
    %v794 = vpop.permute.xlu0 %793
    %795 = vrot.lane.b32.xlu0 %v708, 122
    %v796 = vpop.permute.xlu0 %795
    %797 = vrot.lane.b32.xlu0 %v709, 122
    %v798 = vpop.permute.xlu0 %797
    %799 = vrot.lane.b32.xlu0 %v710, 122
    %v800 = vpop.permute.xlu0 %799
    %801 = vrot.lane.b32.xlu0 %v711, 122
    %v802 = vpop.permute.xlu0 %801
    %803 = vrot.lane.b32.xlu0 %v712, 122
    %v804 = vpop.permute.xlu0 %803
    %805 = vrot.lane.b32.xlu0 %v713, 122
    %v806 = vpop.permute.xlu0 %805
    %807 = vrot.lane.b32.xlu0 %v714, 122
    %v808 = vpop.permute.xlu0 %807
    %809 = vrot.lane.b32.xlu0 %v715, 122
    %v810 = vpop.permute.xlu0 %809
    %811 = vrot.lane.b32.xlu0 %v716, 122
    %v812 = vpop.permute.xlu0 %811
    %813 = vrot.lane.b32.xlu0 %v717, 122
    %v814 = vpop.permute.xlu0 %813
    %815 = vrot.lane.b32.xlu0 %v718, 122
    %v816 = vpop.permute.xlu0 %815
    %vm817 = vcmask 998400
    %v818 = vsel %vm817, %v788, %v790
    %v819 = vsel %vm817, %v790, %v792
    %v820 = vsel %vm817, %v794, %v796
    %v821 = vsel %vm817, %v796, %v798
    %v822 = vsel %vm817, %v798, %v800
    %v823 = vsel %vm817, %v802, %v804
    %v824 = vsel %vm817, %v804, %v806
    %v825 = vsel %vm817, %v806, %v808
    %v826 = vsel %vm817, %v810, %v812
    %v827 = vsel %vm817, %v812, %v814
    %v828 = vsel %vm817, %v814, %v816
    %830 = vset.pattern.permute.xlu0 0
    %831 = vperm.xlu0 %830, %v688
    %v832 = vpop.permute.xlu0 %831
    %835 = vrot.lane.b32.xlu0 %v689, 3
    %v836 = vpop.permute.xlu0 %835
    %837 = vrot.lane.b32.xlu0 %v690, 3
    %v838 = vpop.permute.xlu0 %837
    %839 = vrot.lane.b32.xlu0 %v691, 3
    %v840 = vpop.permute.xlu0 %839
    %841 = vrot.lane.b32.xlu0 %v692, 3
    %v842 = vpop.permute.xlu0 %841
    %843 = vrot.lane.b32.xlu0 %v693, 3
    %v844 = vpop.permute.xlu0 %843
    %845 = vrot.lane.b32.xlu0 %v694, 3
    %v846 = vpop.permute.xlu0 %845
    %847 = vrot.lane.b32.xlu0 %v695, 3
    %v848 = vpop.permute.xlu0 %847
    %849 = vrot.lane.b32.xlu0 %v696, 3
    %v850 = vpop.permute.xlu0 %849
    %851 = vrot.lane.b32.xlu0 %v697, 3
    %v852 = vpop.permute.xlu0 %851
    %853 = vrot.lane.b32.xlu0 %v698, 3
    %v854 = vpop.permute.xlu0 %853
    %855 = vrot.lane.b32.xlu0 %v699, 3
    %v856 = vpop.permute.xlu0 %855
    %857 = vrot.lane.b32.xlu0 %v700, 3
    %v858 = vpop.permute.xlu0 %857
    %859 = vrot.lane.b32.xlu0 %v734, 3
    %v860 = vpop.permute.xlu0 %859
    %861 = vrot.lane.b32.xlu0 %v762, 3
    %v862 = vpop.permute.xlu0 %861
    %863 = vrot.lane.b32.xlu0 %v763, 3
    %v864 = vpop.permute.xlu0 %863
    %865 = vrot.lane.b32.xlu0 %v764, 3
    %v866 = vpop.permute.xlu0 %865
    %867 = vrot.lane.b32.xlu0 %v765, 3
    %v868 = vpop.permute.xlu0 %867
    %869 = vrot.lane.b32.xlu0 %v766, 3
    %v870 = vpop.permute.xlu0 %869
    %871 = vrot.lane.b32.xlu0 %v767, 3
    %v872 = vpop.permute.xlu0 %871
    %873 = vrot.lane.b32.xlu0 %v768, 3
    %v874 = vpop.permute.xlu0 %873
    %875 = vrot.lane.b32.xlu0 %v769, 3
    %v876 = vpop.permute.xlu0 %875
    %877 = vrot.lane.b32.xlu0 %v770, 3
    %v878 = vpop.permute.xlu0 %877
    %879 = vrot.lane.b32.xlu0 %v771, 3
    %v880 = vpop.permute.xlu0 %879
    %881 = vrot.lane.b32.xlu0 %v760, 3
    %v882 = vpop.permute.xlu0 %881
    %883 = vrot.lane.b32.xlu0 %v788, 3
    %v884 = vpop.permute.xlu0 %883
    %885 = vrot.lane.b32.xlu0 %v818, 3
    %v886 = vpop.permute.xlu0 %885
    %887 = vrot.lane.b32.xlu0 %v819, 3
    %v888 = vpop.permute.xlu0 %887
    %889 = vrot.lane.b32.xlu0 %v820, 3
    %v890 = vpop.permute.xlu0 %889
    %891 = vrot.lane.b32.xlu0 %v821, 3
    %v892 = vpop.permute.xlu0 %891
    %893 = vrot.lane.b32.xlu0 %v822, 3
    %v894 = vpop.permute.xlu0 %893
    %895 = vrot.lane.b32.xlu0 %v823, 3
    %v896 = vpop.permute.xlu0 %895
    %897 = vrot.lane.b32.xlu0 %v824, 3
    %v898 = vpop.permute.xlu0 %897
    %899 = vrot.lane.b32.xlu0 %v825, 3
    %v900 = vpop.permute.xlu0 %899
    %901 = vrot.lane.b32.xlu0 %v826, 3
    %v902 = vpop.permute.xlu0 %901
    %903 = vrot.lane.b32.xlu0 %v827, 3
    %v904 = vpop.permute.xlu0 %903
    %905 = vrot.lane.b32.xlu0 %v828, 3
    %v906 = vpop.permute.xlu0 %905
    %vm907 = vcmask 23552
    %v908 = vsel %vm907, %v836, %v838
    %v909 = vsel %vm907, %v838, %v840
    %v910 = vsel %vm907, %v842, %v844
    %v911 = vsel %vm907, %v844, %v846
    %v912 = vsel %vm907, %v848, %v850
    %v913 = vsel %vm907, %v850, %v852
    %v914 = vsel %vm907, %v854, %v856
    %v915 = vsel %vm907, %v856, %v858
    %v916 = vsel %vm907, %v860, %v862
    %v917 = vsel %vm907, %v862, %v864
    %v918 = vsel %vm907, %v866, %v868
    %v919 = vsel %vm907, %v868, %v870
    %v920 = vsel %vm907, %v872, %v874
    %v921 = vsel %vm907, %v874, %v876
    %v922 = vsel %vm907, %v878, %v880
    %v923 = vsel %vm907, %v880, %v882
    %v924 = vsel %vm907, %v884, %v886
    %v925 = vsel %vm907, %v886, %v888
    %v926 = vsel %vm907, %v890, %v892
    %v927 = vsel %vm907, %v892, %v894
    %v928 = vsel %vm907, %v896, %v898
    %v929 = vsel %vm907, %v898, %v900
    %v930 = vsel %vm907, %v902, %v904
    %v931 = vsel %vm907, %v904, %v906
    %v957 = vsel %vm365, %v686, 0
    %959 = vmatprep.subr.mxu0 0.0
    %960 = vmatpush1.msra.mxu0 0.0
    %961 = vmatprep.subr.mxu0 0.0
    %962 = vmatpush1.msra.mxu0 0.0
    %963 = vmatprep.subr.mxu0 0.0
    %964 = vmatpush1.msra.mxu0 0.0
    %965 = vmatprep.subr.mxu0 0.0
    %966 = vmatpush1.msra.mxu0 0.0
    %967 = vmatprep.subr.mxu0 0.0
    %968 = vmatpush1.msra.mxu0 0.0
    %969 = vmatprep.subr.mxu0 0.0
    %970 = vmatpush1.msra.mxu0 0.0
    %971 = vmatprep.subr.mxu0 0.0
    %972 = vmatpush1.msra.mxu0 0.0
    %973 = vmatprep.subr.mxu0 0.0
    %974 = vmatpush1.msra.mxu0 0.0
    %975 = vmatprep.subr.mxu0 0.0
    %976 = vmatpush1.msra.mxu0 0.0
    %977 = vmatprep.subr.mxu0 0.0
    %978 = vmatpush1.msra.mxu0 0.0
    %979 = vmatprep.subr.mxu0 0.0
    %980 = vmatpush1.msra.mxu0 0.0
    %981 = vmatprep.subr.mxu0 0.0
    %982 = vmatpush1.msra.mxu0 0.0
    %983 = vmatprep.subr.mxu0 0.0
    %984 = vmatpush1.msra.mxu0 0.0
    %985 = vmatprep.subr.mxu0 %v925
    %986 = vmatpush1.msra.mxu0 %v924
    %987 = vmatprep.subr.mxu0 %v917
    %988 = vmatpush1.msra.mxu0 %v916
    %989 = vmatprep.subr.mxu0 %v909
    %990 = vmatpush1.msra.mxu0 %v908
    %991 = vmatprep.subr.mxu0 0.0
    %992 = vmatpush2.msra.mxu0 0.0
    %993 = vmatprep.subr.mxu0 0.0
    %994 = vmatpush2.msra.mxu0 0.0
    %995 = vmatprep.subr.mxu0 0.0
    %996 = vmatpush2.msra.mxu0 0.0
    %997 = vmatprep.subr.mxu0 0.0
    %998 = vmatpush2.msra.mxu0 0.0
    %999 = vmatprep.subr.mxu0 0.0
    %1000 = vmatpush2.msra.mxu0 0.0
    %1001 = vmatprep.subr.mxu0 0.0
    %1002 = vmatpush2.msra.mxu0 0.0
    %1003 = vmatprep.subr.mxu0 0.0
    %1004 = vmatpush2.msra.mxu0 0.0
    %1005 = vmatprep.subr.mxu0 0.0
    %1006 = vmatpush2.msra.mxu0 0.0
    %1007 = vmatprep.subr.mxu0 0.0
    %1008 = vmatpush2.msra.mxu0 0.0
    %1009 = vmatprep.subr.mxu0 0.0
    %1010 = vmatpush2.msra.mxu0 0.0
    %1011 = vmatprep.subr.mxu0 0.0
    %1012 = vmatpush2.msra.mxu0 0.0
    %1013 = vmatprep.subr.mxu0 0.0
    %1014 = vmatpush2.msra.mxu0 0.0
    %1015 = vmatprep.subr.mxu0 0.0
    %1016 = vmatpush2.msra.mxu0 0.0
    %1017 = vmatprep.subr.mxu0 0.0
    %1018 = vmatpush2.msra.mxu0 0.0
    %1019 = vmatprep.subr.mxu0 0.0
    %1020 = vmatpush2.msra.mxu0 0.0
    %1021 = vmatprep.subr.mxu0 0.0
    %1022 = vmatpush2.msra.mxu0 0.0
    %1023 = vmatprep.mubr.f32.mxu0 0.0
    %1024 = vmatmul.mubr.f32.gmra.mxu0 %v957
    %v1025 = vpop.f32.mrf.mxu0
    %v1026 = vadd.f32 %v832, %v1025
    %v1027 = vpop.f32.mrf.mxu0
    %v1028 = vadd.f32 %v832, %v1027
    %1029 = vdwg.mxu0
    %1030 = vmatprep.subr.mxu0 0.0
    %1031 = vmatpush1.msra.mxu0 0.0
    %1032 = vmatprep.subr.mxu0 0.0
    %1033 = vmatpush1.msra.mxu0 0.0
    %1034 = vmatprep.subr.mxu0 0.0
    %1035 = vmatpush1.msra.mxu0 0.0
    %1036 = vmatprep.subr.mxu0 0.0
    %1037 = vmatpush1.msra.mxu0 0.0
    %1038 = vmatprep.subr.mxu0 0.0
    %1039 = vmatpush1.msra.mxu0 0.0
    %1040 = vmatprep.subr.mxu0 0.0
    %1041 = vmatpush1.msra.mxu0 0.0
    %1042 = vmatprep.subr.mxu0 0.0
    %1043 = vmatpush1.msra.mxu0 0.0
    %1044 = vmatprep.subr.mxu0 0.0
    %1045 = vmatpush1.msra.mxu0 0.0
    %1046 = vmatprep.subr.mxu0 0.0
    %1047 = vmatpush1.msra.mxu0 0.0
    %1048 = vmatprep.subr.mxu0 0.0
    %1049 = vmatpush1.msra.mxu0 0.0
    %1050 = vmatprep.subr.mxu0 0.0
    %1051 = vmatpush1.msra.mxu0 0.0
    %1052 = vmatprep.subr.mxu0 0.0
    %1053 = vmatpush1.msra.mxu0 0.0
    %1054 = vmatprep.subr.mxu0 0.0
    %1055 = vmatpush1.msra.mxu0 0.0
    %1056 = vmatprep.subr.mxu0 %v927
    %1057 = vmatpush1.msra.mxu0 %v926
    %1058 = vmatprep.subr.mxu0 %v919
    %1059 = vmatpush1.msra.mxu0 %v918
    %1060 = vmatprep.subr.mxu0 %v911
    %1061 = vmatpush1.msra.mxu0 %v910
    %1062 = vmatprep.subr.mxu0 0.0
    %1063 = vmatpush2.msra.mxu0 0.0
    %1064 = vmatprep.subr.mxu0 0.0
    %1065 = vmatpush2.msra.mxu0 0.0
    %1066 = vmatprep.subr.mxu0 0.0
    %1067 = vmatpush2.msra.mxu0 0.0
    %1068 = vmatprep.subr.mxu0 0.0
    %1069 = vmatpush2.msra.mxu0 0.0
    %1070 = vmatprep.subr.mxu0 0.0
    %1071 = vmatpush2.msra.mxu0 0.0
    %1072 = vmatprep.subr.mxu0 0.0
    %1073 = vmatpush2.msra.mxu0 0.0
    %1074 = vmatprep.subr.mxu0 0.0
    %1075 = vmatpush2.msra.mxu0 0.0
    %1076 = vmatprep.subr.mxu0 0.0
    %1077 = vmatpush2.msra.mxu0 0.0
    %1078 = vmatprep.subr.mxu0 0.0
    %1079 = vmatpush2.msra.mxu0 0.0
    %1080 = vmatprep.subr.mxu0 0.0
    %1081 = vmatpush2.msra.mxu0 0.0
    %1082 = vmatprep.subr.mxu0 0.0
    %1083 = vmatpush2.msra.mxu0 0.0
    %1084 = vmatprep.subr.mxu0 0.0
    %1085 = vmatpush2.msra.mxu0 0.0
    %1086 = vmatprep.subr.mxu0 0.0
    %1087 = vmatpush2.msra.mxu0 0.0
    %1088 = vmatprep.subr.mxu0 0.0
    %1089 = vmatpush2.msra.mxu0 0.0
    %1090 = vmatprep.subr.mxu0 0.0
    %1091 = vmatpush2.msra.mxu0 0.0
    %1092 = vmatprep.subr.mxu0 0.0
    %1093 = vmatpush2.msra.mxu0 0.0
    %1094 = vmatprep.mubr.f32.mxu0 0.0
    %1095 = vmatmul.mubr.f32.gmra.mxu0 %v957
    %v1096 = vpop.f32.mrf.mxu0
    %v1097 = vadd.f32 %v832, %v1096
    %v1098 = vpop.f32.mrf.mxu0
    %v1099 = vadd.f32 %v832, %v1098
    %1100 = vdwg.mxu0
    %1101 = vmatprep.subr.mxu0 0.0
    %1102 = vmatpush1.msra.mxu0 0.0
    %1103 = vmatprep.subr.mxu0 0.0
    %1104 = vmatpush1.msra.mxu0 0.0
    %1105 = vmatprep.subr.mxu0 0.0
    %1106 = vmatpush1.msra.mxu0 0.0
    %1107 = vmatprep.subr.mxu0 0.0
    %1108 = vmatpush1.msra.mxu0 0.0
    %1109 = vmatprep.subr.mxu0 0.0
    %1110 = vmatpush1.msra.mxu0 0.0
    %1111 = vmatprep.subr.mxu0 0.0
    %1112 = vmatpush1.msra.mxu0 0.0
    %1113 = vmatprep.subr.mxu0 0.0
    %1114 = vmatpush1.msra.mxu0 0.0
    %1115 = vmatprep.subr.mxu0 0.0
    %1116 = vmatpush1.msra.mxu0 0.0
    %1117 = vmatprep.subr.mxu0 0.0
    %1118 = vmatpush1.msra.mxu0 0.0
    %1119 = vmatprep.subr.mxu0 0.0
    %1120 = vmatpush1.msra.mxu0 0.0
    %1121 = vmatprep.subr.mxu0 0.0
    %1122 = vmatpush1.msra.mxu0 0.0
    %1123 = vmatprep.subr.mxu0 0.0
    %1124 = vmatpush1.msra.mxu0 0.0
    %1125 = vmatprep.subr.mxu0 0.0
    %1126 = vmatpush1.msra.mxu0 0.0
    %1127 = vmatprep.subr.mxu0 %v929
    %1128 = vmatpush1.msra.mxu0 %v928
    %1129 = vmatprep.subr.mxu0 %v921
    %1130 = vmatpush1.msra.mxu0 %v920
    %1131 = vmatprep.subr.mxu0 %v913
    %1132 = vmatpush1.msra.mxu0 %v912
    %1133 = vmatprep.subr.mxu0 0.0
    %1134 = vmatpush2.msra.mxu0 0.0
    %1135 = vmatprep.subr.mxu0 0.0
    %1136 = vmatpush2.msra.mxu0 0.0
    %1137 = vmatprep.subr.mxu0 0.0
    %1138 = vmatpush2.msra.mxu0 0.0
    %1139 = vmatprep.subr.mxu0 0.0
    %1140 = vmatpush2.msra.mxu0 0.0
    %1141 = vmatprep.subr.mxu0 0.0
    %1142 = vmatpush2.msra.mxu0 0.0
    %1143 = vmatprep.subr.mxu0 0.0
    %1144 = vmatpush2.msra.mxu0 0.0
    %1145 = vmatprep.subr.mxu0 0.0
    %1146 = vmatpush2.msra.mxu0 0.0
    %1147 = vmatprep.subr.mxu0 0.0
    %1148 = vmatpush2.msra.mxu0 0.0
    %1149 = vmatprep.subr.mxu0 0.0
    %1150 = vmatpush2.msra.mxu0 0.0
    %1151 = vmatprep.subr.mxu0 0.0
    %1152 = vmatpush2.msra.mxu0 0.0
    %1153 = vmatprep.subr.mxu0 0.0
    %1154 = vmatpush2.msra.mxu0 0.0
    %1155 = vmatprep.subr.mxu0 0.0
    %1156 = vmatpush2.msra.mxu0 0.0
    %1157 = vmatprep.subr.mxu0 0.0
    %1158 = vmatpush2.msra.mxu0 0.0
    %1159 = vmatprep.subr.mxu0 0.0
    %1160 = vmatpush2.msra.mxu0 0.0
    %1161 = vmatprep.subr.mxu0 0.0
    %1162 = vmatpush2.msra.mxu0 0.0
    %1163 = vmatprep.subr.mxu0 0.0
    %1164 = vmatpush2.msra.mxu0 0.0
    %1165 = vmatprep.mubr.f32.mxu0 0.0
    %1166 = vmatmul.mubr.f32.gmra.mxu0 %v957
    %v1167 = vpop.f32.mrf.mxu0
    %v1168 = vadd.f32 %v832, %v1167
    %v1169 = vpop.f32.mrf.mxu0
    %v1170 = vadd.f32 %v832, %v1169
    %1171 = vdwg.mxu0
    %1172 = vmatprep.subr.mxu0 0.0
    %1173 = vmatpush1.msra.mxu0 0.0
    %1174 = vmatprep.subr.mxu0 0.0
    %1175 = vmatpush1.msra.mxu0 0.0
    %1176 = vmatprep.subr.mxu0 0.0
    %1177 = vmatpush1.msra.mxu0 0.0
    %1178 = vmatprep.subr.mxu0 0.0
    %1179 = vmatpush1.msra.mxu0 0.0
    %1180 = vmatprep.subr.mxu0 0.0
    %1181 = vmatpush1.msra.mxu0 0.0
    %1182 = vmatprep.subr.mxu0 0.0
    %1183 = vmatpush1.msra.mxu0 0.0
    %1184 = vmatprep.subr.mxu0 0.0
    %1185 = vmatpush1.msra.mxu0 0.0
    %1186 = vmatprep.subr.mxu0 0.0
    %1187 = vmatpush1.msra.mxu0 0.0
    %1188 = vmatprep.subr.mxu0 0.0
    %1189 = vmatpush1.msra.mxu0 0.0
    %1190 = vmatprep.subr.mxu0 0.0
    %1191 = vmatpush1.msra.mxu0 0.0
    %1192 = vmatprep.subr.mxu0 0.0
    %1193 = vmatpush1.msra.mxu0 0.0
    %1194 = vmatprep.subr.mxu0 0.0
    %1195 = vmatpush1.msra.mxu0 0.0
    %1196 = vmatprep.subr.mxu0 0.0
    %1197 = vmatpush1.msra.mxu0 0.0
    %1198 = vmatprep.subr.mxu0 %v931
    %1199 = vmatpush1.msra.mxu0 %v930
    %1200 = vmatprep.subr.mxu0 %v923
    %1201 = vmatpush1.msra.mxu0 %v922
    %1202 = vmatprep.subr.mxu0 %v915
    %1203 = vmatpush1.msra.mxu0 %v914
    %1204 = vmatprep.subr.mxu0 0.0
    %1205 = vmatpush2.msra.mxu0 0.0
    %1206 = vmatprep.subr.mxu0 0.0
    %1207 = vmatpush2.msra.mxu0 0.0
    %1208 = vmatprep.subr.mxu0 0.0
    %1209 = vmatpush2.msra.mxu0 0.0
    %1210 = vmatprep.subr.mxu0 0.0
    %1211 = vmatpush2.msra.mxu0 0.0
    %1212 = vmatprep.subr.mxu0 0.0
    %1213 = vmatpush2.msra.mxu0 0.0
    %1214 = vmatprep.subr.mxu0 0.0
    %1215 = vmatpush2.msra.mxu0 0.0
    %1216 = vmatprep.subr.mxu0 0.0
    %1217 = vmatpush2.msra.mxu0 0.0
    %1218 = vmatprep.subr.mxu0 0.0
    %1219 = vmatpush2.msra.mxu0 0.0
    %1220 = vmatprep.subr.mxu0 0.0
    %1221 = vmatpush2.msra.mxu0 0.0
    %1222 = vmatprep.subr.mxu0 0.0
    %1223 = vmatpush2.msra.mxu0 0.0
    %1224 = vmatprep.subr.mxu0 0.0
    %1225 = vmatpush2.msra.mxu0 0.0
    %1226 = vmatprep.subr.mxu0 0.0
    %1227 = vmatpush2.msra.mxu0 0.0
    %1228 = vmatprep.subr.mxu0 0.0
    %1229 = vmatpush2.msra.mxu0 0.0
    %1230 = vmatprep.subr.mxu0 0.0
    %1231 = vmatpush2.msra.mxu0 0.0
    %1232 = vmatprep.subr.mxu0 0.0
    %1233 = vmatpush2.msra.mxu0 0.0
    %1234 = vmatprep.subr.mxu0 0.0
    %1235 = vmatpush2.msra.mxu0 0.0
    %1236 = vmatprep.mubr.f32.mxu0 0.0
    %1237 = vmatmul.mubr.f32.gmra.mxu0 %v957
    %v1238 = vpop.f32.mrf.mxu0
    %v1239 = vadd.f32 %v832, %v1238
    %v1240 = vpop.f32.mrf.mxu0
    %v1241 = vadd.f32 %v832, %v1240
    %1242 = vdwg.mxu0
    %v1243 = vld [vmem:[#allocation6] sm:$0xff]
    %v1244 = vld [vmem:[#allocation6 + $0x8] sm:$0xff]
    %v1245 = vadd.f32 %v1243, %v1026
    %v1246 = vadd.f32 %v1244, %v1028
    %1247 = vst [vmem:[#allocation6] sm:$0xff] %v1245
    %1248 = vst [vmem:[#allocation6 + $0x8] sm:$0xff] %v1246
    %v1249 = vld [vmem:[%s63] sm:$0xff]
    %v1250 = vld [vmem:[%s63 + $0x8] sm:$0xff]
    %v1251 = vadd.f32 %v1249, %v1097
    %v1252 = vadd.f32 %v1250, %v1099
    %1253 = vst [vmem:[%s63] sm:$0xff] %v1251
    %1254 = vst [vmem:[%s63 + $0x8] sm:$0xff] %v1252
    %v1255 = vld [vmem:[%s74] sm:$0xff]
    %v1256 = vld [vmem:[%s74 + $0x8] sm:$0xff]
    %v1257 = vadd.f32 %v1255, %v1168
    %v1258 = vadd.f32 %v1256, %v1170
    %1259 = vst [vmem:[%s74] sm:$0xff] %v1257
    %1260 = vst [vmem:[%s74 + $0x8] sm:$0xff] %v1258
    %v1261 = vld [vmem:[%s85] sm:$0xff]
    %v1262 = vld [vmem:[%s85 + $0x8] sm:$0xff]
    %v1263 = vadd.f32 %v1261, %v1239
    %v1264 = vadd.f32 %v1262, %v1241
    %1265 = vst [vmem:[%s85] sm:$0xff] %v1263
    %1266 = vst [vmem:[%s85 + $0x8] sm:$0xff] %v1264
    %v1267 = vld [vmem:[#allocation6] sm:$0xff]
    %v1268 = vld [vmem:[#allocation6 + $0x8] sm:$0xff]
    %vm1269 = vcmp.gt.f32.partialorder %v1267, 0.0
    %vm1270 = vcmp.gt.f32.partialorder %v1268, 0.0
    %v1271 = vmul.f32 %v1267, 0.01
    %v1272 = vmul.f32 %v1268, 0.01
    %v1273 = vsel %vm1269, %v1267, %v1271
    %v1274 = vsel %vm1270, %v1268, %v1272
    %1275 = vst [vmem:[#allocation2 + $0x8] sm:$0xff] %v1273
    %1276 = vst [vmem:[#allocation2 + $0x10] sm:$0xff] %v1274
    %v1277 = vld [vmem:[%s63] sm:$0xff]
    %v1278 = vld [vmem:[%s63 + $0x8] sm:$0xff]
    %vm1279 = vcmp.gt.f32.partialorder %v1277, 0.0
    %vm1280 = vcmp.gt.f32.partialorder %v1278, 0.0
    %v1281 = vmul.f32 %v1277, 0.01
    %v1282 = vmul.f32 %v1278, 0.01
    %v1283 = vsel %vm1279, %v1277, %v1281
    %v1284 = vsel %vm1280, %v1278, %v1282
    %1285 = vst [vmem:[#allocation2 + $0x28] sm:$0xff] %v1283
    %1286 = vst [vmem:[#allocation2 + $0x30] sm:$0xff] %v1284
    %v1287 = vld [vmem:[%s74] sm:$0xff]
    %v1288 = vld [vmem:[%s74 + $0x8] sm:$0xff]
    %vm1289 = vcmp.gt.f32.partialorder %v1287, 0.0
    %vm1290 = vcmp.gt.f32.partialorder %v1288, 0.0
    %v1291 = vmul.f32 %v1287, 0.01
    %v1292 = vmul.f32 %v1288, 0.01
    %v1293 = vsel %vm1289, %v1287, %v1291
    %v1294 = vsel %vm1290, %v1288, %v1292
    %1295 = vst [vmem:[#allocation2 + $0x48] sm:$0xff] %v1293
    %1296 = vst [vmem:[#allocation2 + $0x50] sm:$0xff] %v1294
    %v1297 = vld [vmem:[%s85] sm:$0xff]
    %v1298 = vld [vmem:[%s85 + $0x8] sm:$0xff]
    %vm1299 = vcmp.gt.f32.partialorder %v1297, 0.0
    %vm1300 = vcmp.gt.f32.partialorder %v1298, 0.0
    %v1301 = vmul.f32 %v1297, 0.01
    %v1302 = vmul.f32 %v1298, 0.01
    %v1303 = vsel %vm1299, %v1297, %v1301
    %v1304 = vsel %vm1300, %v1298, %v1302
    %1305 = vst [vmem:[#allocation2 + $0x68] sm:$0xff] %v1303
    %1306 = vst [vmem:[#allocation2 + $0x70] sm:$0xff] %v1304
    %s1307 = scalar_lea.vmem %s1, 16
    %v1308 = vld [vmem:[%s1307] sm:$0xff]
    %s1309 = scalar_lea.vmem %s2, 16
    %v1310 = vld [vmem:[%s1309] sm:$0xff]
    %v1311 = vld [vmem:[#allocation2] sm:$0xff]
    %v1312 = vld [vmem:[#allocation2 + $0x8] sm:$0xff]
    %v1313 = vld [vmem:[#allocation2 + $0x10] sm:$0xff]
    %v1314 = vld [vmem:[#allocation2 + $0x20] sm:$0xff]
    %v1315 = vld [vmem:[#allocation2 + $0x28] sm:$0xff]
    %v1316 = vld [vmem:[#allocation2 + $0x30] sm:$0xff]
    %v1317 = vld [vmem:[#allocation2 + $0x40] sm:$0xff]
    %v1318 = vld [vmem:[#allocation2 + $0x48] sm:$0xff]
    %v1319 = vld [vmem:[#allocation2 + $0x50] sm:$0xff]
    %v1320 = vld [vmem:[#allocation2 + $0x60] sm:$0xff]
    %v1321 = vld [vmem:[#allocation2 + $0x68] sm:$0xff]
    %v1322 = vld [vmem:[#allocation2 + $0x70] sm:$0xff]
    %v1323 = vld [vmem:[#allocation2 + $0x18] sm:$0xff]
    %v1324 = vld [vmem:[#allocation2 + $0x38] sm:$0xff]
    %v1325 = vld [vmem:[#allocation2 + $0x58] sm:$0xff]
    %v1326 = vld [vmem:[#allocation2 + $0x8] sm:$0xff]
    %v1327 = vld [vmem:[#allocation2 + $0x10] sm:$0xff]
    %v1328 = vld [vmem:[#allocation2 + $0x18] sm:$0xff]
    %v1329 = vld [vmem:[#allocation2 + $0x20] sm:$0xff]
    %v1330 = vld [vmem:[#allocation2 + $0x28] sm:$0xff]
    %v1331 = vld [vmem:[#allocation2 + $0x30] sm:$0xff]
    %v1332 = vld [vmem:[#allocation2 + $0x38] sm:$0xff]
    %v1333 = vld [vmem:[#allocation2 + $0x40] sm:$0xff]
    %v1334 = vld [vmem:[#allocation2 + $0x48] sm:$0xff]
    %v1335 = vld [vmem:[#allocation2 + $0x50] sm:$0xff]
    %v1336 = vld [vmem:[#allocation2 + $0x58] sm:$0xff]
    %v1337 = vld [vmem:[#allocation2 + $0x60] sm:$0xff]
    %v1338 = vld [vmem:[#allocation2 + $0x68] sm:$0xff]
    %v1339 = vld [vmem:[#allocation2 + $0x70] sm:$0xff]
    %v1340 = vld [vmem:[#allocation2 + $0x78] sm:$0xff]
    %1355 = vrot.lane.b32.xlu0 %v1312, 126
    %v1356 = vpop.permute.xlu0 %1355
    %1357 = vrot.lane.b32.xlu0 %v1313, 126
    %v1358 = vpop.permute.xlu0 %1357
    %1359 = vrot.lane.b32.xlu0 %v1323, 126
    %v1360 = vpop.permute.xlu0 %1359
    %1361 = vrot.lane.b32.xlu0 %v1314, 126
    %v1362 = vpop.permute.xlu0 %1361
    %1363 = vrot.lane.b32.xlu0 %v1315, 126
    %v1364 = vpop.permute.xlu0 %1363
    %1365 = vrot.lane.b32.xlu0 %v1316, 126
    %v1366 = vpop.permute.xlu0 %1365
    %1367 = vrot.lane.b32.xlu0 %v1324, 126
    %v1368 = vpop.permute.xlu0 %1367
    %1369 = vrot.lane.b32.xlu0 %v1317, 126
    %v1370 = vpop.permute.xlu0 %1369
    %1371 = vrot.lane.b32.xlu0 %v1318, 126
    %v1372 = vpop.permute.xlu0 %1371
    %1373 = vrot.lane.b32.xlu0 %v1319, 126
    %v1374 = vpop.permute.xlu0 %1373
    %1375 = vrot.lane.b32.xlu0 %v1325, 126
    %v1376 = vpop.permute.xlu0 %1375
    %1377 = vrot.lane.b32.xlu0 %v1320, 126
    %v1378 = vpop.permute.xlu0 %1377
    %1379 = vrot.lane.b32.xlu0 %v1321, 126
    %v1380 = vpop.permute.xlu0 %1379
    %1381 = vrot.lane.b32.xlu0 %v1322, 126
    %v1382 = vpop.permute.xlu0 %1381
    %v1383 = vsel %vm226, %v1356, %v1358
    %v1384 = vsel %vm226, %v1358, %v1360
    %v1385 = vsel %vm226, %v1362, %v1364
    %v1386 = vsel %vm226, %v1364, %v1366
    %v1387 = vsel %vm226, %v1366, %v1368
    %v1388 = vsel %vm226, %v1370, %v1372
    %v1389 = vsel %vm226, %v1372, %v1374
    %v1390 = vsel %vm226, %v1374, %v1376
    %v1391 = vsel %vm226, %v1378, %v1380
    %v1392 = vsel %vm226, %v1380, %v1382
    %1408 = vrot.lane.b32.xlu0 %v1326, 124
    %v1409 = vpop.permute.xlu0 %1408
    %1410 = vrot.lane.b32.xlu0 %v1327, 124
    %v1411 = vpop.permute.xlu0 %1410
    %1412 = vrot.lane.b32.xlu0 %v1328, 124
    %v1413 = vpop.permute.xlu0 %1412
    %1414 = vrot.lane.b32.xlu0 %v1329, 124
    %v1415 = vpop.permute.xlu0 %1414
    %1416 = vrot.lane.b32.xlu0 %v1330, 124
    %v1417 = vpop.permute.xlu0 %1416
    %1418 = vrot.lane.b32.xlu0 %v1331, 124
    %v1419 = vpop.permute.xlu0 %1418
    %1420 = vrot.lane.b32.xlu0 %v1332, 124
    %v1421 = vpop.permute.xlu0 %1420
    %1422 = vrot.lane.b32.xlu0 %v1333, 124
    %v1423 = vpop.permute.xlu0 %1422
    %1424 = vrot.lane.b32.xlu0 %v1334, 124
    %v1425 = vpop.permute.xlu0 %1424
    %1426 = vrot.lane.b32.xlu0 %v1335, 124
    %v1427 = vpop.permute.xlu0 %1426
    %1428 = vrot.lane.b32.xlu0 %v1336, 124
    %v1429 = vpop.permute.xlu0 %1428
    %1430 = vrot.lane.b32.xlu0 %v1337, 124
    %v1431 = vpop.permute.xlu0 %1430
    %1432 = vrot.lane.b32.xlu0 %v1338, 124
    %v1433 = vpop.permute.xlu0 %1432
    %1434 = vrot.lane.b32.xlu0 %v1339, 124
    %v1435 = vpop.permute.xlu0 %1434
    %1436 = vrot.lane.b32.xlu0 %v1340, 124
    %v1437 = vpop.permute.xlu0 %1436
    %vm1438 = vcmask 1014784
    %v1439 = vsel %vm1438, %v1409, %v1411
    %v1440 = vsel %vm1438, %v1411, %v1413
    %v1441 = vsel %vm1438, %v1415, %v1417
    %v1442 = vsel %vm1438, %v1417, %v1419
    %v1443 = vsel %vm1438, %v1419, %v1421
    %v1444 = vsel %vm1438, %v1423, %v1425
    %v1445 = vsel %vm1438, %v1425, %v1427
    %v1446 = vsel %vm1438, %v1427, %v1429
    %v1447 = vsel %vm1438, %v1431, %v1433
    %v1448 = vsel %vm1438, %v1433, %v1435
    %v1449 = vsel %vm1438, %v1435, %v1437
    %1451 = vset.pattern.permute.xlu0 0
    %1452 = vperm.xlu0 %1451, %v1310
    %v1453 = vpop.permute.xlu0 %1452
    %1456 = vrot.lane.b32.xlu0 %v1311, 2
    %v1457 = vpop.permute.xlu0 %1456
    %1458 = vrot.lane.b32.xlu0 %v1312, 2
    %v1459 = vpop.permute.xlu0 %1458
    %1460 = vrot.lane.b32.xlu0 %v1313, 2
    %v1461 = vpop.permute.xlu0 %1460
    %1462 = vrot.lane.b32.xlu0 %v1314, 2
    %v1463 = vpop.permute.xlu0 %1462
    %1464 = vrot.lane.b32.xlu0 %v1315, 2
    %v1465 = vpop.permute.xlu0 %1464
    %1466 = vrot.lane.b32.xlu0 %v1316, 2
    %v1467 = vpop.permute.xlu0 %1466
    %1468 = vrot.lane.b32.xlu0 %v1317, 2
    %v1469 = vpop.permute.xlu0 %1468
    %1470 = vrot.lane.b32.xlu0 %v1318, 2
    %v1471 = vpop.permute.xlu0 %1470
    %1472 = vrot.lane.b32.xlu0 %v1319, 2
    %v1473 = vpop.permute.xlu0 %1472
    %1474 = vrot.lane.b32.xlu0 %v1320, 2
    %v1475 = vpop.permute.xlu0 %1474
    %1476 = vrot.lane.b32.xlu0 %v1321, 2
    %v1477 = vpop.permute.xlu0 %1476
    %1478 = vrot.lane.b32.xlu0 %v1322, 2
    %v1479 = vpop.permute.xlu0 %1478
    %1480 = vrot.lane.b32.xlu0 %v1356, 2
    %v1481 = vpop.permute.xlu0 %1480
    %1482 = vrot.lane.b32.xlu0 %v1383, 2
    %v1483 = vpop.permute.xlu0 %1482
    %1484 = vrot.lane.b32.xlu0 %v1384, 2
    %v1485 = vpop.permute.xlu0 %1484
    %1486 = vrot.lane.b32.xlu0 %v1385, 2
    %v1487 = vpop.permute.xlu0 %1486
    %1488 = vrot.lane.b32.xlu0 %v1386, 2
    %v1489 = vpop.permute.xlu0 %1488
    %1490 = vrot.lane.b32.xlu0 %v1387, 2
    %v1491 = vpop.permute.xlu0 %1490
    %1492 = vrot.lane.b32.xlu0 %v1388, 2
    %v1493 = vpop.permute.xlu0 %1492
    %1494 = vrot.lane.b32.xlu0 %v1389, 2
    %v1495 = vpop.permute.xlu0 %1494
    %1496 = vrot.lane.b32.xlu0 %v1390, 2
    %v1497 = vpop.permute.xlu0 %1496
    %1498 = vrot.lane.b32.xlu0 %v1391, 2
    %v1499 = vpop.permute.xlu0 %1498
    %1500 = vrot.lane.b32.xlu0 %v1392, 2
    %v1501 = vpop.permute.xlu0 %1500
    %1502 = vrot.lane.b32.xlu0 %v1382, 2
    %v1503 = vpop.permute.xlu0 %1502
    %1504 = vrot.lane.b32.xlu0 %v1409, 2
    %v1505 = vpop.permute.xlu0 %1504
    %1506 = vrot.lane.b32.xlu0 %v1439, 2
    %v1507 = vpop.permute.xlu0 %1506
    %1508 = vrot.lane.b32.xlu0 %v1440, 2
    %v1509 = vpop.permute.xlu0 %1508
    %1510 = vrot.lane.b32.xlu0 %v1441, 2
    %v1511 = vpop.permute.xlu0 %1510
    %1512 = vrot.lane.b32.xlu0 %v1442, 2
    %v1513 = vpop.permute.xlu0 %1512
    %1514 = vrot.lane.b32.xlu0 %v1443, 2
    %v1515 = vpop.permute.xlu0 %1514
    %1516 = vrot.lane.b32.xlu0 %v1444, 2
    %v1517 = vpop.permute.xlu0 %1516
    %1518 = vrot.lane.b32.xlu0 %v1445, 2
    %v1519 = vpop.permute.xlu0 %1518
    %1520 = vrot.lane.b32.xlu0 %v1446, 2
    %v1521 = vpop.permute.xlu0 %1520
    %1522 = vrot.lane.b32.xlu0 %v1447, 2
    %v1523 = vpop.permute.xlu0 %1522
    %1524 = vrot.lane.b32.xlu0 %v1448, 2
    %v1525 = vpop.permute.xlu0 %1524
    %1526 = vrot.lane.b32.xlu0 %v1449, 2
    %v1527 = vpop.permute.xlu0 %1526
    %vm1528 = vcmask 15360
    %v1529 = vsel %vm1528, %v1457, %v1459
    %v1530 = vsel %vm1528, %v1459, %v1461
    %v1531 = vsel %vm1528, %v1463, %v1465
    %v1532 = vsel %vm1528, %v1465, %v1467
    %v1533 = vsel %vm1528, %v1469, %v1471
    %v1534 = vsel %vm1528, %v1471, %v1473
    %v1535 = vsel %vm1528, %v1475, %v1477
    %v1536 = vsel %vm1528, %v1477, %v1479
    %v1537 = vsel %vm1528, %v1481, %v1483
    %v1538 = vsel %vm1528, %v1483, %v1485
    %v1539 = vsel %vm1528, %v1487, %v1489
    %v1540 = vsel %vm1528, %v1489, %v1491
    %v1541 = vsel %vm1528, %v1493, %v1495
    %v1542 = vsel %vm1528, %v1495, %v1497
    %v1543 = vsel %vm1528, %v1499, %v1501
    %v1544 = vsel %vm1528, %v1501, %v1503
    %v1545 = vsel %vm1528, %v1505, %v1507
    %v1546 = vsel %vm1528, %v1507, %v1509
    %v1547 = vsel %vm1528, %v1511, %v1513
    %v1548 = vsel %vm1528, %v1513, %v1515
    %v1549 = vsel %vm1528, %v1517, %v1519
    %v1550 = vsel %vm1528, %v1519, %v1521
    %v1551 = vsel %vm1528, %v1523, %v1525
    %v1552 = vsel %vm1528, %v1525, %v1527
    %v1578 = vsel %vm365, %v1308, 0
    %1580 = vmatprep.subr.mxu0 0.0
    %1581 = vmatpush1.msra.mxu0 0.0
    %1582 = vmatprep.subr.mxu0 0.0
    %1583 = vmatpush1.msra.mxu0 0.0
    %1584 = vmatprep.subr.mxu0 0.0
    %1585 = vmatpush1.msra.mxu0 0.0
    %1586 = vmatprep.subr.mxu0 0.0
    %1587 = vmatpush1.msra.mxu0 0.0
    %1588 = vmatprep.subr.mxu0 0.0
    %1589 = vmatpush1.msra.mxu0 0.0
    %1590 = vmatprep.subr.mxu0 0.0
    %1591 = vmatpush1.msra.mxu0 0.0
    %1592 = vmatprep.subr.mxu0 0.0
    %1593 = vmatpush1.msra.mxu0 0.0
    %1594 = vmatprep.subr.mxu0 0.0
    %1595 = vmatpush1.msra.mxu0 0.0
    %1596 = vmatprep.subr.mxu0 0.0
    %1597 = vmatpush1.msra.mxu0 0.0
    %1598 = vmatprep.subr.mxu0 0.0
    %1599 = vmatpush1.msra.mxu0 0.0
    %1600 = vmatprep.subr.mxu0 0.0
    %1601 = vmatpush1.msra.mxu0 0.0
    %1602 = vmatprep.subr.mxu0 0.0
    %1603 = vmatpush1.msra.mxu0 0.0
    %1604 = vmatprep.subr.mxu0 0.0
    %1605 = vmatpush1.msra.mxu0 0.0
    %1606 = vmatprep.subr.mxu0 %v1546
    %1607 = vmatpush1.msra.mxu0 %v1545
    %1608 = vmatprep.subr.mxu0 %v1538
    %1609 = vmatpush1.msra.mxu0 %v1537
    %1610 = vmatprep.subr.mxu0 %v1530
    %1611 = vmatpush1.msra.mxu0 %v1529
    %1612 = vmatprep.subr.mxu0 0.0
    %1613 = vmatpush2.msra.mxu0 0.0
    %1614 = vmatprep.subr.mxu0 0.0
    %1615 = vmatpush2.msra.mxu0 0.0
    %1616 = vmatprep.subr.mxu0 0.0
    %1617 = vmatpush2.msra.mxu0 0.0
    %1618 = vmatprep.subr.mxu0 0.0
    %1619 = vmatpush2.msra.mxu0 0.0
    %1620 = vmatprep.subr.mxu0 0.0
    %1621 = vmatpush2.msra.mxu0 0.0
    %1622 = vmatprep.subr.mxu0 0.0
    %1623 = vmatpush2.msra.mxu0 0.0
    %1624 = vmatprep.subr.mxu0 0.0
    %1625 = vmatpush2.msra.mxu0 0.0
    %1626 = vmatprep.subr.mxu0 0.0
    %1627 = vmatpush2.msra.mxu0 0.0
    %1628 = vmatprep.subr.mxu0 0.0
    %1629 = vmatpush2.msra.mxu0 0.0
    %1630 = vmatprep.subr.mxu0 0.0
    %1631 = vmatpush2.msra.mxu0 0.0
    %1632 = vmatprep.subr.mxu0 0.0
    %1633 = vmatpush2.msra.mxu0 0.0
    %1634 = vmatprep.subr.mxu0 0.0
    %1635 = vmatpush2.msra.mxu0 0.0
    %1636 = vmatprep.subr.mxu0 0.0
    %1637 = vmatpush2.msra.mxu0 0.0
    %1638 = vmatprep.subr.mxu0 0.0
    %1639 = vmatpush2.msra.mxu0 0.0
    %1640 = vmatprep.subr.mxu0 0.0
    %1641 = vmatpush2.msra.mxu0 0.0
    %1642 = vmatprep.subr.mxu0 0.0
    %1643 = vmatpush2.msra.mxu0 0.0
    %1644 = vmatprep.mubr.f32.mxu0 0.0
    %1645 = vmatmul.mubr.f32.gmra.mxu0 %v1578
    %v1646 = vpop.f32.mrf.mxu0
    %v1647 = vadd.f32 %v1453, %v1646
    %v1648 = vpop.f32.mrf.mxu0
    %v1649 = vadd.f32 %v1453, %v1648
    %1650 = vdwg.mxu0
    %1651 = vmatprep.subr.mxu0 0.0
    %1652 = vmatpush1.msra.mxu0 0.0
    %1653 = vmatprep.subr.mxu0 0.0
    %1654 = vmatpush1.msra.mxu0 0.0
    %1655 = vmatprep.subr.mxu0 0.0
    %1656 = vmatpush1.msra.mxu0 0.0
    %1657 = vmatprep.subr.mxu0 0.0
    %1658 = vmatpush1.msra.mxu0 0.0
    %1659 = vmatprep.subr.mxu0 0.0
    %1660 = vmatpush1.msra.mxu0 0.0
    %1661 = vmatprep.subr.mxu0 0.0
    %1662 = vmatpush1.msra.mxu0 0.0
    %1663 = vmatprep.subr.mxu0 0.0
    %1664 = vmatpush1.msra.mxu0 0.0
    %1665 = vmatprep.subr.mxu0 0.0
    %1666 = vmatpush1.msra.mxu0 0.0
    %1667 = vmatprep.subr.mxu0 0.0
    %1668 = vmatpush1.msra.mxu0 0.0
    %1669 = vmatprep.subr.mxu0 0.0
    %1670 = vmatpush1.msra.mxu0 0.0
    %1671 = vmatprep.subr.mxu0 0.0
    %1672 = vmatpush1.msra.mxu0 0.0
    %1673 = vmatprep.subr.mxu0 0.0
    %1674 = vmatpush1.msra.mxu0 0.0
    %1675 = vmatprep.subr.mxu0 0.0
    %1676 = vmatpush1.msra.mxu0 0.0
    %1677 = vmatprep.subr.mxu0 %v1548
    %1678 = vmatpush1.msra.mxu0 %v1547
    %1679 = vmatprep.subr.mxu0 %v1540
    %1680 = vmatpush1.msra.mxu0 %v1539
    %1681 = vmatprep.subr.mxu0 %v1532
    %1682 = vmatpush1.msra.mxu0 %v1531
    %1683 = vmatprep.subr.mxu0 0.0
    %1684 = vmatpush2.msra.mxu0 0.0
    %1685 = vmatprep.subr.mxu0 0.0
    %1686 = vmatpush2.msra.mxu0 0.0
    %1687 = vmatprep.subr.mxu0 0.0
    %1688 = vmatpush2.msra.mxu0 0.0
    %1689 = vmatprep.subr.mxu0 0.0
    %1690 = vmatpush2.msra.mxu0 0.0
    %1691 = vmatprep.subr.mxu0 0.0
    %1692 = vmatpush2.msra.mxu0 0.0
    %1693 = vmatprep.subr.mxu0 0.0
    %1694 = vmatpush2.msra.mxu0 0.0
    %1695 = vmatprep.subr.mxu0 0.0
    %1696 = vmatpush2.msra.mxu0 0.0
    %1697 = vmatprep.subr.mxu0 0.0
    %1698 = vmatpush2.msra.mxu0 0.0
    %1699 = vmatprep.subr.mxu0 0.0
    %1700 = vmatpush2.msra.mxu0 0.0
    %1701 = vmatprep.subr.mxu0 0.0
    %1702 = vmatpush2.msra.mxu0 0.0
    %1703 = vmatprep.subr.mxu0 0.0
    %1704 = vmatpush2.msra.mxu0 0.0
    %1705 = vmatprep.subr.mxu0 0.0
    %1706 = vmatpush2.msra.mxu0 0.0
    %1707 = vmatprep.subr.mxu0 0.0
    %1708 = vmatpush2.msra.mxu0 0.0
    %1709 = vmatprep.subr.mxu0 0.0
    %1710 = vmatpush2.msra.mxu0 0.0
    %1711 = vmatprep.subr.mxu0 0.0
    %1712 = vmatpush2.msra.mxu0 0.0
    %1713 = vmatprep.subr.mxu0 0.0
    %1714 = vmatpush2.msra.mxu0 0.0
    %1715 = vmatprep.mubr.f32.mxu0 0.0
    %1716 = vmatmul.mubr.f32.gmra.mxu0 %v1578
    %v1717 = vpop.f32.mrf.mxu0
    %v1718 = vadd.f32 %v1453, %v1717
    %v1719 = vpop.f32.mrf.mxu0
    %v1720 = vadd.f32 %v1453, %v1719
    %1721 = vdwg.mxu0
    %1722 = vmatprep.subr.mxu0 0.0
    %1723 = vmatpush1.msra.mxu0 0.0
    %1724 = vmatprep.subr.mxu0 0.0
    %1725 = vmatpush1.msra.mxu0 0.0
    %1726 = vmatprep.subr.mxu0 0.0
    %1727 = vmatpush1.msra.mxu0 0.0
    %1728 = vmatprep.subr.mxu0 0.0
    %1729 = vmatpush1.msra.mxu0 0.0
    %1730 = vmatprep.subr.mxu0 0.0
    %1731 = vmatpush1.msra.mxu0 0.0
    %1732 = vmatprep.subr.mxu0 0.0
    %1733 = vmatpush1.msra.mxu0 0.0
    %1734 = vmatprep.subr.mxu0 0.0
    %1735 = vmatpush1.msra.mxu0 0.0
    %1736 = vmatprep.subr.mxu0 0.0
    %1737 = vmatpush1.msra.mxu0 0.0
    %1738 = vmatprep.subr.mxu0 0.0
    %1739 = vmatpush1.msra.mxu0 0.0
    %1740 = vmatprep.subr.mxu0 0.0
    %1741 = vmatpush1.msra.mxu0 0.0
    %1742 = vmatprep.subr.mxu0 0.0
    %1743 = vmatpush1.msra.mxu0 0.0
    %1744 = vmatprep.subr.mxu0 0.0
    %1745 = vmatpush1.msra.mxu0 0.0
    %1746 = vmatprep.subr.mxu0 0.0
    %1747 = vmatpush1.msra.mxu0 0.0
    %1748 = vmatprep.subr.mxu0 %v1550
    %1749 = vmatpush1.msra.mxu0 %v1549
    %1750 = vmatprep.subr.mxu0 %v1542
    %1751 = vmatpush1.msra.mxu0 %v1541
    %1752 = vmatprep.subr.mxu0 %v1534
    %1753 = vmatpush1.msra.mxu0 %v1533
    %1754 = vmatprep.subr.mxu0 0.0
    %1755 = vmatpush2.msra.mxu0 0.0
    %1756 = vmatprep.subr.mxu0 0.0
    %1757 = vmatpush2.msra.mxu0 0.0
    %1758 = vmatprep.subr.mxu0 0.0
    %1759 = vmatpush2.msra.mxu0 0.0
    %1760 = vmatprep.subr.mxu0 0.0
    %1761 = vmatpush2.msra.mxu0 0.0
    %1762 = vmatprep.subr.mxu0 0.0
    %1763 = vmatpush2.msra.mxu0 0.0
    %1764 = vmatprep.subr.mxu0 0.0
    %1765 = vmatpush2.msra.mxu0 0.0
    %1766 = vmatprep.subr.mxu0 0.0
    %1767 = vmatpush2.msra.mxu0 0.0
    %1768 = vmatprep.subr.mxu0 0.0
    %1769 = vmatpush2.msra.mxu0 0.0
    %1770 = vmatprep.subr.mxu0 0.0
    %1771 = vmatpush2.msra.mxu0 0.0
    %1772 = vmatprep.subr.mxu0 0.0
    %1773 = vmatpush2.msra.mxu0 0.0
    %1774 = vmatprep.subr.mxu0 0.0
    %1775 = vmatpush2.msra.mxu0 0.0
    %1776 = vmatprep.subr.mxu0 0.0
    %1777 = vmatpush2.msra.mxu0 0.0
    %1778 = vmatprep.subr.mxu0 0.0
    %1779 = vmatpush2.msra.mxu0 0.0
    %1780 = vmatprep.subr.mxu0 0.0
    %1781 = vmatpush2.msra.mxu0 0.0
    %1782 = vmatprep.subr.mxu0 0.0
    %1783 = vmatpush2.msra.mxu0 0.0
    %1784 = vmatprep.subr.mxu0 0.0
    %1785 = vmatpush2.msra.mxu0 0.0
    %1786 = vmatprep.mubr.f32.mxu0 0.0
    %1787 = vmatmul.mubr.f32.gmra.mxu0 %v1578
    %v1788 = vpop.f32.mrf.mxu0
    %v1789 = vadd.f32 %v1453, %v1788
    %v1790 = vpop.f32.mrf.mxu0
    %v1791 = vadd.f32 %v1453, %v1790
    %1792 = vdwg.mxu0
    %1793 = vmatprep.subr.mxu0 0.0
    %1794 = vmatpush1.msra.mxu0 0.0
    %1795 = vmatprep.subr.mxu0 0.0
    %1796 = vmatpush1.msra.mxu0 0.0
    %1797 = vmatprep.subr.mxu0 0.0
    %1798 = vmatpush1.msra.mxu0 0.0
    %1799 = vmatprep.subr.mxu0 0.0
    %1800 = vmatpush1.msra.mxu0 0.0
    %1801 = vmatprep.subr.mxu0 0.0
    %1802 = vmatpush1.msra.mxu0 0.0
    %1803 = vmatprep.subr.mxu0 0.0
    %1804 = vmatpush1.msra.mxu0 0.0
    %1805 = vmatprep.subr.mxu0 0.0
    %1806 = vmatpush1.msra.mxu0 0.0
    %1807 = vmatprep.subr.mxu0 0.0
    %1808 = vmatpush1.msra.mxu0 0.0
    %1809 = vmatprep.subr.mxu0 0.0
    %1810 = vmatpush1.msra.mxu0 0.0
    %1811 = vmatprep.subr.mxu0 0.0
    %1812 = vmatpush1.msra.mxu0 0.0
    %1813 = vmatprep.subr.mxu0 0.0
    %1814 = vmatpush1.msra.mxu0 0.0
    %1815 = vmatprep.subr.mxu0 0.0
    %1816 = vmatpush1.msra.mxu0 0.0
    %1817 = vmatprep.subr.mxu0 0.0
    %1818 = vmatpush1.msra.mxu0 0.0
    %1819 = vmatprep.subr.mxu0 %v1552
    %1820 = vmatpush1.msra.mxu0 %v1551
    %1821 = vmatprep.subr.mxu0 %v1544
    %1822 = vmatpush1.msra.mxu0 %v1543
    %1823 = vmatprep.subr.mxu0 %v1536
    %1824 = vmatpush1.msra.mxu0 %v1535
    %1825 = vmatprep.subr.mxu0 0.0
    %1826 = vmatpush2.msra.mxu0 0.0
    %1827 = vmatprep.subr.mxu0 0.0
    %1828 = vmatpush2.msra.mxu0 0.0
    %1829 = vmatprep.subr.mxu0 0.0
    %1830 = vmatpush2.msra.mxu0 0.0
    %1831 = vmatprep.subr.mxu0 0.0
    %1832 = vmatpush2.msra.mxu0 0.0
    %1833 = vmatprep.subr.mxu0 0.0
    %1834 = vmatpush2.msra.mxu0 0.0
    %1835 = vmatprep.subr.mxu0 0.0
    %1836 = vmatpush2.msra.mxu0 0.0
    %1837 = vmatprep.subr.mxu0 0.0
    %1838 = vmatpush2.msra.mxu0 0.0
    %1839 = vmatprep.subr.mxu0 0.0
    %1840 = vmatpush2.msra.mxu0 0.0
    %1841 = vmatprep.subr.mxu0 0.0
    %1842 = vmatpush2.msra.mxu0 0.0
    %1843 = vmatprep.subr.mxu0 0.0
    %1844 = vmatpush2.msra.mxu0 0.0
    %1845 = vmatprep.subr.mxu0 0.0
    %1846 = vmatpush2.msra.mxu0 0.0
    %1847 = vmatprep.subr.mxu0 0.0
    %1848 = vmatpush2.msra.mxu0 0.0
    %1849 = vmatprep.subr.mxu0 0.0
    %1850 = vmatpush2.msra.mxu0 0.0
    %1851 = vmatprep.subr.mxu0 0.0
    %1852 = vmatpush2.msra.mxu0 0.0
    %1853 = vmatprep.subr.mxu0 0.0
    %1854 = vmatpush2.msra.mxu0 0.0
    %1855 = vmatprep.subr.mxu0 0.0
    %1856 = vmatpush2.msra.mxu0 0.0
    %1857 = vmatprep.mubr.f32.mxu0 0.0
    %1858 = vmatmul.mubr.f32.gmra.mxu0 %v1578
    %v1859 = vpop.f32.mrf.mxu0
    %v1860 = vadd.f32 %v1453, %v1859
    %v1861 = vpop.f32.mrf.mxu0
    %v1862 = vadd.f32 %v1453, %v1861
    %1863 = vdwg.mxu0
    %vm1864 = vcmp.gt.f32.partialorder %v1647, 0.0
    %vm1865 = vcmp.gt.f32.partialorder %v1649, 0.0
    %v1866 = vmul.f32 %v1647, 0.01
    %v1867 = vmul.f32 %v1649, 0.01
    %v1868 = vsel %vm1864, %v1647, %v1866
    %v1869 = vsel %vm1865, %v1649, %v1867
    %1870 = vst [vmem:[#allocation2 + $0x8] sm:$0xff] %v1868
    %1871 = vst [vmem:[#allocation2 + $0x10] sm:$0xff] %v1869
    %vm1872 = vcmp.gt.f32.partialorder %v1718, 0.0
    %vm1873 = vcmp.gt.f32.partialorder %v1720, 0.0
    %v1874 = vmul.f32 %v1718, 0.01
    %v1875 = vmul.f32 %v1720, 0.01
    %v1876 = vsel %vm1872, %v1718, %v1874
    %v1877 = vsel %vm1873, %v1720, %v1875
    %1878 = vst [vmem:[#allocation2 + $0x28] sm:$0xff] %v1876
    %1879 = vst [vmem:[#allocation2 + $0x30] sm:$0xff] %v1877
    %vm1880 = vcmp.gt.f32.partialorder %v1789, 0.0
    %vm1881 = vcmp.gt.f32.partialorder %v1791, 0.0
    %v1882 = vmul.f32 %v1789, 0.01
    %v1883 = vmul.f32 %v1791, 0.01
    %v1884 = vsel %vm1880, %v1789, %v1882
    %v1885 = vsel %vm1881, %v1791, %v1883
    %1886 = vst [vmem:[#allocation2 + $0x48] sm:$0xff] %v1884
    %1887 = vst [vmem:[#allocation2 + $0x50] sm:$0xff] %v1885
    %vm1888 = vcmp.gt.f32.partialorder %v1860, 0.0
    %vm1889 = vcmp.gt.f32.partialorder %v1862, 0.0
    %v1890 = vmul.f32 %v1860, 0.01
    %v1891 = vmul.f32 %v1862, 0.01
    %v1892 = vsel %vm1888, %v1860, %v1890
    %v1893 = vsel %vm1889, %v1862, %v1891
    %1894 = vst [vmem:[#allocation2 + $0x68] sm:$0xff] %v1892
    %1895 = vst [vmem:[#allocation2 + $0x70] sm:$0xff] %v1893
    %s1896 = scalar_lea.vmem %s1, 24
    %v1897 = vld [vmem:[%s1896] sm:$0xff]
    %s1898 = scalar_lea.vmem %s2, 24
    %v1899 = vld [vmem:[%s1898] sm:$0xff]
    %v1900 = vld [vmem:[#allocation2] sm:$0xff]
    %v1901 = vld [vmem:[#allocation2 + $0x8] sm:$0xff]
    %v1902 = vld [vmem:[#allocation2 + $0x10] sm:$0xff]
    %v1903 = vld [vmem:[#allocation2 + $0x20] sm:$0xff]
    %v1904 = vld [vmem:[#allocation2 + $0x28] sm:$0xff]
    %v1905 = vld [vmem:[#allocation2 + $0x30] sm:$0xff]
    %v1906 = vld [vmem:[#allocation2 + $0x40] sm:$0xff]
    %v1907 = vld [vmem:[#allocation2 + $0x48] sm:$0xff]
    %v1908 = vld [vmem:[#allocation2 + $0x50] sm:$0xff]
    %v1909 = vld [vmem:[#allocation2 + $0x60] sm:$0xff]
    %v1910 = vld [vmem:[#allocation2 + $0x68] sm:$0xff]
    %v1911 = vld [vmem:[#allocation2 + $0x70] sm:$0xff]
    %v1912 = vld [vmem:[#allocation2 + $0x18] sm:$0xff]
    %v1913 = vld [vmem:[#allocation2 + $0x38] sm:$0xff]
    %v1914 = vld [vmem:[#allocation2 + $0x58] sm:$0xff]
    %v1915 = vld [vmem:[#allocation2 + $0x8] sm:$0xff]
    %v1916 = vld [vmem:[#allocation2 + $0x10] sm:$0xff]
    %v1917 = vld [vmem:[#allocation2 + $0x18] sm:$0xff]
    %v1918 = vld [vmem:[#allocation2 + $0x20] sm:$0xff]
    %v1919 = vld [vmem:[#allocation2 + $0x28] sm:$0xff]
    %v1920 = vld [vmem:[#allocation2 + $0x30] sm:$0xff]
    %v1921 = vld [vmem:[#allocation2 + $0x38] sm:$0xff]
    %v1922 = vld [vmem:[#allocation2 + $0x40] sm:$0xff]
    %v1923 = vld [vmem:[#allocation2 + $0x48] sm:$0xff]
    %v1924 = vld [vmem:[#allocation2 + $0x50] sm:$0xff]
    %v1925 = vld [vmem:[#allocation2 + $0x58] sm:$0xff]
    %v1926 = vld [vmem:[#allocation2 + $0x60] sm:$0xff]
    %v1927 = vld [vmem:[#allocation2 + $0x68] sm:$0xff]
    %v1928 = vld [vmem:[#allocation2 + $0x70] sm:$0xff]
    %v1929 = vld [vmem:[#allocation2 + $0x78] sm:$0xff]
    %1944 = vrot.lane.b32.xlu0 %v1901, 122
    %v1945 = vpop.permute.xlu0 %1944
    %1946 = vrot.lane.b32.xlu0 %v1902, 122
    %v1947 = vpop.permute.xlu0 %1946
    %1948 = vrot.lane.b32.xlu0 %v1912, 122
    %v1949 = vpop.permute.xlu0 %1948
    %1950 = vrot.lane.b32.xlu0 %v1903, 122
    %v1951 = vpop.permute.xlu0 %1950
    %1952 = vrot.lane.b32.xlu0 %v1904, 122
    %v1953 = vpop.permute.xlu0 %1952
    %1954 = vrot.lane.b32.xlu0 %v1905, 122
    %v1955 = vpop.permute.xlu0 %1954
    %1956 = vrot.lane.b32.xlu0 %v1913, 122
    %v1957 = vpop.permute.xlu0 %1956
    %1958 = vrot.lane.b32.xlu0 %v1906, 122
    %v1959 = vpop.permute.xlu0 %1958
    %1960 = vrot.lane.b32.xlu0 %v1907, 122
    %v1961 = vpop.permute.xlu0 %1960
    %1962 = vrot.lane.b32.xlu0 %v1908, 122
    %v1963 = vpop.permute.xlu0 %1962
    %1964 = vrot.lane.b32.xlu0 %v1914, 122
    %v1965 = vpop.permute.xlu0 %1964
    %1966 = vrot.lane.b32.xlu0 %v1909, 122
    %v1967 = vpop.permute.xlu0 %1966
    %1968 = vrot.lane.b32.xlu0 %v1910, 122
    %v1969 = vpop.permute.xlu0 %1968
    %1970 = vrot.lane.b32.xlu0 %v1911, 122
    %v1971 = vpop.permute.xlu0 %1970
    %v1972 = vsel %vm817, %v1945, %v1947
    %v1973 = vsel %vm817, %v1947, %v1949
    %v1974 = vsel %vm817, %v1951, %v1953
    %v1975 = vsel %vm817, %v1953, %v1955
    %v1976 = vsel %vm817, %v1955, %v1957
    %v1977 = vsel %vm817, %v1959, %v1961
    %v1978 = vsel %vm817, %v1961, %v1963
    %v1979 = vsel %vm817, %v1963, %v1965
    %v1980 = vsel %vm817, %v1967, %v1969
    %v1981 = vsel %vm817, %v1969, %v1971
    %1997 = vrot.lane.b32.xlu0 %v1915, 116
    %v1998 = vpop.permute.xlu0 %1997
    %1999 = vrot.lane.b32.xlu0 %v1916, 116
    %v2000 = vpop.permute.xlu0 %1999
    %2001 = vrot.lane.b32.xlu0 %v1917, 116
    %v2002 = vpop.permute.xlu0 %2001
    %2003 = vrot.lane.b32.xlu0 %v1918, 116
    %v2004 = vpop.permute.xlu0 %2003
    %2005 = vrot.lane.b32.xlu0 %v1919, 116
    %v2006 = vpop.permute.xlu0 %2005
    %2007 = vrot.lane.b32.xlu0 %v1920, 116
    %v2008 = vpop.permute.xlu0 %2007
    %2009 = vrot.lane.b32.xlu0 %v1921, 116
    %v2010 = vpop.permute.xlu0 %2009
    %2011 = vrot.lane.b32.xlu0 %v1922, 116
    %v2012 = vpop.permute.xlu0 %2011
    %2013 = vrot.lane.b32.xlu0 %v1923, 116
    %v2014 = vpop.permute.xlu0 %2013
    %2015 = vrot.lane.b32.xlu0 %v1924, 116
    %v2016 = vpop.permute.xlu0 %2015
    %2017 = vrot.lane.b32.xlu0 %v1925, 116
    %v2018 = vpop.permute.xlu0 %2017
    %2019 = vrot.lane.b32.xlu0 %v1926, 116
    %v2020 = vpop.permute.xlu0 %2019
    %2021 = vrot.lane.b32.xlu0 %v1927, 116
    %v2022 = vpop.permute.xlu0 %2021
    %2023 = vrot.lane.b32.xlu0 %v1928, 116
    %v2024 = vpop.permute.xlu0 %2023
    %2025 = vrot.lane.b32.xlu0 %v1929, 116
    %v2026 = vpop.permute.xlu0 %2025
    %vm2027 = vcmask 949248
    %v2028 = vsel %vm2027, %v1998, %v2000
    %v2029 = vsel %vm2027, %v2000, %v2002
    %v2030 = vsel %vm2027, %v2004, %v2006
    %v2031 = vsel %vm2027, %v2006, %v2008
    %v2032 = vsel %vm2027, %v2008, %v2010
    %v2033 = vsel %vm2027, %v2012, %v2014
    %v2034 = vsel %vm2027, %v2014, %v2016
    %v2035 = vsel %vm2027, %v2016, %v2018
    %v2036 = vsel %vm2027, %v2020, %v2022
    %v2037 = vsel %vm2027, %v2022, %v2024
    %v2038 = vsel %vm2027, %v2024, %v2026
    %2040 = vset.pattern.permute.xlu0 0
    %2041 = vperm.xlu0 %2040, %v1899
    %v2042 = vpop.permute.xlu0 %2041
    %2045 = vrot.lane.b32.xlu0 %v1900, 6
    %v2046 = vpop.permute.xlu0 %2045
    %2047 = vrot.lane.b32.xlu0 %v1901, 6
    %v2048 = vpop.permute.xlu0 %2047
    %2049 = vrot.lane.b32.xlu0 %v1902, 6
    %v2050 = vpop.permute.xlu0 %2049
    %2051 = vrot.lane.b32.xlu0 %v1903, 6
    %v2052 = vpop.permute.xlu0 %2051
    %2053 = vrot.lane.b32.xlu0 %v1904, 6
    %v2054 = vpop.permute.xlu0 %2053
    %2055 = vrot.lane.b32.xlu0 %v1905, 6
    %v2056 = vpop.permute.xlu0 %2055
    %2057 = vrot.lane.b32.xlu0 %v1906, 6
    %v2058 = vpop.permute.xlu0 %2057
    %2059 = vrot.lane.b32.xlu0 %v1907, 6
    %v2060 = vpop.permute.xlu0 %2059
    %2061 = vrot.lane.b32.xlu0 %v1908, 6
    %v2062 = vpop.permute.xlu0 %2061
    %2063 = vrot.lane.b32.xlu0 %v1909, 6
    %v2064 = vpop.permute.xlu0 %2063
    %2065 = vrot.lane.b32.xlu0 %v1910, 6
    %v2066 = vpop.permute.xlu0 %2065
    %2067 = vrot.lane.b32.xlu0 %v1911, 6
    %v2068 = vpop.permute.xlu0 %2067
    %2069 = vrot.lane.b32.xlu0 %v1945, 6
    %v2070 = vpop.permute.xlu0 %2069
    %2071 = vrot.lane.b32.xlu0 %v1972, 6
    %v2072 = vpop.permute.xlu0 %2071
    %2073 = vrot.lane.b32.xlu0 %v1973, 6
    %v2074 = vpop.permute.xlu0 %2073
    %2075 = vrot.lane.b32.xlu0 %v1974, 6
    %v2076 = vpop.permute.xlu0 %2075
    %2077 = vrot.lane.b32.xlu0 %v1975, 6
    %v2078 = vpop.permute.xlu0 %2077
    %2079 = vrot.lane.b32.xlu0 %v1976, 6
    %v2080 = vpop.permute.xlu0 %2079
    %2081 = vrot.lane.b32.xlu0 %v1977, 6
    %v2082 = vpop.permute.xlu0 %2081
    %2083 = vrot.lane.b32.xlu0 %v1978, 6
    %v2084 = vpop.permute.xlu0 %2083
    %2085 = vrot.lane.b32.xlu0 %v1979, 6
    %v2086 = vpop.permute.xlu0 %2085
    %2087 = vrot.lane.b32.xlu0 %v1980, 6
    %v2088 = vpop.permute.xlu0 %2087
    %2089 = vrot.lane.b32.xlu0 %v1981, 6
    %v2090 = vpop.permute.xlu0 %2089
    %2091 = vrot.lane.b32.xlu0 %v1971, 6
    %v2092 = vpop.permute.xlu0 %2091
    %2093 = vrot.lane.b32.xlu0 %v1998, 6
    %v2094 = vpop.permute.xlu0 %2093
    %2095 = vrot.lane.b32.xlu0 %v2028, 6
    %v2096 = vpop.permute.xlu0 %2095
    %2097 = vrot.lane.b32.xlu0 %v2029, 6
    %v2098 = vpop.permute.xlu0 %2097
    %2099 = vrot.lane.b32.xlu0 %v2030, 6
    %v2100 = vpop.permute.xlu0 %2099
    %2101 = vrot.lane.b32.xlu0 %v2031, 6
    %v2102 = vpop.permute.xlu0 %2101
    %2103 = vrot.lane.b32.xlu0 %v2032, 6
    %v2104 = vpop.permute.xlu0 %2103
    %2105 = vrot.lane.b32.xlu0 %v2033, 6
    %v2106 = vpop.permute.xlu0 %2105
    %2107 = vrot.lane.b32.xlu0 %v2034, 6
    %v2108 = vpop.permute.xlu0 %2107
    %2109 = vrot.lane.b32.xlu0 %v2035, 6
    %v2110 = vpop.permute.xlu0 %2109
    %2111 = vrot.lane.b32.xlu0 %v2036, 6
    %v2112 = vpop.permute.xlu0 %2111
    %2113 = vrot.lane.b32.xlu0 %v2037, 6
    %v2114 = vpop.permute.xlu0 %2113
    %2115 = vrot.lane.b32.xlu0 %v2038, 6
    %v2116 = vpop.permute.xlu0 %2115
    %vm2117 = vcmask 48128
    %v2118 = vsel %vm2117, %v2046, %v2048
    %v2119 = vsel %vm2117, %v2048, %v2050
    %v2120 = vsel %vm2117, %v2052, %v2054
    %v2121 = vsel %vm2117, %v2054, %v2056
    %v2122 = vsel %vm2117, %v2058, %v2060
    %v2123 = vsel %vm2117, %v2060, %v2062
    %v2124 = vsel %vm2117, %v2064, %v2066
    %v2125 = vsel %vm2117, %v2066, %v2068
    %v2126 = vsel %vm2117, %v2070, %v2072
    %v2127 = vsel %vm2117, %v2072, %v2074
    %v2128 = vsel %vm2117, %v2076, %v2078
    %v2129 = vsel %vm2117, %v2078, %v2080
    %v2130 = vsel %vm2117, %v2082, %v2084
    %v2131 = vsel %vm2117, %v2084, %v2086
    %v2132 = vsel %vm2117, %v2088, %v2090
    %v2133 = vsel %vm2117, %v2090, %v2092
    %v2134 = vsel %vm2117, %v2094, %v2096
    %v2135 = vsel %vm2117, %v2096, %v2098
    %v2136 = vsel %vm2117, %v2100, %v2102
    %v2137 = vsel %vm2117, %v2102, %v2104
    %v2138 = vsel %vm2117, %v2106, %v2108
    %v2139 = vsel %vm2117, %v2108, %v2110
    %v2140 = vsel %vm2117, %v2112, %v2114
    %v2141 = vsel %vm2117, %v2114, %v2116
    %v2167 = vsel %vm365, %v1897, 0
    %2169 = vmatprep.subr.mxu0 0.0
    %2170 = vmatpush1.msra.mxu0 0.0
    %2171 = vmatprep.subr.mxu0 0.0
    %2172 = vmatpush1.msra.mxu0 0.0
    %2173 = vmatprep.subr.mxu0 0.0
    %2174 = vmatpush1.msra.mxu0 0.0
    %2175 = vmatprep.subr.mxu0 0.0
    %2176 = vmatpush1.msra.mxu0 0.0
    %2177 = vmatprep.subr.mxu0 0.0
    %2178 = vmatpush1.msra.mxu0 0.0
    %2179 = vmatprep.subr.mxu0 0.0
    %2180 = vmatpush1.msra.mxu0 0.0
    %2181 = vmatprep.subr.mxu0 0.0
    %2182 = vmatpush1.msra.mxu0 0.0
    %2183 = vmatprep.subr.mxu0 0.0
    %2184 = vmatpush1.msra.mxu0 0.0
    %2185 = vmatprep.subr.mxu0 0.0
    %2186 = vmatpush1.msra.mxu0 0.0
    %2187 = vmatprep.subr.mxu0 0.0
    %2188 = vmatpush1.msra.mxu0 0.0
    %2189 = vmatprep.subr.mxu0 0.0
    %2190 = vmatpush1.msra.mxu0 0.0
    %2191 = vmatprep.subr.mxu0 0.0
    %2192 = vmatpush1.msra.mxu0 0.0
    %2193 = vmatprep.subr.mxu0 0.0
    %2194 = vmatpush1.msra.mxu0 0.0
    %2195 = vmatprep.subr.mxu0 %v2135
    %2196 = vmatpush1.msra.mxu0 %v2134
    %2197 = vmatprep.subr.mxu0 %v2127
    %2198 = vmatpush1.msra.mxu0 %v2126
    %2199 = vmatprep.subr.mxu0 %v2119
    %2200 = vmatpush1.msra.mxu0 %v2118
    %2201 = vmatprep.subr.mxu0 0.0
    %2202 = vmatpush2.msra.mxu0 0.0
    %2203 = vmatprep.subr.mxu0 0.0
    %2204 = vmatpush2.msra.mxu0 0.0
    %2205 = vmatprep.subr.mxu0 0.0
    %2206 = vmatpush2.msra.mxu0 0.0
    %2207 = vmatprep.subr.mxu0 0.0
    %2208 = vmatpush2.msra.mxu0 0.0
    %2209 = vmatprep.subr.mxu0 0.0
    %2210 = vmatpush2.msra.mxu0 0.0
    %2211 = vmatprep.subr.mxu0 0.0
    %2212 = vmatpush2.msra.mxu0 0.0
    %2213 = vmatprep.subr.mxu0 0.0
    %2214 = vmatpush2.msra.mxu0 0.0
    %2215 = vmatprep.subr.mxu0 0.0
    %2216 = vmatpush2.msra.mxu0 0.0
    %2217 = vmatprep.subr.mxu0 0.0
    %2218 = vmatpush2.msra.mxu0 0.0
    %2219 = vmatprep.subr.mxu0 0.0
    %2220 = vmatpush2.msra.mxu0 0.0
    %2221 = vmatprep.subr.mxu0 0.0
    %2222 = vmatpush2.msra.mxu0 0.0
    %2223 = vmatprep.subr.mxu0 0.0
    %2224 = vmatpush2.msra.mxu0 0.0
    %2225 = vmatprep.subr.mxu0 0.0
    %2226 = vmatpush2.msra.mxu0 0.0
    %2227 = vmatprep.subr.mxu0 0.0
    %2228 = vmatpush2.msra.mxu0 0.0
    %2229 = vmatprep.subr.mxu0 0.0
    %2230 = vmatpush2.msra.mxu0 0.0
    %2231 = vmatprep.subr.mxu0 0.0
    %2232 = vmatpush2.msra.mxu0 0.0
    %2233 = vmatprep.mubr.f32.mxu0 0.0
    %2234 = vmatmul.mubr.f32.gmra.mxu0 %v2167
    %v2235 = vpop.f32.mrf.mxu0
    %v2236 = vadd.f32 %v2042, %v2235
    %v2237 = vpop.f32.mrf.mxu0
    %v2238 = vadd.f32 %v2042, %v2237
    %2239 = vdwg.mxu0
    %2240 = vmatprep.subr.mxu0 0.0
    %2241 = vmatpush1.msra.mxu0 0.0
    %2242 = vmatprep.subr.mxu0 0.0
    %2243 = vmatpush1.msra.mxu0 0.0
    %2244 = vmatprep.subr.mxu0 0.0
    %2245 = vmatpush1.msra.mxu0 0.0
    %2246 = vmatprep.subr.mxu0 0.0
    %2247 = vmatpush1.msra.mxu0 0.0
    %2248 = vmatprep.subr.mxu0 0.0
    %2249 = vmatpush1.msra.mxu0 0.0
    %2250 = vmatprep.subr.mxu0 0.0
    %2251 = vmatpush1.msra.mxu0 0.0
    %2252 = vmatprep.subr.mxu0 0.0
    %2253 = vmatpush1.msra.mxu0 0.0
    %2254 = vmatprep.subr.mxu0 0.0
    %2255 = vmatpush1.msra.mxu0 0.0
    %2256 = vmatprep.subr.mxu0 0.0
    %2257 = vmatpush1.msra.mxu0 0.0
    %2258 = vmatprep.subr.mxu0 0.0
    %2259 = vmatpush1.msra.mxu0 0.0
    %2260 = vmatprep.subr.mxu0 0.0
    %2261 = vmatpush1.msra.mxu0 0.0
    %2262 = vmatprep.subr.mxu0 0.0
    %2263 = vmatpush1.msra.mxu0 0.0
    %2264 = vmatprep.subr.mxu0 0.0
    %2265 = vmatpush1.msra.mxu0 0.0
    %2266 = vmatprep.subr.mxu0 %v2137
    %2267 = vmatpush1.msra.mxu0 %v2136
    %2268 = vmatprep.subr.mxu0 %v2129
    %2269 = vmatpush1.msra.mxu0 %v2128
    %2270 = vmatprep.subr.mxu0 %v2121
    %2271 = vmatpush1.msra.mxu0 %v2120
    %2272 = vmatprep.subr.mxu0 0.0
    %2273 = vmatpush2.msra.mxu0 0.0
    %2274 = vmatprep.subr.mxu0 0.0
    %2275 = vmatpush2.msra.mxu0 0.0
    %2276 = vmatprep.subr.mxu0 0.0
    %2277 = vmatpush2.msra.mxu0 0.0
    %2278 = vmatprep.subr.mxu0 0.0
    %2279 = vmatpush2.msra.mxu0 0.0
    %2280 = vmatprep.subr.mxu0 0.0
    %2281 = vmatpush2.msra.mxu0 0.0
    %2282 = vmatprep.subr.mxu0 0.0
    %2283 = vmatpush2.msra.mxu0 0.0
    %2284 = vmatprep.subr.mxu0 0.0
    %2285 = vmatpush2.msra.mxu0 0.0
    %2286 = vmatprep.subr.mxu0 0.0
    %2287 = vmatpush2.msra.mxu0 0.0
    %2288 = vmatprep.subr.mxu0 0.0
    %2289 = vmatpush2.msra.mxu0 0.0
    %2290 = vmatprep.subr.mxu0 0.0
    %2291 = vmatpush2.msra.mxu0 0.0
    %2292 = vmatprep.subr.mxu0 0.0
    %2293 = vmatpush2.msra.mxu0 0.0
    %2294 = vmatprep.subr.mxu0 0.0
    %2295 = vmatpush2.msra.mxu0 0.0
    %2296 = vmatprep.subr.mxu0 0.0
    %2297 = vmatpush2.msra.mxu0 0.0
    %2298 = vmatprep.subr.mxu0 0.0
    %2299 = vmatpush2.msra.mxu0 0.0
    %2300 = vmatprep.subr.mxu0 0.0
    %2301 = vmatpush2.msra.mxu0 0.0
    %2302 = vmatprep.subr.mxu0 0.0
    %2303 = vmatpush2.msra.mxu0 0.0
    %2304 = vmatprep.mubr.f32.mxu0 0.0
    %2305 = vmatmul.mubr.f32.gmra.mxu0 %v2167
    %v2306 = vpop.f32.mrf.mxu0
    %v2307 = vadd.f32 %v2042, %v2306
    %v2308 = vpop.f32.mrf.mxu0
    %v2309 = vadd.f32 %v2042, %v2308
    %2310 = vdwg.mxu0
    %2311 = vmatprep.subr.mxu0 0.0
    %2312 = vmatpush1.msra.mxu0 0.0
    %2313 = vmatprep.subr.mxu0 0.0
    %2314 = vmatpush1.msra.mxu0 0.0
    %2315 = vmatprep.subr.mxu0 0.0
    %2316 = vmatpush1.msra.mxu0 0.0
    %2317 = vmatprep.subr.mxu0 0.0
    %2318 = vmatpush1.msra.mxu0 0.0
    %2319 = vmatprep.subr.mxu0 0.0
    %2320 = vmatpush1.msra.mxu0 0.0
    %2321 = vmatprep.subr.mxu0 0.0
    %2322 = vmatpush1.msra.mxu0 0.0
    %2323 = vmatprep.subr.mxu0 0.0
    %2324 = vmatpush1.msra.mxu0 0.0
    %2325 = vmatprep.subr.mxu0 0.0
    %2326 = vmatpush1.msra.mxu0 0.0
    %2327 = vmatprep.subr.mxu0 0.0
    %2328 = vmatpush1.msra.mxu0 0.0
    %2329 = vmatprep.subr.mxu0 0.0
    %2330 = vmatpush1.msra.mxu0 0.0
    %2331 = vmatprep.subr.mxu0 0.0
    %2332 = vmatpush1.msra.mxu0 0.0
    %2333 = vmatprep.subr.mxu0 0.0
    %2334 = vmatpush1.msra.mxu0 0.0
    %2335 = vmatprep.subr.mxu0 0.0
    %2336 = vmatpush1.msra.mxu0 0.0
    %2337 = vmatprep.subr.mxu0 %v2139
    %2338 = vmatpush1.msra.mxu0 %v2138
    %2339 = vmatprep.subr.mxu0 %v2131
    %2340 = vmatpush1.msra.mxu0 %v2130
    %2341 = vmatprep.subr.mxu0 %v2123
    %2342 = vmatpush1.msra.mxu0 %v2122
    %2343 = vmatprep.subr.mxu0 0.0
    %2344 = vmatpush2.msra.mxu0 0.0
    %2345 = vmatprep.subr.mxu0 0.0
    %2346 = vmatpush2.msra.mxu0 0.0
    %2347 = vmatprep.subr.mxu0 0.0
    %2348 = vmatpush2.msra.mxu0 0.0
    %2349 = vmatprep.subr.mxu0 0.0
    %2350 = vmatpush2.msra.mxu0 0.0
    %2351 = vmatprep.subr.mxu0 0.0
    %2352 = vmatpush2.msra.mxu0 0.0
    %2353 = vmatprep.subr.mxu0 0.0
    %2354 = vmatpush2.msra.mxu0 0.0
    %2355 = vmatprep.subr.mxu0 0.0
    %2356 = vmatpush2.msra.mxu0 0.0
    %2357 = vmatprep.subr.mxu0 0.0
    %2358 = vmatpush2.msra.mxu0 0.0
    %2359 = vmatprep.subr.mxu0 0.0
    %2360 = vmatpush2.msra.mxu0 0.0
    %2361 = vmatprep.subr.mxu0 0.0
    %2362 = vmatpush2.msra.mxu0 0.0
    %2363 = vmatprep.subr.mxu0 0.0
    %2364 = vmatpush2.msra.mxu0 0.0
    %2365 = vmatprep.subr.mxu0 0.0
    %2366 = vmatpush2.msra.mxu0 0.0
    %2367 = vmatprep.subr.mxu0 0.0
    %2368 = vmatpush2.msra.mxu0 0.0
    %2369 = vmatprep.subr.mxu0 0.0
    %2370 = vmatpush2.msra.mxu0 0.0
    %2371 = vmatprep.subr.mxu0 0.0
    %2372 = vmatpush2.msra.mxu0 0.0
    %2373 = vmatprep.subr.mxu0 0.0
    %2374 = vmatpush2.msra.mxu0 0.0
    %2375 = vmatprep.mubr.f32.mxu0 0.0
    %2376 = vmatmul.mubr.f32.gmra.mxu0 %v2167
    %v2377 = vpop.f32.mrf.mxu0
    %v2378 = vadd.f32 %v2042, %v2377
    %v2379 = vpop.f32.mrf.mxu0
    %v2380 = vadd.f32 %v2042, %v2379
    %2381 = vdwg.mxu0
    %2382 = vmatprep.subr.mxu0 0.0
    %2383 = vmatpush1.msra.mxu0 0.0
    %2384 = vmatprep.subr.mxu0 0.0
    %2385 = vmatpush1.msra.mxu0 0.0
    %2386 = vmatprep.subr.mxu0 0.0
    %2387 = vmatpush1.msra.mxu0 0.0
    %2388 = vmatprep.subr.mxu0 0.0
    %2389 = vmatpush1.msra.mxu0 0.0
    %2390 = vmatprep.subr.mxu0 0.0
    %2391 = vmatpush1.msra.mxu0 0.0
    %2392 = vmatprep.subr.mxu0 0.0
    %2393 = vmatpush1.msra.mxu0 0.0
    %2394 = vmatprep.subr.mxu0 0.0
    %2395 = vmatpush1.msra.mxu0 0.0
    %2396 = vmatprep.subr.mxu0 0.0
    %2397 = vmatpush1.msra.mxu0 0.0
    %2398 = vmatprep.subr.mxu0 0.0
    %2399 = vmatpush1.msra.mxu0 0.0
    %2400 = vmatprep.subr.mxu0 0.0
    %2401 = vmatpush1.msra.mxu0 0.0
    %2402 = vmatprep.subr.mxu0 0.0
    %2403 = vmatpush1.msra.mxu0 0.0
    %2404 = vmatprep.subr.mxu0 0.0
    %2405 = vmatpush1.msra.mxu0 0.0
    %2406 = vmatprep.subr.mxu0 0.0
    %2407 = vmatpush1.msra.mxu0 0.0
    %2408 = vmatprep.subr.mxu0 %v2141
    %2409 = vmatpush1.msra.mxu0 %v2140
    %2410 = vmatprep.subr.mxu0 %v2133
    %2411 = vmatpush1.msra.mxu0 %v2132
    %2412 = vmatprep.subr.mxu0 %v2125
    %2413 = vmatpush1.msra.mxu0 %v2124
    %2414 = vmatprep.subr.mxu0 0.0
    %2415 = vmatpush2.msra.mxu0 0.0
    %2416 = vmatprep.subr.mxu0 0.0
    %2417 = vmatpush2.msra.mxu0 0.0
    %2418 = vmatprep.subr.mxu0 0.0
    %2419 = vmatpush2.msra.mxu0 0.0
    %2420 = vmatprep.subr.mxu0 0.0
    %2421 = vmatpush2.msra.mxu0 0.0
    %2422 = vmatprep.subr.mxu0 0.0
    %2423 = vmatpush2.msra.mxu0 0.0
    %2424 = vmatprep.subr.mxu0 0.0
    %2425 = vmatpush2.msra.mxu0 0.0
    %2426 = vmatprep.subr.mxu0 0.0
    %2427 = vmatpush2.msra.mxu0 0.0
    %2428 = vmatprep.subr.mxu0 0.0
    %2429 = vmatpush2.msra.mxu0 0.0
    %2430 = vmatprep.subr.mxu0 0.0
    %2431 = vmatpush2.msra.mxu0 0.0
    %2432 = vmatprep.subr.mxu0 0.0
    %2433 = vmatpush2.msra.mxu0 0.0
    %2434 = vmatprep.subr.mxu0 0.0
    %2435 = vmatpush2.msra.mxu0 0.0
    %2436 = vmatprep.subr.mxu0 0.0
    %2437 = vmatpush2.msra.mxu0 0.0
    %2438 = vmatprep.subr.mxu0 0.0
    %2439 = vmatpush2.msra.mxu0 0.0
    %2440 = vmatprep.subr.mxu0 0.0
    %2441 = vmatpush2.msra.mxu0 0.0
    %2442 = vmatprep.subr.mxu0 0.0
    %2443 = vmatpush2.msra.mxu0 0.0
    %2444 = vmatprep.subr.mxu0 0.0
    %2445 = vmatpush2.msra.mxu0 0.0
    %2446 = vmatprep.mubr.f32.mxu0 0.0
    %2447 = vmatmul.mubr.f32.gmra.mxu0 %v2167
    %v2448 = vpop.f32.mrf.mxu0
    %v2449 = vadd.f32 %v2042, %v2448
    %v2450 = vpop.f32.mrf.mxu0
    %v2451 = vadd.f32 %v2042, %v2450
    %2452 = vdwg.mxu0
    %v2453 = vld [vmem:[#allocation6] sm:$0xff]
    %v2454 = vld [vmem:[#allocation6 + $0x8] sm:$0xff]
    %v2455 = vadd.f32 %v2453, %v2236
    %v2456 = vadd.f32 %v2454, %v2238
    %2457 = vst [vmem:[#allocation6] sm:$0xff] %v2455
    %2458 = vst [vmem:[#allocation6 + $0x8] sm:$0xff] %v2456
    %v2459 = vld [vmem:[%s63] sm:$0xff]
    %v2460 = vld [vmem:[%s63 + $0x8] sm:$0xff]
    %v2461 = vadd.f32 %v2459, %v2307
    %v2462 = vadd.f32 %v2460, %v2309
    %2463 = vst [vmem:[%s63] sm:$0xff] %v2461
    %2464 = vst [vmem:[%s63 + $0x8] sm:$0xff] %v2462
    %v2465 = vld [vmem:[%s74] sm:$0xff]
    %v2466 = vld [vmem:[%s74 + $0x8] sm:$0xff]
    %v2467 = vadd.f32 %v2465, %v2378
    %v2468 = vadd.f32 %v2466, %v2380
    %2469 = vst [vmem:[%s74] sm:$0xff] %v2467
    %2470 = vst [vmem:[%s74 + $0x8] sm:$0xff] %v2468
    %v2471 = vld [vmem:[%s85] sm:$0xff]
    %v2472 = vld [vmem:[%s85 + $0x8] sm:$0xff]
    %v2473 = vadd.f32 %v2471, %v2449
    %v2474 = vadd.f32 %v2472, %v2451
    %2475 = vst [vmem:[%s85] sm:$0xff] %v2473
    %2476 = vst [vmem:[%s85 + $0x8] sm:$0xff] %v2474
    %v2477 = vld [vmem:[#allocation6] sm:$0xff]
    %v2478 = vld [vmem:[#allocation6 + $0x8] sm:$0xff]
    %vm2479 = vcmp.gt.f32.partialorder %v2477, 0.0
    %vm2480 = vcmp.gt.f32.partialorder %v2478, 0.0
    %v2481 = vmul.f32 %v2477, 0.01
    %v2482 = vmul.f32 %v2478, 0.01
    %v2483 = vsel %vm2479, %v2477, %v2481
    %v2484 = vsel %vm2480, %v2478, %v2482
    %2485 = vst [vmem:[#allocation2 + $0x8] sm:$0xff] %v2483
    %2486 = vst [vmem:[#allocation2 + $0x10] sm:$0xff] %v2484
    %v2487 = vld [vmem:[%s63] sm:$0xff]
    %v2488 = vld [vmem:[%s63 + $0x8] sm:$0xff]
    %vm2489 = vcmp.gt.f32.partialorder %v2487, 0.0
    %vm2490 = vcmp.gt.f32.partialorder %v2488, 0.0
    %v2491 = vmul.f32 %v2487, 0.01
    %v2492 = vmul.f32 %v2488, 0.01
    %v2493 = vsel %vm2489, %v2487, %v2491
    %v2494 = vsel %vm2490, %v2488, %v2492
    %2495 = vst [vmem:[#allocation2 + $0x28] sm:$0xff] %v2493
    %2496 = vst [vmem:[#allocation2 + $0x30] sm:$0xff] %v2494
    %v2497 = vld [vmem:[%s74] sm:$0xff]
    %v2498 = vld [vmem:[%s74 + $0x8] sm:$0xff]
    %vm2499 = vcmp.gt.f32.partialorder %v2497, 0.0
    %vm2500 = vcmp.gt.f32.partialorder %v2498, 0.0
    %v2501 = vmul.f32 %v2497, 0.01
    %v2502 = vmul.f32 %v2498, 0.01
    %v2503 = vsel %vm2499, %v2497, %v2501
    %v2504 = vsel %vm2500, %v2498, %v2502
    %2505 = vst [vmem:[#allocation2 + $0x48] sm:$0xff] %v2503
    %2506 = vst [vmem:[#allocation2 + $0x50] sm:$0xff] %v2504
    %v2507 = vld [vmem:[%s85] sm:$0xff]
    %v2508 = vld [vmem:[%s85 + $0x8] sm:$0xff]
    %vm2509 = vcmp.gt.f32.partialorder %v2507, 0.0
    %vm2510 = vcmp.gt.f32.partialorder %v2508, 0.0
    %v2511 = vmul.f32 %v2507, 0.01
    %v2512 = vmul.f32 %v2508, 0.01
    %v2513 = vsel %vm2509, %v2507, %v2511
    %v2514 = vsel %vm2510, %v2508, %v2512
    %2515 = vst [vmem:[#allocation2 + $0x68] sm:$0xff] %v2513
    %2516 = vst [vmem:[#allocation2 + $0x70] sm:$0xff] %v2514
    %s2517 = scalar_lea.vmem %s1, 32
    %v2518 = vld [vmem:[%s2517] sm:$0xff]
    %s2519 = scalar_lea.vmem %s2, 32
    %v2520 = vld [vmem:[%s2519] sm:$0xff]
    %v2521 = vld [vmem:[#allocation2] sm:$0xff]
    %v2522 = vld [vmem:[#allocation2 + $0x8] sm:$0xff]
    %v2523 = vld [vmem:[#allocation2 + $0x10] sm:$0xff]
    %v2524 = vld [vmem:[#allocation2 + $0x20] sm:$0xff]
    %v2525 = vld [vmem:[#allocation2 + $0x28] sm:$0xff]
    %v2526 = vld [vmem:[#allocation2 + $0x30] sm:$0xff]
    %v2527 = vld [vmem:[#allocation2 + $0x40] sm:$0xff]
    %v2528 = vld [vmem:[#allocation2 + $0x48] sm:$0xff]
    %v2529 = vld [vmem:[#allocation2 + $0x50] sm:$0xff]
    %v2530 = vld [vmem:[#allocation2 + $0x60] sm:$0xff]
    %v2531 = vld [vmem:[#allocation2 + $0x68] sm:$0xff]
    %v2532 = vld [vmem:[#allocation2 + $0x70] sm:$0xff]
    %v2533 = vld [vmem:[#allocation2 + $0x18] sm:$0xff]
    %v2534 = vld [vmem:[#allocation2 + $0x38] sm:$0xff]
    %v2535 = vld [vmem:[#allocation2 + $0x58] sm:$0xff]
    %v2536 = vld [vmem:[#allocation2 + $0x8] sm:$0xff]
    %v2537 = vld [vmem:[#allocation2 + $0x10] sm:$0xff]
    %v2538 = vld [vmem:[#allocation2 + $0x18] sm:$0xff]
    %v2539 = vld [vmem:[#allocation2 + $0x20] sm:$0xff]
    %v2540 = vld [vmem:[#allocation2 + $0x28] sm:$0xff]
    %v2541 = vld [vmem:[#allocation2 + $0x30] sm:$0xff]
    %v2542 = vld [vmem:[#allocation2 + $0x38] sm:$0xff]
    %v2543 = vld [vmem:[#allocation2 + $0x40] sm:$0xff]
    %v2544 = vld [vmem:[#allocation2 + $0x48] sm:$0xff]
    %v2545 = vld [vmem:[#allocation2 + $0x50] sm:$0xff]
    %v2546 = vld [vmem:[#allocation2 + $0x58] sm:$0xff]
    %v2547 = vld [vmem:[#allocation2 + $0x60] sm:$0xff]
    %v2548 = vld [vmem:[#allocation2 + $0x68] sm:$0xff]
    %v2549 = vld [vmem:[#allocation2 + $0x70] sm:$0xff]
    %v2550 = vld [vmem:[#allocation2 + $0x78] sm:$0xff]
    %2565 = vrot.lane.b32.xlu0 %v2522, 125
    %v2566 = vpop.permute.xlu0 %2565
    %2567 = vrot.lane.b32.xlu0 %v2523, 125
    %v2568 = vpop.permute.xlu0 %2567
    %2569 = vrot.lane.b32.xlu0 %v2533, 125
    %v2570 = vpop.permute.xlu0 %2569
    %2571 = vrot.lane.b32.xlu0 %v2524, 125
    %v2572 = vpop.permute.xlu0 %2571
    %2573 = vrot.lane.b32.xlu0 %v2525, 125
    %v2574 = vpop.permute.xlu0 %2573
    %2575 = vrot.lane.b32.xlu0 %v2526, 125
    %v2576 = vpop.permute.xlu0 %2575
    %2577 = vrot.lane.b32.xlu0 %v2534, 125
    %v2578 = vpop.permute.xlu0 %2577
    %2579 = vrot.lane.b32.xlu0 %v2527, 125
    %v2580 = vpop.permute.xlu0 %2579
    %2581 = vrot.lane.b32.xlu0 %v2528, 125
    %v2582 = vpop.permute.xlu0 %2581
    %2583 = vrot.lane.b32.xlu0 %v2529, 125
    %v2584 = vpop.permute.xlu0 %2583
    %2585 = vrot.lane.b32.xlu0 %v2535, 125
    %v2586 = vpop.permute.xlu0 %2585
    %2587 = vrot.lane.b32.xlu0 %v2530, 125
    %v2588 = vpop.permute.xlu0 %2587
    %2589 = vrot.lane.b32.xlu0 %v2531, 125
    %v2590 = vpop.permute.xlu0 %2589
    %2591 = vrot.lane.b32.xlu0 %v2532, 125
    %v2592 = vpop.permute.xlu0 %2591
    %v2593 = vsel %vm761, %v2566, %v2568
    %v2594 = vsel %vm761, %v2568, %v2570
    %v2595 = vsel %vm761, %v2572, %v2574
    %v2596 = vsel %vm761, %v2574, %v2576
    %v2597 = vsel %vm761, %v2576, %v2578
    %v2598 = vsel %vm761, %v2580, %v2582
    %v2599 = vsel %vm761, %v2582, %v2584
    %v2600 = vsel %vm761, %v2584, %v2586
    %v2601 = vsel %vm761, %v2588, %v2590
    %v2602 = vsel %vm761, %v2590, %v2592
    %2618 = vrot.lane.b32.xlu0 %v2536, 122
    %v2619 = vpop.permute.xlu0 %2618
    %2620 = vrot.lane.b32.xlu0 %v2537, 122
    %v2621 = vpop.permute.xlu0 %2620
    %2622 = vrot.lane.b32.xlu0 %v2538, 122
    %v2623 = vpop.permute.xlu0 %2622
    %2624 = vrot.lane.b32.xlu0 %v2539, 122
    %v2625 = vpop.permute.xlu0 %2624
    %2626 = vrot.lane.b32.xlu0 %v2540, 122
    %v2627 = vpop.permute.xlu0 %2626
    %2628 = vrot.lane.b32.xlu0 %v2541, 122
    %v2629 = vpop.permute.xlu0 %2628
    %2630 = vrot.lane.b32.xlu0 %v2542, 122
    %v2631 = vpop.permute.xlu0 %2630
    %2632 = vrot.lane.b32.xlu0 %v2543, 122
    %v2633 = vpop.permute.xlu0 %2632
    %2634 = vrot.lane.b32.xlu0 %v2544, 122
    %v2635 = vpop.permute.xlu0 %2634
    %2636 = vrot.lane.b32.xlu0 %v2545, 122
    %v2637 = vpop.permute.xlu0 %2636
    %2638 = vrot.lane.b32.xlu0 %v2546, 122
    %v2639 = vpop.permute.xlu0 %2638
    %2640 = vrot.lane.b32.xlu0 %v2547, 122
    %v2641 = vpop.permute.xlu0 %2640
    %2642 = vrot.lane.b32.xlu0 %v2548, 122
    %v2643 = vpop.permute.xlu0 %2642
    %2644 = vrot.lane.b32.xlu0 %v2549, 122
    %v2645 = vpop.permute.xlu0 %2644
    %2646 = vrot.lane.b32.xlu0 %v2550, 122
    %v2647 = vpop.permute.xlu0 %2646
    %v2648 = vsel %vm817, %v2619, %v2621
    %v2649 = vsel %vm817, %v2621, %v2623
    %v2650 = vsel %vm817, %v2625, %v2627
    %v2651 = vsel %vm817, %v2627, %v2629
    %v2652 = vsel %vm817, %v2629, %v2631
    %v2653 = vsel %vm817, %v2633, %v2635
    %v2654 = vsel %vm817, %v2635, %v2637
    %v2655 = vsel %vm817, %v2637, %v2639
    %v2656 = vsel %vm817, %v2641, %v2643
    %v2657 = vsel %vm817, %v2643, %v2645
    %v2658 = vsel %vm817, %v2645, %v2647
    %2660 = vset.pattern.permute.xlu0 0
    %2661 = vperm.xlu0 %2660, %v2520
    %v2662 = vpop.permute.xlu0 %2661
    %2665 = vrot.lane.b32.xlu0 %v2521, 3
    %v2666 = vpop.permute.xlu0 %2665
    %2667 = vrot.lane.b32.xlu0 %v2522, 3
    %v2668 = vpop.permute.xlu0 %2667
    %2669 = vrot.lane.b32.xlu0 %v2523, 3
    %v2670 = vpop.permute.xlu0 %2669
    %2671 = vrot.lane.b32.xlu0 %v2524, 3
    %v2672 = vpop.permute.xlu0 %2671
    %2673 = vrot.lane.b32.xlu0 %v2525, 3
    %v2674 = vpop.permute.xlu0 %2673
    %2675 = vrot.lane.b32.xlu0 %v2526, 3
    %v2676 = vpop.permute.xlu0 %2675
    %2677 = vrot.lane.b32.xlu0 %v2527, 3
    %v2678 = vpop.permute.xlu0 %2677
    %2679 = vrot.lane.b32.xlu0 %v2528, 3
    %v2680 = vpop.permute.xlu0 %2679
    %2681 = vrot.lane.b32.xlu0 %v2529, 3
    %v2682 = vpop.permute.xlu0 %2681
    %2683 = vrot.lane.b32.xlu0 %v2530, 3
    %v2684 = vpop.permute.xlu0 %2683
    %2685 = vrot.lane.b32.xlu0 %v2531, 3
    %v2686 = vpop.permute.xlu0 %2685
    %2687 = vrot.lane.b32.xlu0 %v2532, 3
    %v2688 = vpop.permute.xlu0 %2687
    %2689 = vrot.lane.b32.xlu0 %v2566, 3
    %v2690 = vpop.permute.xlu0 %2689
    %2691 = vrot.lane.b32.xlu0 %v2593, 3
    %v2692 = vpop.permute.xlu0 %2691
    %2693 = vrot.lane.b32.xlu0 %v2594, 3
    %v2694 = vpop.permute.xlu0 %2693
    %2695 = vrot.lane.b32.xlu0 %v2595, 3
    %v2696 = vpop.permute.xlu0 %2695
    %2697 = vrot.lane.b32.xlu0 %v2596, 3
    %v2698 = vpop.permute.xlu0 %2697
    %2699 = vrot.lane.b32.xlu0 %v2597, 3
    %v2700 = vpop.permute.xlu0 %2699
    %2701 = vrot.lane.b32.xlu0 %v2598, 3
    %v2702 = vpop.permute.xlu0 %2701
    %2703 = vrot.lane.b32.xlu0 %v2599, 3
    %v2704 = vpop.permute.xlu0 %2703
    %2705 = vrot.lane.b32.xlu0 %v2600, 3
    %v2706 = vpop.permute.xlu0 %2705
    %2707 = vrot.lane.b32.xlu0 %v2601, 3
    %v2708 = vpop.permute.xlu0 %2707
    %2709 = vrot.lane.b32.xlu0 %v2602, 3
    %v2710 = vpop.permute.xlu0 %2709
    %2711 = vrot.lane.b32.xlu0 %v2592, 3
    %v2712 = vpop.permute.xlu0 %2711
    %2713 = vrot.lane.b32.xlu0 %v2619, 3
    %v2714 = vpop.permute.xlu0 %2713
    %2715 = vrot.lane.b32.xlu0 %v2648, 3
    %v2716 = vpop.permute.xlu0 %2715
    %2717 = vrot.lane.b32.xlu0 %v2649, 3
    %v2718 = vpop.permute.xlu0 %2717
    %2719 = vrot.lane.b32.xlu0 %v2650, 3
    %v2720 = vpop.permute.xlu0 %2719
    %2721 = vrot.lane.b32.xlu0 %v2651, 3
    %v2722 = vpop.permute.xlu0 %2721
    %2723 = vrot.lane.b32.xlu0 %v2652, 3
    %v2724 = vpop.permute.xlu0 %2723
    %2725 = vrot.lane.b32.xlu0 %v2653, 3
    %v2726 = vpop.permute.xlu0 %2725
    %2727 = vrot.lane.b32.xlu0 %v2654, 3
    %v2728 = vpop.permute.xlu0 %2727
    %2729 = vrot.lane.b32.xlu0 %v2655, 3
    %v2730 = vpop.permute.xlu0 %2729
    %2731 = vrot.lane.b32.xlu0 %v2656, 3
    %v2732 = vpop.permute.xlu0 %2731
    %2733 = vrot.lane.b32.xlu0 %v2657, 3
    %v2734 = vpop.permute.xlu0 %2733
    %2735 = vrot.lane.b32.xlu0 %v2658, 3
    %v2736 = vpop.permute.xlu0 %2735
    %v2737 = vsel %vm907, %v2666, %v2668
    %v2738 = vsel %vm907, %v2668, %v2670
    %v2739 = vsel %vm907, %v2672, %v2674
    %v2740 = vsel %vm907, %v2674, %v2676
    %v2741 = vsel %vm907, %v2678, %v2680
    %v2742 = vsel %vm907, %v2680, %v2682
    %v2743 = vsel %vm907, %v2684, %v2686
    %v2744 = vsel %vm907, %v2686, %v2688
    %v2745 = vsel %vm907, %v2690, %v2692
    %v2746 = vsel %vm907, %v2692, %v2694
    %v2747 = vsel %vm907, %v2696, %v2698
    %v2748 = vsel %vm907, %v2698, %v2700
    %v2749 = vsel %vm907, %v2702, %v2704
    %v2750 = vsel %vm907, %v2704, %v2706
    %v2751 = vsel %vm907, %v2708, %v2710
    %v2752 = vsel %vm907, %v2710, %v2712
    %v2753 = vsel %vm907, %v2714, %v2716
    %v2754 = vsel %vm907, %v2716, %v2718
    %v2755 = vsel %vm907, %v2720, %v2722
    %v2756 = vsel %vm907, %v2722, %v2724
    %v2757 = vsel %vm907, %v2726, %v2728
    %v2758 = vsel %vm907, %v2728, %v2730
    %v2759 = vsel %vm907, %v2732, %v2734
    %v2760 = vsel %vm907, %v2734, %v2736
    %v2786 = vsel %vm365, %v2518, 0
    %2788 = vmatprep.subr.mxu0 0.0
    %2789 = vmatpush1.msra.mxu0 0.0
    %2790 = vmatprep.subr.mxu0 0.0
    %2791 = vmatpush1.msra.mxu0 0.0
    %2792 = vmatprep.subr.mxu0 0.0
    %2793 = vmatpush1.msra.mxu0 0.0
    %2794 = vmatprep.subr.mxu0 0.0
    %2795 = vmatpush1.msra.mxu0 0.0
    %2796 = vmatprep.subr.mxu0 0.0
    %2797 = vmatpush1.msra.mxu0 0.0
    %2798 = vmatprep.subr.mxu0 0.0
    %2799 = vmatpush1.msra.mxu0 0.0
    %2800 = vmatprep.subr.mxu0 0.0
    %2801 = vmatpush1.msra.mxu0 0.0
    %2802 = vmatprep.subr.mxu0 0.0
    %2803 = vmatpush1.msra.mxu0 0.0
    %2804 = vmatprep.subr.mxu0 0.0
    %2805 = vmatpush1.msra.mxu0 0.0
    %2806 = vmatprep.subr.mxu0 0.0
    %2807 = vmatpush1.msra.mxu0 0.0
    %2808 = vmatprep.subr.mxu0 0.0
    %2809 = vmatpush1.msra.mxu0 0.0
    %2810 = vmatprep.subr.mxu0 0.0
    %2811 = vmatpush1.msra.mxu0 0.0
    %2812 = vmatprep.subr.mxu0 0.0
    %2813 = vmatpush1.msra.mxu0 0.0
    %2814 = vmatprep.subr.mxu0 %v2754
    %2815 = vmatpush1.msra.mxu0 %v2753
    %2816 = vmatprep.subr.mxu0 %v2746
    %2817 = vmatpush1.msra.mxu0 %v2745
    %2818 = vmatprep.subr.mxu0 %v2738
    %2819 = vmatpush1.msra.mxu0 %v2737
    %2820 = vmatprep.subr.mxu0 0.0
    %2821 = vmatpush2.msra.mxu0 0.0
    %2822 = vmatprep.subr.mxu0 0.0
    %2823 = vmatpush2.msra.mxu0 0.0
    %2824 = vmatprep.subr.mxu0 0.0
    %2825 = vmatpush2.msra.mxu0 0.0
    %2826 = vmatprep.subr.mxu0 0.0
    %2827 = vmatpush2.msra.mxu0 0.0
    %2828 = vmatprep.subr.mxu0 0.0
    %2829 = vmatpush2.msra.mxu0 0.0
    %2830 = vmatprep.subr.mxu0 0.0
    %2831 = vmatpush2.msra.mxu0 0.0
    %2832 = vmatprep.subr.mxu0 0.0
    %2833 = vmatpush2.msra.mxu0 0.0
    %2834 = vmatprep.subr.mxu0 0.0
    %2835 = vmatpush2.msra.mxu0 0.0
    %2836 = vmatprep.subr.mxu0 0.0
    %2837 = vmatpush2.msra.mxu0 0.0
    %2838 = vmatprep.subr.mxu0 0.0
    %2839 = vmatpush2.msra.mxu0 0.0
    %2840 = vmatprep.subr.mxu0 0.0
    %2841 = vmatpush2.msra.mxu0 0.0
    %2842 = vmatprep.subr.mxu0 0.0
    %2843 = vmatpush2.msra.mxu0 0.0
    %2844 = vmatprep.subr.mxu0 0.0
    %2845 = vmatpush2.msra.mxu0 0.0
    %2846 = vmatprep.subr.mxu0 0.0
    %2847 = vmatpush2.msra.mxu0 0.0
    %2848 = vmatprep.subr.mxu0 0.0
    %2849 = vmatpush2.msra.mxu0 0.0
    %2850 = vmatprep.subr.mxu0 0.0
    %2851 = vmatpush2.msra.mxu0 0.0
    %2852 = vmatprep.mubr.f32.mxu0 0.0
    %2853 = vmatmul.mubr.f32.gmra.mxu0 %v2786
    %v2854 = vpop.f32.mrf.mxu0
    %v2855 = vadd.f32 %v2662, %v2854
    %v2856 = vpop.f32.mrf.mxu0
    %v2857 = vadd.f32 %v2662, %v2856
    %2858 = vdwg.mxu0
    %2859 = vmatprep.subr.mxu0 0.0
    %2860 = vmatpush1.msra.mxu0 0.0
    %2861 = vmatprep.subr.mxu0 0.0
    %2862 = vmatpush1.msra.mxu0 0.0
    %2863 = vmatprep.subr.mxu0 0.0
    %2864 = vmatpush1.msra.mxu0 0.0
    %2865 = vmatprep.subr.mxu0 0.0
    %2866 = vmatpush1.msra.mxu0 0.0
    %2867 = vmatprep.subr.mxu0 0.0
    %2868 = vmatpush1.msra.mxu0 0.0
    %2869 = vmatprep.subr.mxu0 0.0
    %2870 = vmatpush1.msra.mxu0 0.0
    %2871 = vmatprep.subr.mxu0 0.0
    %2872 = vmatpush1.msra.mxu0 0.0
    %2873 = vmatprep.subr.mxu0 0.0
    %2874 = vmatpush1.msra.mxu0 0.0
    %2875 = vmatprep.subr.mxu0 0.0
    %2876 = vmatpush1.msra.mxu0 0.0
    %2877 = vmatprep.subr.mxu0 0.0
    %2878 = vmatpush1.msra.mxu0 0.0
    %2879 = vmatprep.subr.mxu0 0.0
    %2880 = vmatpush1.msra.mxu0 0.0
    %2881 = vmatprep.subr.mxu0 0.0
    %2882 = vmatpush1.msra.mxu0 0.0
    %2883 = vmatprep.subr.mxu0 0.0
    %2884 = vmatpush1.msra.mxu0 0.0
    %2885 = vmatprep.subr.mxu0 %v2756
    %2886 = vmatpush1.msra.mxu0 %v2755
    %2887 = vmatprep.subr.mxu0 %v2748
    %2888 = vmatpush1.msra.mxu0 %v2747
    %2889 = vmatprep.subr.mxu0 %v2740
    %2890 = vmatpush1.msra.mxu0 %v2739
    %2891 = vmatprep.subr.mxu0 0.0
    %2892 = vmatpush2.msra.mxu0 0.0
    %2893 = vmatprep.subr.mxu0 0.0
    %2894 = vmatpush2.msra.mxu0 0.0
    %2895 = vmatprep.subr.mxu0 0.0
    %2896 = vmatpush2.msra.mxu0 0.0
    %2897 = vmatprep.subr.mxu0 0.0
    %2898 = vmatpush2.msra.mxu0 0.0
    %2899 = vmatprep.subr.mxu0 0.0
    %2900 = vmatpush2.msra.mxu0 0.0
    %2901 = vmatprep.subr.mxu0 0.0
    %2902 = vmatpush2.msra.mxu0 0.0
    %2903 = vmatprep.subr.mxu0 0.0
    %2904 = vmatpush2.msra.mxu0 0.0
    %2905 = vmatprep.subr.mxu0 0.0
    %2906 = vmatpush2.msra.mxu0 0.0
    %2907 = vmatprep.subr.mxu0 0.0
    %2908 = vmatpush2.msra.mxu0 0.0
    %2909 = vmatprep.subr.mxu0 0.0
    %2910 = vmatpush2.msra.mxu0 0.0
    %2911 = vmatprep.subr.mxu0 0.0
    %2912 = vmatpush2.msra.mxu0 0.0
    %2913 = vmatprep.subr.mxu0 0.0
    %2914 = vmatpush2.msra.mxu0 0.0
    %2915 = vmatprep.subr.mxu0 0.0
    %2916 = vmatpush2.msra.mxu0 0.0
    %2917 = vmatprep.subr.mxu0 0.0
    %2918 = vmatpush2.msra.mxu0 0.0
    %2919 = vmatprep.subr.mxu0 0.0
    %2920 = vmatpush2.msra.mxu0 0.0
    %2921 = vmatprep.subr.mxu0 0.0
    %2922 = vmatpush2.msra.mxu0 0.0
    %2923 = vmatprep.mubr.f32.mxu0 0.0
    %2924 = vmatmul.mubr.f32.gmra.mxu0 %v2786
    %v2925 = vpop.f32.mrf.mxu0
    %v2926 = vadd.f32 %v2662, %v2925
    %v2927 = vpop.f32.mrf.mxu0
    %v2928 = vadd.f32 %v2662, %v2927
    %2929 = vdwg.mxu0
    %2930 = vmatprep.subr.mxu0 0.0
    %2931 = vmatpush1.msra.mxu0 0.0
    %2932 = vmatprep.subr.mxu0 0.0
    %2933 = vmatpush1.msra.mxu0 0.0
    %2934 = vmatprep.subr.mxu0 0.0
    %2935 = vmatpush1.msra.mxu0 0.0
    %2936 = vmatprep.subr.mxu0 0.0
    %2937 = vmatpush1.msra.mxu0 0.0
    %2938 = vmatprep.subr.mxu0 0.0
    %2939 = vmatpush1.msra.mxu0 0.0
    %2940 = vmatprep.subr.mxu0 0.0
    %2941 = vmatpush1.msra.mxu0 0.0
    %2942 = vmatprep.subr.mxu0 0.0
    %2943 = vmatpush1.msra.mxu0 0.0
    %2944 = vmatprep.subr.mxu0 0.0
    %2945 = vmatpush1.msra.mxu0 0.0
    %2946 = vmatprep.subr.mxu0 0.0
    %2947 = vmatpush1.msra.mxu0 0.0
    %2948 = vmatprep.subr.mxu0 0.0
    %2949 = vmatpush1.msra.mxu0 0.0
    %2950 = vmatprep.subr.mxu0 0.0
    %2951 = vmatpush1.msra.mxu0 0.0
    %2952 = vmatprep.subr.mxu0 0.0
    %2953 = vmatpush1.msra.mxu0 0.0
    %2954 = vmatprep.subr.mxu0 0.0
    %2955 = vmatpush1.msra.mxu0 0.0
    %2956 = vmatprep.subr.mxu0 %v2758
    %2957 = vmatpush1.msra.mxu0 %v2757
    %2958 = vmatprep.subr.mxu0 %v2750
    %2959 = vmatpush1.msra.mxu0 %v2749
    %2960 = vmatprep.subr.mxu0 %v2742
    %2961 = vmatpush1.msra.mxu0 %v2741
    %2962 = vmatprep.subr.mxu0 0.0
    %2963 = vmatpush2.msra.mxu0 0.0
    %2964 = vmatprep.subr.mxu0 0.0
    %2965 = vmatpush2.msra.mxu0 0.0
    %2966 = vmatprep.subr.mxu0 0.0
    %2967 = vmatpush2.msra.mxu0 0.0
    %2968 = vmatprep.subr.mxu0 0.0
    %2969 = vmatpush2.msra.mxu0 0.0
    %2970 = vmatprep.subr.mxu0 0.0
    %2971 = vmatpush2.msra.mxu0 0.0
    %2972 = vmatprep.subr.mxu0 0.0
    %2973 = vmatpush2.msra.mxu0 0.0
    %2974 = vmatprep.subr.mxu0 0.0
    %2975 = vmatpush2.msra.mxu0 0.0
    %2976 = vmatprep.subr.mxu0 0.0
    %2977 = vmatpush2.msra.mxu0 0.0
    %2978 = vmatprep.subr.mxu0 0.0
    %2979 = vmatpush2.msra.mxu0 0.0
    %2980 = vmatprep.subr.mxu0 0.0
    %2981 = vmatpush2.msra.mxu0 0.0
    %2982 = vmatprep.subr.mxu0 0.0
    %2983 = vmatpush2.msra.mxu0 0.0
    %2984 = vmatprep.subr.mxu0 0.0
    %2985 = vmatpush2.msra.mxu0 0.0
    %2986 = vmatprep.subr.mxu0 0.0
    %2987 = vmatpush2.msra.mxu0 0.0
    %2988 = vmatprep.subr.mxu0 0.0
    %2989 = vmatpush2.msra.mxu0 0.0
    %2990 = vmatprep.subr.mxu0 0.0
    %2991 = vmatpush2.msra.mxu0 0.0
    %2992 = vmatprep.subr.mxu0 0.0
    %2993 = vmatpush2.msra.mxu0 0.0
    %2994 = vmatprep.mubr.f32.mxu0 0.0
    %2995 = vmatmul.mubr.f32.gmra.mxu0 %v2786
    %v2996 = vpop.f32.mrf.mxu0
    %v2997 = vadd.f32 %v2662, %v2996
    %v2998 = vpop.f32.mrf.mxu0
    %v2999 = vadd.f32 %v2662, %v2998
    %3000 = vdwg.mxu0
    %3001 = vmatprep.subr.mxu0 0.0
    %3002 = vmatpush1.msra.mxu0 0.0
    %3003 = vmatprep.subr.mxu0 0.0
    %3004 = vmatpush1.msra.mxu0 0.0
    %3005 = vmatprep.subr.mxu0 0.0
    %3006 = vmatpush1.msra.mxu0 0.0
    %3007 = vmatprep.subr.mxu0 0.0
    %3008 = vmatpush1.msra.mxu0 0.0
    %3009 = vmatprep.subr.mxu0 0.0
    %3010 = vmatpush1.msra.mxu0 0.0
    %3011 = vmatprep.subr.mxu0 0.0
    %3012 = vmatpush1.msra.mxu0 0.0
    %3013 = vmatprep.subr.mxu0 0.0
    %3014 = vmatpush1.msra.mxu0 0.0
    %3015 = vmatprep.subr.mxu0 0.0
    %3016 = vmatpush1.msra.mxu0 0.0
    %3017 = vmatprep.subr.mxu0 0.0
    %3018 = vmatpush1.msra.mxu0 0.0
    %3019 = vmatprep.subr.mxu0 0.0
    %3020 = vmatpush1.msra.mxu0 0.0
    %3021 = vmatprep.subr.mxu0 0.0
    %3022 = vmatpush1.msra.mxu0 0.0
    %3023 = vmatprep.subr.mxu0 0.0
    %3024 = vmatpush1.msra.mxu0 0.0
    %3025 = vmatprep.subr.mxu0 0.0
    %3026 = vmatpush1.msra.mxu0 0.0
    %3027 = vmatprep.subr.mxu0 %v2760
    %3028 = vmatpush1.msra.mxu0 %v2759
    %3029 = vmatprep.subr.mxu0 %v2752
    %3030 = vmatpush1.msra.mxu0 %v2751
    %3031 = vmatprep.subr.mxu0 %v2744
    %3032 = vmatpush1.msra.mxu0 %v2743
    %3033 = vmatprep.subr.mxu0 0.0
    %3034 = vmatpush2.msra.mxu0 0.0
    %3035 = vmatprep.subr.mxu0 0.0
    %3036 = vmatpush2.msra.mxu0 0.0
    %3037 = vmatprep.subr.mxu0 0.0
    %3038 = vmatpush2.msra.mxu0 0.0
    %3039 = vmatprep.subr.mxu0 0.0
    %3040 = vmatpush2.msra.mxu0 0.0
    %3041 = vmatprep.subr.mxu0 0.0
    %3042 = vmatpush2.msra.mxu0 0.0
    %3043 = vmatprep.subr.mxu0 0.0
    %3044 = vmatpush2.msra.mxu0 0.0
    %3045 = vmatprep.subr.mxu0 0.0
    %3046 = vmatpush2.msra.mxu0 0.0
    %3047 = vmatprep.subr.mxu0 0.0
    %3048 = vmatpush2.msra.mxu0 0.0
    %3049 = vmatprep.subr.mxu0 0.0
    %3050 = vmatpush2.msra.mxu0 0.0
    %3051 = vmatprep.subr.mxu0 0.0
    %3052 = vmatpush2.msra.mxu0 0.0
    %3053 = vmatprep.subr.mxu0 0.0
    %3054 = vmatpush2.msra.mxu0 0.0
    %3055 = vmatprep.subr.mxu0 0.0
    %3056 = vmatpush2.msra.mxu0 0.0
    %3057 = vmatprep.subr.mxu0 0.0
    %3058 = vmatpush2.msra.mxu0 0.0
    %3059 = vmatprep.subr.mxu0 0.0
    %3060 = vmatpush2.msra.mxu0 0.0
    %3061 = vmatprep.subr.mxu0 0.0
    %3062 = vmatpush2.msra.mxu0 0.0
    %3063 = vmatprep.subr.mxu0 0.0
    %3064 = vmatpush2.msra.mxu0 0.0
    %3065 = vmatprep.mubr.f32.mxu0 0.0
    %3066 = vmatmul.mubr.f32.gmra.mxu0 %v2786
    %v3067 = vpop.f32.mrf.mxu0
    %v3068 = vadd.f32 %v2662, %v3067
    %v3069 = vpop.f32.mrf.mxu0
    %v3070 = vadd.f32 %v2662, %v3069
    %3071 = vdwg.mxu0
    %vm3072 = vcmp.gt.f32.partialorder %v2855, 0.0
    %vm3073 = vcmp.gt.f32.partialorder %v2857, 0.0
    %v3074 = vmul.f32 %v2855, 0.01
    %v3075 = vmul.f32 %v2857, 0.01
    %v3076 = vsel %vm3072, %v2855, %v3074
    %v3077 = vsel %vm3073, %v2857, %v3075
    %3078 = vst [vmem:[#allocation2 + $0x8] sm:$0xff] %v3076
    %3079 = vst [vmem:[#allocation2 + $0x10] sm:$0xff] %v3077
    %vm3080 = vcmp.gt.f32.partialorder %v2926, 0.0
    %vm3081 = vcmp.gt.f32.partialorder %v2928, 0.0
    %v3082 = vmul.f32 %v2926, 0.01
    %v3083 = vmul.f32 %v2928, 0.01
    %v3084 = vsel %vm3080, %v2926, %v3082
    %v3085 = vsel %vm3081, %v2928, %v3083
    %3086 = vst [vmem:[#allocation2 + $0x28] sm:$0xff] %v3084
    %3087 = vst [vmem:[#allocation2 + $0x30] sm:$0xff] %v3085
    %vm3088 = vcmp.gt.f32.partialorder %v2997, 0.0
    %vm3089 = vcmp.gt.f32.partialorder %v2999, 0.0
    %v3090 = vmul.f32 %v2997, 0.01
    %v3091 = vmul.f32 %v2999, 0.01
    %v3092 = vsel %vm3088, %v2997, %v3090
    %v3093 = vsel %vm3089, %v2999, %v3091
    %3094 = vst [vmem:[#allocation2 + $0x48] sm:$0xff] %v3092
    %3095 = vst [vmem:[#allocation2 + $0x50] sm:$0xff] %v3093
    %vm3096 = vcmp.gt.f32.partialorder %v3068, 0.0
    %vm3097 = vcmp.gt.f32.partialorder %v3070, 0.0
    %v3098 = vmul.f32 %v3068, 0.01
    %v3099 = vmul.f32 %v3070, 0.01
    %v3100 = vsel %vm3096, %v3068, %v3098
    %v3101 = vsel %vm3097, %v3070, %v3099
    %3102 = vst [vmem:[#allocation2 + $0x68] sm:$0xff] %v3100
    %3103 = vst [vmem:[#allocation2 + $0x70] sm:$0xff] %v3101
    %s3104 = scalar_lea.vmem %s1, 40
    %v3105 = vld [vmem:[%s3104] sm:$0xff]
    %s3106 = scalar_lea.vmem %s2, 40
    %v3107 = vld [vmem:[%s3106] sm:$0xff]
    %v3108 = vld [vmem:[#allocation2] sm:$0xff]
    %v3109 = vld [vmem:[#allocation2 + $0x8] sm:$0xff]
    %v3110 = vld [vmem:[#allocation2 + $0x10] sm:$0xff]
    %v3111 = vld [vmem:[#allocation2 + $0x20] sm:$0xff]
    %v3112 = vld [vmem:[#allocation2 + $0x28] sm:$0xff]
    %v3113 = vld [vmem:[#allocation2 + $0x30] sm:$0xff]
    %v3114 = vld [vmem:[#allocation2 + $0x40] sm:$0xff]
    %v3115 = vld [vmem:[#allocation2 + $0x48] sm:$0xff]
    %v3116 = vld [vmem:[#allocation2 + $0x50] sm:$0xff]
    %v3117 = vld [vmem:[#allocation2 + $0x60] sm:$0xff]
    %v3118 = vld [vmem:[#allocation2 + $0x68] sm:$0xff]
    %v3119 = vld [vmem:[#allocation2 + $0x70] sm:$0xff]
    %v3120 = vld [vmem:[#allocation2 + $0x18] sm:$0xff]
    %v3121 = vld [vmem:[#allocation2 + $0x38] sm:$0xff]
    %v3122 = vld [vmem:[#allocation2 + $0x58] sm:$0xff]
    %v3123 = vld [vmem:[#allocation2 + $0x8] sm:$0xff]
    %v3124 = vld [vmem:[#allocation2 + $0x10] sm:$0xff]
    %v3125 = vld [vmem:[#allocation2 + $0x18] sm:$0xff]
    %v3126 = vld [vmem:[#allocation2 + $0x20] sm:$0xff]
    %v3127 = vld [vmem:[#allocation2 + $0x28] sm:$0xff]
    %v3128 = vld [vmem:[#allocation2 + $0x30] sm:$0xff]
    %v3129 = vld [vmem:[#allocation2 + $0x38] sm:$0xff]
    %v3130 = vld [vmem:[#allocation2 + $0x40] sm:$0xff]
    %v3131 = vld [vmem:[#allocation2 + $0x48] sm:$0xff]
    %v3132 = vld [vmem:[#allocation2 + $0x50] sm:$0xff]
    %v3133 = vld [vmem:[#allocation2 + $0x58] sm:$0xff]
    %v3134 = vld [vmem:[#allocation2 + $0x60] sm:$0xff]
    %v3135 = vld [vmem:[#allocation2 + $0x68] sm:$0xff]
    %v3136 = vld [vmem:[#allocation2 + $0x70] sm:$0xff]
    %v3137 = vld [vmem:[#allocation2 + $0x78] sm:$0xff]
    %3152 = vrot.lane.b32.xlu0 %v3109, 116
    %v3153 = vpop.permute.xlu0 %3152
    %3154 = vrot.lane.b32.xlu0 %v3110, 116
    %v3155 = vpop.permute.xlu0 %3154
    %3156 = vrot.lane.b32.xlu0 %v3120, 116
    %v3157 = vpop.permute.xlu0 %3156
    %3158 = vrot.lane.b32.xlu0 %v3111, 116
    %v3159 = vpop.permute.xlu0 %3158
    %3160 = vrot.lane.b32.xlu0 %v3112, 116
    %v3161 = vpop.permute.xlu0 %3160
    %3162 = vrot.lane.b32.xlu0 %v3113, 116
    %v3163 = vpop.permute.xlu0 %3162
    %3164 = vrot.lane.b32.xlu0 %v3121, 116
    %v3165 = vpop.permute.xlu0 %3164
    %3166 = vrot.lane.b32.xlu0 %v3114, 116
    %v3167 = vpop.permute.xlu0 %3166
    %3168 = vrot.lane.b32.xlu0 %v3115, 116
    %v3169 = vpop.permute.xlu0 %3168
    %3170 = vrot.lane.b32.xlu0 %v3116, 116
    %v3171 = vpop.permute.xlu0 %3170
    %3172 = vrot.lane.b32.xlu0 %v3122, 116
    %v3173 = vpop.permute.xlu0 %3172
    %3174 = vrot.lane.b32.xlu0 %v3117, 116
    %v3175 = vpop.permute.xlu0 %3174
    %3176 = vrot.lane.b32.xlu0 %v3118, 116
    %v3177 = vpop.permute.xlu0 %3176
    %3178 = vrot.lane.b32.xlu0 %v3119, 116
    %v3179 = vpop.permute.xlu0 %3178
    %v3180 = vsel %vm2027, %v3153, %v3155
    %v3181 = vsel %vm2027, %v3155, %v3157
    %v3182 = vsel %vm2027, %v3159, %v3161
    %v3183 = vsel %vm2027, %v3161, %v3163
    %v3184 = vsel %vm2027, %v3163, %v3165
    %v3185 = vsel %vm2027, %v3167, %v3169
    %v3186 = vsel %vm2027, %v3169, %v3171
    %v3187 = vsel %vm2027, %v3171, %v3173
    %v3188 = vsel %vm2027, %v3175, %v3177
    %v3189 = vsel %vm2027, %v3177, %v3179
    %3205 = vrot.lane.b32.xlu0 %v3123, 104
    %v3206 = vpop.permute.xlu0 %3205
    %3207 = vrot.lane.b32.xlu0 %v3124, 104
    %v3208 = vpop.permute.xlu0 %3207
    %3209 = vrot.lane.b32.xlu0 %v3125, 104
    %v3210 = vpop.permute.xlu0 %3209
    %3211 = vrot.lane.b32.xlu0 %v3126, 104
    %v3212 = vpop.permute.xlu0 %3211
    %3213 = vrot.lane.b32.xlu0 %v3127, 104
    %v3214 = vpop.permute.xlu0 %3213
    %3215 = vrot.lane.b32.xlu0 %v3128, 104
    %v3216 = vpop.permute.xlu0 %3215
    %3217 = vrot.lane.b32.xlu0 %v3129, 104
    %v3218 = vpop.permute.xlu0 %3217
    %3219 = vrot.lane.b32.xlu0 %v3130, 104
    %v3220 = vpop.permute.xlu0 %3219
    %3221 = vrot.lane.b32.xlu0 %v3131, 104
    %v3222 = vpop.permute.xlu0 %3221
    %3223 = vrot.lane.b32.xlu0 %v3132, 104
    %v3224 = vpop.permute.xlu0 %3223
    %3225 = vrot.lane.b32.xlu0 %v3133, 104
    %v3226 = vpop.permute.xlu0 %3225
    %3227 = vrot.lane.b32.xlu0 %v3134, 104
    %v3228 = vpop.permute.xlu0 %3227
    %3229 = vrot.lane.b32.xlu0 %v3135, 104
    %v3230 = vpop.permute.xlu0 %3229
    %3231 = vrot.lane.b32.xlu0 %v3136, 104
    %v3232 = vpop.permute.xlu0 %3231
    %3233 = vrot.lane.b32.xlu0 %v3137, 104
    %v3234 = vpop.permute.xlu0 %3233
    %vm3235 = vcmask 850944
    %v3236 = vsel %vm3235, %v3206, %v3208
    %v3237 = vsel %vm3235, %v3208, %v3210
    %v3238 = vsel %vm3235, %v3212, %v3214
    %v3239 = vsel %vm3235, %v3214, %v3216
    %v3240 = vsel %vm3235, %v3216, %v3218
    %v3241 = vsel %vm3235, %v3220, %v3222
    %v3242 = vsel %vm3235, %v3222, %v3224
    %v3243 = vsel %vm3235, %v3224, %v3226
    %v3244 = vsel %vm3235, %v3228, %v3230
    %v3245 = vsel %vm3235, %v3230, %v3232
    %v3246 = vsel %vm3235, %v3232, %v3234
    %3248 = vset.pattern.permute.xlu0 0
    %3249 = vperm.xlu0 %3248, %v3107
    %v3250 = vpop.permute.xlu0 %3249
    %3253 = vrot.lane.b32.xlu0 %v3108, 12
    %v3254 = vpop.permute.xlu0 %3253
    %3255 = vrot.lane.b32.xlu0 %v3109, 12
    %v3256 = vpop.permute.xlu0 %3255
    %3257 = vrot.lane.b32.xlu0 %v3110, 12
    %v3258 = vpop.permute.xlu0 %3257
    %3259 = vrot.lane.b32.xlu0 %v3111, 12
    %v3260 = vpop.permute.xlu0 %3259
    %3261 = vrot.lane.b32.xlu0 %v3112, 12
    %v3262 = vpop.permute.xlu0 %3261
    %3263 = vrot.lane.b32.xlu0 %v3113, 12
    %v3264 = vpop.permute.xlu0 %3263
    %3265 = vrot.lane.b32.xlu0 %v3114, 12
    %v3266 = vpop.permute.xlu0 %3265
    %3267 = vrot.lane.b32.xlu0 %v3115, 12
    %v3268 = vpop.permute.xlu0 %3267
    %3269 = vrot.lane.b32.xlu0 %v3116, 12
    %v3270 = vpop.permute.xlu0 %3269
    %3271 = vrot.lane.b32.xlu0 %v3117, 12
    %v3272 = vpop.permute.xlu0 %3271
    %3273 = vrot.lane.b32.xlu0 %v3118, 12
    %v3274 = vpop.permute.xlu0 %3273
    %3275 = vrot.lane.b32.xlu0 %v3119, 12
    %v3276 = vpop.permute.xlu0 %3275
    %3277 = vrot.lane.b32.xlu0 %v3153, 12
    %v3278 = vpop.permute.xlu0 %3277
    %3279 = vrot.lane.b32.xlu0 %v3180, 12
    %v3280 = vpop.permute.xlu0 %3279
    %3281 = vrot.lane.b32.xlu0 %v3181, 12
    %v3282 = vpop.permute.xlu0 %3281
    %3283 = vrot.lane.b32.xlu0 %v3182, 12
    %v3284 = vpop.permute.xlu0 %3283
    %3285 = vrot.lane.b32.xlu0 %v3183, 12
    %v3286 = vpop.permute.xlu0 %3285
    %3287 = vrot.lane.b32.xlu0 %v3184, 12
    %v3288 = vpop.permute.xlu0 %3287
    %3289 = vrot.lane.b32.xlu0 %v3185, 12
    %v3290 = vpop.permute.xlu0 %3289
    %3291 = vrot.lane.b32.xlu0 %v3186, 12
    %v3292 = vpop.permute.xlu0 %3291
    %3293 = vrot.lane.b32.xlu0 %v3187, 12
    %v3294 = vpop.permute.xlu0 %3293
    %3295 = vrot.lane.b32.xlu0 %v3188, 12
    %v3296 = vpop.permute.xlu0 %3295
    %3297 = vrot.lane.b32.xlu0 %v3189, 12
    %v3298 = vpop.permute.xlu0 %3297
    %3299 = vrot.lane.b32.xlu0 %v3179, 12
    %v3300 = vpop.permute.xlu0 %3299
    %3301 = vrot.lane.b32.xlu0 %v3206, 12
    %v3302 = vpop.permute.xlu0 %3301
    %3303 = vrot.lane.b32.xlu0 %v3236, 12
    %v3304 = vpop.permute.xlu0 %3303
    %3305 = vrot.lane.b32.xlu0 %v3237, 12
    %v3306 = vpop.permute.xlu0 %3305
    %3307 = vrot.lane.b32.xlu0 %v3238, 12
    %v3308 = vpop.permute.xlu0 %3307
    %3309 = vrot.lane.b32.xlu0 %v3239, 12
    %v3310 = vpop.permute.xlu0 %3309
    %3311 = vrot.lane.b32.xlu0 %v3240, 12
    %v3312 = vpop.permute.xlu0 %3311
    %3313 = vrot.lane.b32.xlu0 %v3241, 12
    %v3314 = vpop.permute.xlu0 %3313
    %3315 = vrot.lane.b32.xlu0 %v3242, 12
    %v3316 = vpop.permute.xlu0 %3315
    %3317 = vrot.lane.b32.xlu0 %v3243, 12
    %v3318 = vpop.permute.xlu0 %3317
    %3319 = vrot.lane.b32.xlu0 %v3244, 12
    %v3320 = vpop.permute.xlu0 %3319
    %3321 = vrot.lane.b32.xlu0 %v3245, 12
    %v3322 = vpop.permute.xlu0 %3321
    %3323 = vrot.lane.b32.xlu0 %v3246, 12
    %v3324 = vpop.permute.xlu0 %3323
    %vm3325 = vcmask 97280
    %v3326 = vsel %vm3325, %v3254, %v3256
    %v3327 = vsel %vm3325, %v3256, %v3258
    %v3328 = vsel %vm3325, %v3260, %v3262
    %v3329 = vsel %vm3325, %v3262, %v3264
    %v3330 = vsel %vm3325, %v3266, %v3268
    %v3331 = vsel %vm3325, %v3268, %v3270
    %v3332 = vsel %vm3325, %v3272, %v3274
    %v3333 = vsel %vm3325, %v3274, %v3276
    %v3334 = vsel %vm3325, %v3278, %v3280
    %v3335 = vsel %vm3325, %v3280, %v3282
    %v3336 = vsel %vm3325, %v3284, %v3286
    %v3337 = vsel %vm3325, %v3286, %v3288
    %v3338 = vsel %vm3325, %v3290, %v3292
    %v3339 = vsel %vm3325, %v3292, %v3294
    %v3340 = vsel %vm3325, %v3296, %v3298
    %v3341 = vsel %vm3325, %v3298, %v3300
    %v3342 = vsel %vm3325, %v3302, %v3304
    %v3343 = vsel %vm3325, %v3304, %v3306
    %v3344 = vsel %vm3325, %v3308, %v3310
    %v3345 = vsel %vm3325, %v3310, %v3312
    %v3346 = vsel %vm3325, %v3314, %v3316
    %v3347 = vsel %vm3325, %v3316, %v3318
    %v3348 = vsel %vm3325, %v3320, %v3322
    %v3349 = vsel %vm3325, %v3322, %v3324
    %v3375 = vsel %vm365, %v3105, 0
    %3377 = vmatprep.subr.mxu0 0.0
    %3378 = vmatpush1.msra.mxu0 0.0
    %3379 = vmatprep.subr.mxu0 0.0
    %3380 = vmatpush1.msra.mxu0 0.0
    %3381 = vmatprep.subr.mxu0 0.0
    %3382 = vmatpush1.msra.mxu0 0.0
    %3383 = vmatprep.subr.mxu0 0.0
    %3384 = vmatpush1.msra.mxu0 0.0
    %3385 = vmatprep.subr.mxu0 0.0
    %3386 = vmatpush1.msra.mxu0 0.0
    %3387 = vmatprep.subr.mxu0 0.0
    %3388 = vmatpush1.msra.mxu0 0.0
    %3389 = vmatprep.subr.mxu0 0.0
    %3390 = vmatpush1.msra.mxu0 0.0
    %3391 = vmatprep.subr.mxu0 0.0
    %3392 = vmatpush1.msra.mxu0 0.0
    %3393 = vmatprep.subr.mxu0 0.0
    %3394 = vmatpush1.msra.mxu0 0.0
    %3395 = vmatprep.subr.mxu0 0.0
    %3396 = vmatpush1.msra.mxu0 0.0
    %3397 = vmatprep.subr.mxu0 0.0
    %3398 = vmatpush1.msra.mxu0 0.0
    %3399 = vmatprep.subr.mxu0 0.0
    %3400 = vmatpush1.msra.mxu0 0.0
    %3401 = vmatprep.subr.mxu0 0.0
    %3402 = vmatpush1.msra.mxu0 0.0
    %3403 = vmatprep.subr.mxu0 %v3343
    %3404 = vmatpush1.msra.mxu0 %v3342
    %3405 = vmatprep.subr.mxu0 %v3335
    %3406 = vmatpush1.msra.mxu0 %v3334
    %3407 = vmatprep.subr.mxu0 %v3327
    %3408 = vmatpush1.msra.mxu0 %v3326
    %3409 = vmatprep.subr.mxu0 0.0
    %3410 = vmatpush2.msra.mxu0 0.0
    %3411 = vmatprep.subr.mxu0 0.0
    %3412 = vmatpush2.msra.mxu0 0.0
    %3413 = vmatprep.subr.mxu0 0.0
    %3414 = vmatpush2.msra.mxu0 0.0
    %3415 = vmatprep.subr.mxu0 0.0
    %3416 = vmatpush2.msra.mxu0 0.0
    %3417 = vmatprep.subr.mxu0 0.0
    %3418 = vmatpush2.msra.mxu0 0.0
    %3419 = vmatprep.subr.mxu0 0.0
    %3420 = vmatpush2.msra.mxu0 0.0
    %3421 = vmatprep.subr.mxu0 0.0
    %3422 = vmatpush2.msra.mxu0 0.0
    %3423 = vmatprep.subr.mxu0 0.0
    %3424 = vmatpush2.msra.mxu0 0.0
    %3425 = vmatprep.subr.mxu0 0.0
    %3426 = vmatpush2.msra.mxu0 0.0
    %3427 = vmatprep.subr.mxu0 0.0
    %3428 = vmatpush2.msra.mxu0 0.0
    %3429 = vmatprep.subr.mxu0 0.0
    %3430 = vmatpush2.msra.mxu0 0.0
    %3431 = vmatprep.subr.mxu0 0.0
    %3432 = vmatpush2.msra.mxu0 0.0
    %3433 = vmatprep.subr.mxu0 0.0
    %3434 = vmatpush2.msra.mxu0 0.0
    %3435 = vmatprep.subr.mxu0 0.0
    %3436 = vmatpush2.msra.mxu0 0.0
    %3437 = vmatprep.subr.mxu0 0.0
    %3438 = vmatpush2.msra.mxu0 0.0
    %3439 = vmatprep.subr.mxu0 0.0
    %3440 = vmatpush2.msra.mxu0 0.0
    %3441 = vmatprep.mubr.f32.mxu0 0.0
    %3442 = vmatmul.mubr.f32.gmra.mxu0 %v3375
    %v3443 = vpop.f32.mrf.mxu0
    %v3444 = vadd.f32 %v3250, %v3443
    %v3445 = vpop.f32.mrf.mxu0
    %v3446 = vadd.f32 %v3250, %v3445
    %3447 = vdwg.mxu0
    %3448 = vmatprep.subr.mxu0 0.0
    %3449 = vmatpush1.msra.mxu0 0.0
    %3450 = vmatprep.subr.mxu0 0.0
    %3451 = vmatpush1.msra.mxu0 0.0
    %3452 = vmatprep.subr.mxu0 0.0
    %3453 = vmatpush1.msra.mxu0 0.0
    %3454 = vmatprep.subr.mxu0 0.0
    %3455 = vmatpush1.msra.mxu0 0.0
    %3456 = vmatprep.subr.mxu0 0.0
    %3457 = vmatpush1.msra.mxu0 0.0
    %3458 = vmatprep.subr.mxu0 0.0
    %3459 = vmatpush1.msra.mxu0 0.0
    %3460 = vmatprep.subr.mxu0 0.0
    %3461 = vmatpush1.msra.mxu0 0.0
    %3462 = vmatprep.subr.mxu0 0.0
    %3463 = vmatpush1.msra.mxu0 0.0
    %3464 = vmatprep.subr.mxu0 0.0
    %3465 = vmatpush1.msra.mxu0 0.0
    %3466 = vmatprep.subr.mxu0 0.0
    %3467 = vmatpush1.msra.mxu0 0.0
    %3468 = vmatprep.subr.mxu0 0.0
    %3469 = vmatpush1.msra.mxu0 0.0
    %3470 = vmatprep.subr.mxu0 0.0
    %3471 = vmatpush1.msra.mxu0 0.0
    %3472 = vmatprep.subr.mxu0 0.0
    %3473 = vmatpush1.msra.mxu0 0.0
    %3474 = vmatprep.subr.mxu0 %v3345
    %3475 = vmatpush1.msra.mxu0 %v3344
    %3476 = vmatprep.subr.mxu0 %v3337
    %3477 = vmatpush1.msra.mxu0 %v3336
    %3478 = vmatprep.subr.mxu0 %v3329
    %3479 = vmatpush1.msra.mxu0 %v3328
    %3480 = vmatprep.subr.mxu0 0.0
    %3481 = vmatpush2.msra.mxu0 0.0
    %3482 = vmatprep.subr.mxu0 0.0
    %3483 = vmatpush2.msra.mxu0 0.0
    %3484 = vmatprep.subr.mxu0 0.0
    %3485 = vmatpush2.msra.mxu0 0.0
    %3486 = vmatprep.subr.mxu0 0.0
    %3487 = vmatpush2.msra.mxu0 0.0
    %3488 = vmatprep.subr.mxu0 0.0
    %3489 = vmatpush2.msra.mxu0 0.0
    %3490 = vmatprep.subr.mxu0 0.0
    %3491 = vmatpush2.msra.mxu0 0.0
    %3492 = vmatprep.subr.mxu0 0.0
    %3493 = vmatpush2.msra.mxu0 0.0
    %3494 = vmatprep.subr.mxu0 0.0
    %3495 = vmatpush2.msra.mxu0 0.0
    %3496 = vmatprep.subr.mxu0 0.0
    %3497 = vmatpush2.msra.mxu0 0.0
    %3498 = vmatprep.subr.mxu0 0.0
    %3499 = vmatpush2.msra.mxu0 0.0
    %3500 = vmatprep.subr.mxu0 0.0
    %3501 = vmatpush2.msra.mxu0 0.0
    %3502 = vmatprep.subr.mxu0 0.0
    %3503 = vmatpush2.msra.mxu0 0.0
    %3504 = vmatprep.subr.mxu0 0.0
    %3505 = vmatpush2.msra.mxu0 0.0
    %3506 = vmatprep.subr.mxu0 0.0
    %3507 = vmatpush2.msra.mxu0 0.0
    %3508 = vmatprep.subr.mxu0 0.0
    %3509 = vmatpush2.msra.mxu0 0.0
    %3510 = vmatprep.subr.mxu0 0.0
    %3511 = vmatpush2.msra.mxu0 0.0
    %3512 = vmatprep.mubr.f32.mxu0 0.0
    %3513 = vmatmul.mubr.f32.gmra.mxu0 %v3375
    %v3514 = vpop.f32.mrf.mxu0
    %v3515 = vadd.f32 %v3250, %v3514
    %v3516 = vpop.f32.mrf.mxu0
    %v3517 = vadd.f32 %v3250, %v3516
    %3518 = vdwg.mxu0
    %3519 = vmatprep.subr.mxu0 0.0
    %3520 = vmatpush1.msra.mxu0 0.0
    %3521 = vmatprep.subr.mxu0 0.0
    %3522 = vmatpush1.msra.mxu0 0.0
    %3523 = vmatprep.subr.mxu0 0.0
    %3524 = vmatpush1.msra.mxu0 0.0
    %3525 = vmatprep.subr.mxu0 0.0
    %3526 = vmatpush1.msra.mxu0 0.0
    %3527 = vmatprep.subr.mxu0 0.0
    %3528 = vmatpush1.msra.mxu0 0.0
    %3529 = vmatprep.subr.mxu0 0.0
    %3530 = vmatpush1.msra.mxu0 0.0
    %3531 = vmatprep.subr.mxu0 0.0
    %3532 = vmatpush1.msra.mxu0 0.0
    %3533 = vmatprep.subr.mxu0 0.0
    %3534 = vmatpush1.msra.mxu0 0.0
    %3535 = vmatprep.subr.mxu0 0.0
    %3536 = vmatpush1.msra.mxu0 0.0
    %3537 = vmatprep.subr.mxu0 0.0
    %3538 = vmatpush1.msra.mxu0 0.0
    %3539 = vmatprep.subr.mxu0 0.0
    %3540 = vmatpush1.msra.mxu0 0.0
    %3541 = vmatprep.subr.mxu0 0.0
    %3542 = vmatpush1.msra.mxu0 0.0
    %3543 = vmatprep.subr.mxu0 0.0
    %3544 = vmatpush1.msra.mxu0 0.0
    %3545 = vmatprep.subr.mxu0 %v3347
    %3546 = vmatpush1.msra.mxu0 %v3346
    %3547 = vmatprep.subr.mxu0 %v3339
    %3548 = vmatpush1.msra.mxu0 %v3338
    %3549 = vmatprep.subr.mxu0 %v3331
    %3550 = vmatpush1.msra.mxu0 %v3330
    %3551 = vmatprep.subr.mxu0 0.0
    %3552 = vmatpush2.msra.mxu0 0.0
    %3553 = vmatprep.subr.mxu0 0.0
    %3554 = vmatpush2.msra.mxu0 0.0
    %3555 = vmatprep.subr.mxu0 0.0
    %3556 = vmatpush2.msra.mxu0 0.0
    %3557 = vmatprep.subr.mxu0 0.0
    %3558 = vmatpush2.msra.mxu0 0.0
    %3559 = vmatprep.subr.mxu0 0.0
    %3560 = vmatpush2.msra.mxu0 0.0
    %3561 = vmatprep.subr.mxu0 0.0
    %3562 = vmatpush2.msra.mxu0 0.0
    %3563 = vmatprep.subr.mxu0 0.0
    %3564 = vmatpush2.msra.mxu0 0.0
    %3565 = vmatprep.subr.mxu0 0.0
    %3566 = vmatpush2.msra.mxu0 0.0
    %3567 = vmatprep.subr.mxu0 0.0
    %3568 = vmatpush2.msra.mxu0 0.0
    %3569 = vmatprep.subr.mxu0 0.0
    %3570 = vmatpush2.msra.mxu0 0.0
    %3571 = vmatprep.subr.mxu0 0.0
    %3572 = vmatpush2.msra.mxu0 0.0
    %3573 = vmatprep.subr.mxu0 0.0
    %3574 = vmatpush2.msra.mxu0 0.0
    %3575 = vmatprep.subr.mxu0 0.0
    %3576 = vmatpush2.msra.mxu0 0.0
    %3577 = vmatprep.subr.mxu0 0.0
    %3578 = vmatpush2.msra.mxu0 0.0
    %3579 = vmatprep.subr.mxu0 0.0
    %3580 = vmatpush2.msra.mxu0 0.0
    %3581 = vmatprep.subr.mxu0 0.0
    %3582 = vmatpush2.msra.mxu0 0.0
    %3583 = vmatprep.mubr.f32.mxu0 0.0
    %3584 = vmatmul.mubr.f32.gmra.mxu0 %v3375
    %v3585 = vpop.f32.mrf.mxu0
    %v3586 = vadd.f32 %v3250, %v3585
    %v3587 = vpop.f32.mrf.mxu0
    %v3588 = vadd.f32 %v3250, %v3587
    %3589 = vdwg.mxu0
    %3590 = vmatprep.subr.mxu0 0.0
    %3591 = vmatpush1.msra.mxu0 0.0
    %3592 = vmatprep.subr.mxu0 0.0
    %3593 = vmatpush1.msra.mxu0 0.0
    %3594 = vmatprep.subr.mxu0 0.0
    %3595 = vmatpush1.msra.mxu0 0.0
    %3596 = vmatprep.subr.mxu0 0.0
    %3597 = vmatpush1.msra.mxu0 0.0
    %3598 = vmatprep.subr.mxu0 0.0
    %3599 = vmatpush1.msra.mxu0 0.0
    %3600 = vmatprep.subr.mxu0 0.0
    %3601 = vmatpush1.msra.mxu0 0.0
    %3602 = vmatprep.subr.mxu0 0.0
    %3603 = vmatpush1.msra.mxu0 0.0
    %3604 = vmatprep.subr.mxu0 0.0
    %3605 = vmatpush1.msra.mxu0 0.0
    %3606 = vmatprep.subr.mxu0 0.0
    %3607 = vmatpush1.msra.mxu0 0.0
    %3608 = vmatprep.subr.mxu0 0.0
    %3609 = vmatpush1.msra.mxu0 0.0
    %3610 = vmatprep.subr.mxu0 0.0
    %3611 = vmatpush1.msra.mxu0 0.0
    %3612 = vmatprep.subr.mxu0 0.0
    %3613 = vmatpush1.msra.mxu0 0.0
    %3614 = vmatprep.subr.mxu0 0.0
    %3615 = vmatpush1.msra.mxu0 0.0
    %3616 = vmatprep.subr.mxu0 %v3349
    %3617 = vmatpush1.msra.mxu0 %v3348
    %3618 = vmatprep.subr.mxu0 %v3341
    %3619 = vmatpush1.msra.mxu0 %v3340
    %3620 = vmatprep.subr.mxu0 %v3333
    %3621 = vmatpush1.msra.mxu0 %v3332
    %3622 = vmatprep.subr.mxu0 0.0
    %3623 = vmatpush2.msra.mxu0 0.0
    %3624 = vmatprep.subr.mxu0 0.0
    %3625 = vmatpush2.msra.mxu0 0.0
    %3626 = vmatprep.subr.mxu0 0.0
    %3627 = vmatpush2.msra.mxu0 0.0
    %3628 = vmatprep.subr.mxu0 0.0
    %3629 = vmatpush2.msra.mxu0 0.0
    %3630 = vmatprep.subr.mxu0 0.0
    %3631 = vmatpush2.msra.mxu0 0.0
    %3632 = vmatprep.subr.mxu0 0.0
    %3633 = vmatpush2.msra.mxu0 0.0
    %3634 = vmatprep.subr.mxu0 0.0
    %3635 = vmatpush2.msra.mxu0 0.0
    %3636 = vmatprep.subr.mxu0 0.0
    %3637 = vmatpush2.msra.mxu0 0.0
    %3638 = vmatprep.subr.mxu0 0.0
    %3639 = vmatpush2.msra.mxu0 0.0
    %3640 = vmatprep.subr.mxu0 0.0
    %3641 = vmatpush2.msra.mxu0 0.0
    %3642 = vmatprep.subr.mxu0 0.0
    %3643 = vmatpush2.msra.mxu0 0.0
    %3644 = vmatprep.subr.mxu0 0.0
    %3645 = vmatpush2.msra.mxu0 0.0
    %3646 = vmatprep.subr.mxu0 0.0
    %3647 = vmatpush2.msra.mxu0 0.0
    %3648 = vmatprep.subr.mxu0 0.0
    %3649 = vmatpush2.msra.mxu0 0.0
    %3650 = vmatprep.subr.mxu0 0.0
    %3651 = vmatpush2.msra.mxu0 0.0
    %3652 = vmatprep.subr.mxu0 0.0
    %3653 = vmatpush2.msra.mxu0 0.0
    %3654 = vmatprep.mubr.f32.mxu0 0.0
    %3655 = vmatmul.mubr.f32.gmra.mxu0 %v3375
    %v3656 = vpop.f32.mrf.mxu0
    %v3657 = vadd.f32 %v3250, %v3656
    %v3658 = vpop.f32.mrf.mxu0
    %v3659 = vadd.f32 %v3250, %v3658
    %3660 = vdwg.mxu0
    %v3661 = vld [vmem:[#allocation6] sm:$0xff]
    %v3662 = vld [vmem:[#allocation6 + $0x8] sm:$0xff]
    %v3663 = vadd.f32 %v3661, %v3444
    %v3664 = vadd.f32 %v3662, %v3446
    %3665 = vst [vmem:[#allocation6] sm:$0xff] %v3663
    %3666 = vst [vmem:[#allocation6 + $0x8] sm:$0xff] %v3664
    %v3667 = vld [vmem:[%s63] sm:$0xff]
    %v3668 = vld [vmem:[%s63 + $0x8] sm:$0xff]
    %v3669 = vadd.f32 %v3667, %v3515
    %v3670 = vadd.f32 %v3668, %v3517
    %3671 = vst [vmem:[%s63] sm:$0xff] %v3669
    %3672 = vst [vmem:[%s63 + $0x8] sm:$0xff] %v3670
    %v3673 = vld [vmem:[%s74] sm:$0xff]
    %v3674 = vld [vmem:[%s74 + $0x8] sm:$0xff]
    %v3675 = vadd.f32 %v3673, %v3586
    %v3676 = vadd.f32 %v3674, %v3588
    %3677 = vst [vmem:[%s74] sm:$0xff] %v3675
    %3678 = vst [vmem:[%s74 + $0x8] sm:$0xff] %v3676
    %v3679 = vld [vmem:[%s85] sm:$0xff]
    %v3680 = vld [vmem:[%s85 + $0x8] sm:$0xff]
    %v3681 = vadd.f32 %v3679, %v3657
    %v3682 = vadd.f32 %v3680, %v3659
    %3683 = vst [vmem:[%s85] sm:$0xff] %v3681
    %3684 = vst [vmem:[%s85 + $0x8] sm:$0xff] %v3682
    // Predicated region
    $region18: #{tpu_custom_call.1} parent=1 // pred_check
      _
    $region19: #{tpu_custom_call.1} parent=1 // pred_check_branch
      %3686 = sbr.rel (0) target = $region21
    $region20: #{tpu_custom_call.1} parent=1 // pred_region
      %s3688 = ssub.s32 1024, 1024
      %3689 = vsyncadd [#allocation5], %s3688
      %s3690 = sshll.u32 [#allocation6], 4
      %s3691 = int_to_ptr.vmem [resolvable:$true] %s3690
      %3696 = dma.vmem_to_hbm [thread:$0]  %s3691, 1024, %s3, [#allocation5], 256, 256, 16
    $region21: #{tpu_custom_call.1} parent=1 // pred_fallthru
      _
    // Predicated region
    $region22: #{tpu_custom_call.1} parent=1 // pred_check
      _
    $region23: #{tpu_custom_call.1} parent=1 // pred_check_branch
      %3698 = sbr.rel (0) target = $region25
    $region24: #{tpu_custom_call.1} parent=1 // pred_region
      %3699 = dma.done [#allocation5], 1024
    $region25: #{tpu_custom_call.1} parent=1 // pred_fallthru
      _
    %3700 = vsyncpa [#allocation4], 1
    %3701 = vsyncpa [#allocation5], 1

</llo_original>
